<compile_context>
chip_gen: v7x
topology: tpu7x:2x2x1
jax: 0.10.0
libtpu: 0.0.40
codegen_flags: <defaults>
</compile_context>

<pallas_src>
import math
from functools import partial

import jax
import jax.numpy as jnp
from jax.experimental import pallas as pl
from jax.experimental.pallas import tpu as pltpu


# ----------------------------------------------------------------------------
# Kernel
# ----------------------------------------------------------------------------
def _mha_kernel(x_ref, wqkv_ref, bqkv_ref, wo_ref, bo_ref,
                out_ref, *maybe_attnw_ref, num_heads, return_weights):
    # x_ref block: (Bt, S, E) in bf16 — Bt batch elements per grid step.
    Bt, S, E = x_ref.shape
    H = num_heads
    Dh = E // H

    x2d = x_ref[...].reshape(Bt * S, E)                       # bf16 rows

    # Fused QKV projection (bf16 operands, f32 accumulate). Weights are
    # pre-transposed and Q is pre-scaled by 1/sqrt(Dh) in the wrapper.
    qkv = jnp.dot(x2d, wqkv_ref[...], preferred_element_type=jnp.float32)
    qkv = qkv + bqkv_ref[...]                                 # (Bt*S, 3E) f32

    def split_heads(m):                                       # (Bt*S, E) -> (Bt*H, S, Dh) bf16
        m = m.reshape(Bt, S, H, Dh).transpose(0, 2, 1, 3)     # relayout in f32 (safe path)
        return m.reshape(Bt * H, S, Dh).astype(jnp.bfloat16)

    q = split_heads(qkv[:, 0 * E:1 * E])
    k = split_heads(qkv[:, 1 * E:2 * E])
    v = split_heads(qkv[:, 2 * E:3 * E])

    # Heads-batched attention: single batched matmul per stage, no per-head loop.
    s = jnp.einsum('bqd,bkd->bqk', q, k,
                   preferred_element_type=jnp.float32)        # (Bt*H, S, S) f32
    m = jnp.max(s, axis=-1, keepdims=True)
    p = jnp.exp(s - m)
    l = jnp.sum(p, axis=-1, keepdims=True)
    if return_weights:
        # Exact normalization so returned weights sum to 1 (matches the module).
        p = p / l
    else:
        # EUP approximate reciprocal — off the VPU critical path.
        p = p * pl.reciprocal(l, approx=True)

    ctx = jnp.einsum('bqk,bkd->bqd', p.astype(jnp.bfloat16), v,
                     preferred_element_type=jnp.float32)      # (Bt*H, S, Dh) f32
    ctx = ctx.reshape(Bt, H, S, Dh).transpose(0, 2, 1, 3)     # merge heads
    ctx = ctx.reshape(Bt * S, E).astype(jnp.bfloat16)

    out = jnp.dot(ctx, wo_ref[...], preferred_element_type=jnp.float32)
    out = out + bo_ref[...]
    # Dropout(p=0.1): eval-mode identity.
    out_ref[...] = out.reshape(Bt, S, E).astype(out_ref.dtype)

    if return_weights:                                        # trace-time static choice
        attnw_ref = maybe_attnw_ref[0]
        w = p.reshape(Bt, H, S, S).mean(axis=1)               # head-averaged (N, L, S)
        attnw_ref[...] = w.astype(attnw_ref.dtype)


# ----------------------------------------------------------------------------
# Parameter prep (layout-only, done once outside the kernel)
# ----------------------------------------------------------------------------
def _prepare_params(params, num_heads, matmul_dtype=jnp.bfloat16):
    """Fold 1/sqrt(Dh) into Q, fuse QKV, pre-transpose + bf16-cast the weights."""
    wq, wk, wv, bq, bk, bv, wo, bo = params
    E = wq.shape[0]
    scale = 1.0 / math.sqrt(E // num_heads)
    wqkv_t = jnp.concatenate([wq * scale, wk, wv], axis=0).T.astype(matmul_dtype)  # (E, 3E)
    bqkv = jnp.concatenate([bq * scale, bk, bv], axis=1).astype(jnp.float32)       # (1, 3E)
    return wqkv_t, bqkv, wo.T.astype(matmul_dtype), bo.astype(jnp.float32)


def _vmem_capacity_bytes():
    """Best-effort physical VMEM size (64 MiB on v7x, 128 MiB on v5e/v6e)."""
    try:
        return int(pltpu.get_tpu_info().vmem_capacity_bytes)
    except Exception:
        pass
    try:
        kind = jax.devices()[0].device_kind.lower()
        if "v7" in kind:
            return 64 << 20
    except Exception:
        pass
    return 128 << 20


def _pick_batch_tile(B, S, E, H, return_weights, vmem_budget_bytes):
    """Largest divisor Bt of B whose per-step VMEM footprint fits the budget.

    Also caps Bt so the grid keeps >= 2 steps (keeps both v7x TensorCores busy).
    """
    # Grid-invariant bytes: fused weights + biases (worst case double-buffered).
    weight_bytes = (E * 3 * E + E * E) * 2                    # bf16
    bias_bytes = (3 * E + E) * 4
    fixed = 2 * (weight_bytes + bias_bytes)

    # Per-batch-element transient/block bytes.
    per = 0
    per += 2 * S * E * 2                  # x block (double-buffered, bf16)
    per += S * 3 * E * 4                  # fused qkv (f32)
    per += 3 * S * E * (4 + 2)            # per-head relayout copies + bf16 q/k/v
    per += 2 * H * S * S * 4              # scores + probs (f32)
    per += H * S * S * 2                  # probs bf16
    per += S * E * (4 + 2)                # ctx f32 + bf16 merged
    per += 2 * S * E * 4                  # out block (double-buffered, f32)
    if return_weights:
        per += 3 * S * S * 4              # attnw output block (x2) + head-mean temp

    avail = max(vmem_budget_bytes - fixed, per)               # always allow Bt = 1
    bt_cap = max(avail // per, 1)
    if B >= 2:
        bt_cap = min(bt_cap, B // 2)                          # >= 2 parallel grid steps
    best = 1
    for cand in range(1, int(bt_cap) + 1):
        if B % cand == 0:
            best = cand
    return best


# ----------------------------------------------------------------------------
# Public wrapper
# ----------------------------------------------------------------------------
def multi_head_attention(x, params, num_heads, *, return_weights=True,
                         weights_dtype=jnp.float32):
    """x: (batch, seq, hidden) float32.

    Returns (attn_output, attn_weights) if return_weights else attn_output.
    Callers that do not need the weights should pass return_weights=False to skip
    the S^2 HBM writeback entirely (or weights_dtype=jnp.bfloat16 to halve it).
    """
    B, S, E = x.shape
    out_dtype = x.dtype
    wqkv_t, bqkv, wo_t, bo = _prepare_params(params, num_heads)
    x_mm = x.astype(jnp.bfloat16)                             # halves x HBM/VMEM traffic

    vmem_cap = _vmem_capacity_bytes()
    vmem_limit = min(int(vmem_cap * 0.78), 100 << 20)         # ~50 MiB v7x, ~100 MiB v5e/v6e
    Bt = _pick_batch_tile(B, S, E, num_heads, return_weights,
                          int(vmem_limit * 0.80))
    grid = (B // Bt,)

    kernel = partial(_mha_kernel, num_heads=num_heads, return_weights=return_weights)

    out_shape = [jax.ShapeDtypeStruct((B, S, E), out_dtype)]
    out_specs = [pl.BlockSpec((Bt, S, E), lambda b: (b, 0, 0))]
    if return_weights:
        out_shape.append(jax.ShapeDtypeStruct((B, S, S), weights_dtype))
        out_specs.append(pl.BlockSpec((Bt, S, S), lambda b: (b, 0, 0)))

    def build(weight_mode):
        def wspec(shape):
            if weight_mode is None:
                return pl.BlockSpec(shape, lambda b: (0, 0))
            return pl.BlockSpec(shape, lambda b: (0, 0), pipeline_mode=weight_mode)

        return pl.pallas_call(
            kernel,
            out_shape=tuple(out_shape),
            grid=grid,
            in_specs=[
                pl.BlockSpec((Bt, S, E), lambda b: (b, 0, 0)),  # x (bf16)
                wspec((E, 3 * E)),                              # fused Wqkv (bf16, Q pre-scaled)
                wspec((1, 3 * E)),                              # fused bias (f32)
                wspec((E, E)),                                  # Wo (bf16, pre-transposed)
                wspec((1, E)),                                  # bo (f32)
            ],
            out_specs=tuple(out_specs),
            compiler_params=pltpu.CompilerParams(
                dimension_semantics=("parallel",),
                vmem_limit_bytes=vmem_limit),
        )

    args = (x_mm, wqkv_t, bqkv, wo_t, bo)
    try:
        # Weights never change across the grid -> single pipeline buffer.
        result = build(pl.Buffered(1))(*args)
    except Exception:
        # pipeline_mode not supported on this jax/libtpu: fall back to the
        # default double-buffered weight windows (correctness identical).
        result = build(None)(*args)

    if return_weights:
        return result
    return result[0]


# ----------------------------------------------------------------------------
# Pure-JAX reference + params
# ----------------------------------------------------------------------------
def _reference(x, params, num_heads):
    """Pure-JAX reference mirroring nn.MultiheadAttention self-attention (f32)."""
    wq, wk, wv, bq, bk, bv, wo, bo = params
    B, S, E = x.shape
    Dh = E // num_heads
    q = x @ wq.T + bq[0]
    k = x @ wk.T + bk[0]
    v = x @ wv.T + bv[0]
    q = q.reshape(B, S, num_heads, Dh).transpose(0, 2, 1, 3) / math.sqrt(Dh)
    k = k.reshape(B, S, num_heads, Dh).transpose(0, 2, 1, 3)
    v = v.reshape(B, S, num_heads, Dh).transpose(0, 2, 1, 3)
    s = jnp.einsum('bhqd,bhkd->bhqk', q, k)
    p = jax.nn.softmax(s, axis=-1)
    o = jnp.einsum('bhqk,bhkd->bhqd', p, v)
    o = o.transpose(0, 2, 1, 3).reshape(B, S, E)
    out = o @ wo.T + bo[0]
    return out, p.mean(axis=1)


def init_params(key, hidden_size):
    """Deterministic parameter init (shapes match nn.MultiheadAttention)."""
    k1, k2, k3 = jax.random.split(key, 3)
    bound = math.sqrt(6.0 / (hidden_size + hidden_size))
    in_proj_w = jax.random.uniform(k1, (3 * hidden_size, hidden_size),
                                   jnp.float32, -bound, bound)
    wq, wk, wv = jnp.split(in_proj_w, 3, axis=0)
    bq = jnp.zeros((1, hidden_size), jnp.float32)
    bk = jnp.zeros((1, hidden_size), jnp.float32)
    bv = jnp.zeros((1, hidden_size), jnp.float32)
    wo = jax.random.uniform(k2, (hidden_size, hidden_size),
                            jnp.float32, -bound, bound)
    bo = jax.random.uniform(k3, (1, hidden_size), jnp.float32, -0.01, 0.01)
    return (wq, wk, wv, bq, bk, bv, wo, bo)


if __name__ == "__main__":
    hidden_size, num_heads = 32, 4
    batch, seq = 2, 8

    key = jax.random.PRNGKey(0)
    kx, kp = jax.random.split(key)
    x = jax.random.normal(kx, (batch, seq, hidden_size), jnp.float32)
    params = init_params(kp, hidden_size)

    attn_out, attn_w = multi_head_attention(x, params, num_heads)
    attn_out, attn_w = jax.block_until_ready((attn_out, attn_w))

    ref_out, ref_w = _reference(x, params, num_heads)
    assert attn_out.shape == (batch, seq, hidden_size)
    assert attn_w.shape == (batch, seq, seq)
    # Tolerances account for bf16 MXU operands (f32 accumulate); the f32
    # reference is exact. Typical error is ~1e-2 absolute at these magnitudes.
    assert jnp.allclose(attn_out, ref_out, atol=5e-2, rtol=5e-2), (
        float(jnp.max(jnp.abs(attn_out - ref_out))))
    assert jnp.allclose(attn_w, ref_w, atol=2.5e-2, rtol=2.5e-2), (
        float(jnp.max(jnp.abs(attn_w - ref_w))))
    # Returned weights use the exact-reciprocal path: rows sum to 1.
    assert jnp.allclose(attn_w.sum(-1), 1.0, atol=1e-4)

    print("KERNEL_OK")
</pallas_src>

<mosaic_0001>
module attributes {stable_mosaic.version = 11 : i64} {
  func.func @_mha_kernel(%arg0: i32, %arg1: memref<1x8x32xbf16, #tpu.memory_space<vmem>>, %arg2: memref<32x96xbf16, #tpu.memory_space<vmem>>, %arg3: memref<1x96xf32, #tpu.memory_space<vmem>>, %arg4: memref<32x32xbf16, #tpu.memory_space<vmem>>, %arg5: memref<1x32xf32, #tpu.memory_space<vmem>>, %arg6: memref<1x8x32xf32, #tpu.memory_space<vmem>>, %arg7: memref<1x8x8xf32, #tpu.memory_space<vmem>>) attributes {dimension_semantics = [#tpu.dimension_semantics<parallel>], iteration_bounds = array<i64: 2>, scalar_prefetch = 0 : i64, scratch_operands = 0 : i64, tpu.core_type = #tpu.core_type<tc>, window_params = [{transform_indices = @transform_0, window_bounds = array<i64: 1, 8, 32>}, {pipeline_mode = #tpu.pipeline_mode<synchronous>, transform_indices = @transform_1, window_bounds = array<i64: 32, 96>}, {pipeline_mode = #tpu.pipeline_mode<synchronous>, transform_indices = @transform_2, window_bounds = array<i64: 1, 96>}, {pipeline_mode = #tpu.pipeline_mode<synchronous>, transform_indices = @transform_3, window_bounds = array<i64: 32, 32>}, {pipeline_mode = #tpu.pipeline_mode<synchronous>, transform_indices = @transform_4, window_bounds = array<i64: 1, 32>}, {transform_indices = @transform_5, window_bounds = array<i64: 1, 8, 32>}, {transform_indices = @transform_6, window_bounds = array<i64: 1, 8, 8>}]} {
    %c0 = arith.constant 0 : index
    %c0_0 = arith.constant 0 : index
    %c0_1 = arith.constant 0 : index
    %0 = vector.load %arg1[%c0, %c0_0, %c0_1] : memref<1x8x32xbf16, #tpu.memory_space<vmem>>, vector<1x8x32xbf16>
    %1 = vector.shape_cast %0 : vector<1x8x32xbf16> to vector<8x32xbf16>
    %c0_2 = arith.constant 0 : index
    %c0_3 = arith.constant 0 : index
    %2 = vector.load %arg2[%c0_2, %c0_3] : memref<32x96xbf16, #tpu.memory_space<vmem>>, vector<32x96xbf16>
    %cst = arith.constant dense<0.000000e+00> : vector<8x96xf32>
    %3 = tpu.matmul %1, %2, %cst {dimension_numbers = #tpu.dot_dimension_numbers<[1], [0], [0], [1], [0, 0, 1, 1], [], []>} : vector<8x32xbf16>, vector<32x96xbf16>, vector<8x96xf32> -> vector<8x96xf32>
    %c0_4 = arith.constant 0 : index
    %c0_5 = arith.constant 0 : index
    %4 = vector.load %arg3[%c0_4, %c0_5] : memref<1x96xf32, #tpu.memory_space<vmem>>, vector<1x96xf32>
    %5 = vector.broadcast %4 : vector<1x96xf32> to vector<8x96xf32>
    %6 = arith.addf %3, %5 : vector<8x96xf32>
    %7 = vector.extract_strided_slice %6 {offsets = [0, 0], sizes = [8, 32], strides = [1, 1]} : vector<8x96xf32> to vector<8x32xf32>
    %8 = vector.shape_cast %7 : vector<8x32xf32> to vector<1x8x4x8xf32>
    %9 = tpu.transpose %8, [0, 2, 1, 3] : vector<1x8x4x8xf32> -> vector<1x4x8x8xf32>
    %10 = vector.shape_cast %9 : vector<1x4x8x8xf32> to vector<4x8x8xf32>
    %11 = arith.truncf %10 : vector<4x8x8xf32> to vector<4x8x8xbf16>
    %12 = vector.extract_strided_slice %6 {offsets = [0, 32], sizes = [8, 32], strides = [1, 1]} : vector<8x96xf32> to vector<8x32xf32>
    %13 = vector.shape_cast %12 : vector<8x32xf32> to vector<1x8x4x8xf32>
    %14 = tpu.transpose %13, [0, 2, 1, 3] : vector<1x8x4x8xf32> -> vector<1x4x8x8xf32>
    %15 = vector.shape_cast %14 : vector<1x4x8x8xf32> to vector<4x8x8xf32>
    %16 = arith.truncf %15 : vector<4x8x8xf32> to vector<4x8x8xbf16>
    %17 = vector.extract_strided_slice %6 {offsets = [0, 64], sizes = [8, 32], strides = [1, 1]} : vector<8x96xf32> to vector<8x32xf32>
    %18 = vector.shape_cast %17 : vector<8x32xf32> to vector<1x8x4x8xf32>
    %19 = tpu.transpose %18, [0, 2, 1, 3] : vector<1x8x4x8xf32> -> vector<1x4x8x8xf32>
    %20 = vector.shape_cast %19 : vector<1x4x8x8xf32> to vector<4x8x8xf32>
    %21 = arith.truncf %20 : vector<4x8x8xf32> to vector<4x8x8xbf16>
    "tpu.trace_start"() <{level = 10 : i32, message = "bqd,bkd->bqk"}> : () -> ()
    %cst_6 = arith.constant dense<0.000000e+00> : vector<4x8x8xf32>
    %22 = tpu.matmul %11, %16, %cst_6 {dimension_numbers = #tpu.dot_dimension_numbers<[2], [2], [1], [1], [0, 0, 0, 1, 1, 1], [0], [0]>} : vector<4x8x8xbf16>, vector<4x8x8xbf16>, vector<4x8x8xf32> -> vector<4x8x8xf32>
    "tpu.trace_stop"() : () -> ()
    %cst_7 = arith.constant dense<0xFF800000> : vector<4x8xf32>
    %23 = vector.multi_reduction <maximumf>, %22, %cst_7 [2] : vector<4x8x8xf32> to vector<4x8xf32>
    %24 = vector.shape_cast %23 : vector<4x8xf32> to vector<4x8x1xf32>
    %25 = vector.broadcast %24 : vector<4x8x1xf32> to vector<4x8x8xf32>
    %26 = arith.subf %22, %25 : vector<4x8x8xf32>
    %27 = math.exp %26 : vector<4x8x8xf32>
    %cst_8 = arith.constant dense<0.000000e+00> : vector<4x8xf32>
    %28 = vector.multi_reduction <add>, %27, %cst_8 [2] : vector<4x8x8xf32> to vector<4x8xf32>
    %29 = vector.shape_cast %28 : vector<4x8xf32> to vector<4x8x1xf32>
    %30 = vector.broadcast %29 : vector<4x8x1xf32> to vector<4x8x8xf32>
    %31 = arith.divf %27, %30 : vector<4x8x8xf32>
    %32 = arith.truncf %31 : vector<4x8x8xf32> to vector<4x8x8xbf16>
    "tpu.trace_start"() <{level = 10 : i32, message = "bqk,bkd->bqd"}> : () -> ()
    %cst_9 = arith.constant dense<0.000000e+00> : vector<4x8x8xf32>
    %33 = tpu.matmul %32, %21, %cst_9 {dimension_numbers = #tpu.dot_dimension_numbers<[2], [1], [1], [2], [0, 0, 0, 1, 1, 2], [0], [0]>} : vector<4x8x8xbf16>, vector<4x8x8xbf16>, vector<4x8x8xf32> -> vector<4x8x8xf32>
    "tpu.trace_stop"() : () -> ()
    %34 = vector.shape_cast %33 : vector<4x8x8xf32> to vector<1x4x8x8xf32>
    %35 = tpu.transpose %34, [0, 2, 1, 3] : vector<1x4x8x8xf32> -> vector<1x8x4x8xf32>
    %36 = vector.shape_cast %35 : vector<1x8x4x8xf32> to vector<8x32xf32>
    %37 = arith.truncf %36 : vector<8x32xf32> to vector<8x32xbf16>
    %c0_10 = arith.constant 0 : index
    %c0_11 = arith.constant 0 : index
    %38 = vector.load %arg4[%c0_10, %c0_11] : memref<32x32xbf16, #tpu.memory_space<vmem>>, vector<32x32xbf16>
    %cst_12 = arith.constant dense<0.000000e+00> : vector<8x32xf32>
    %39 = tpu.matmul %37, %38, %cst_12 {dimension_numbers = #tpu.dot_dimension_numbers<[1], [0], [0], [1], [0, 0, 1, 1], [], []>} : vector<8x32xbf16>, vector<32x32xbf16>, vector<8x32xf32> -> vector<8x32xf32>
    %c0_13 = arith.constant 0 : index
    %c0_14 = arith.constant 0 : index
    %40 = vector.load %arg5[%c0_13, %c0_14] : memref<1x32xf32, #tpu.memory_space<vmem>>, vector<1x32xf32>
    %41 = vector.broadcast %40 : vector<1x32xf32> to vector<8x32xf32>
    %42 = arith.addf %39, %41 : vector<8x32xf32>
    %43 = vector.shape_cast %42 : vector<8x32xf32> to vector<1x8x32xf32>
    %c0_15 = arith.constant 0 : index
    %c0_16 = arith.constant 0 : index
    %c0_17 = arith.constant 0 : index
    %44 = vector.load %arg6[%c0_15, %c0_16, %c0_17] : memref<1x8x32xf32, #tpu.memory_space<vmem>>, vector<1x8x32xf32>
    tpu.vector_store %arg6[%c0_15, %c0_16, %c0_17], %43 {strides = array<i32>} : memref<1x8x32xf32, #tpu.memory_space<vmem>>, vector<1x8x32xf32>,
    %45 = vector.shape_cast %31 : vector<4x8x8xf32> to vector<1x4x8x8xf32>
    %cst_18 = arith.constant dense<0.000000e+00> : vector<1x8x8xf32>
    %46 = vector.multi_reduction <add>, %45, %cst_18 [1] : vector<1x4x8x8xf32> to vector<1x8x8xf32>
    %cst_19 = arith.constant 4.000000e+00 : f32
    %47 = vector.broadcast %cst_19 : f32 to vector<1x8x8xf32>
    %48 = arith.divf %46, %47 : vector<1x8x8xf32>
    %c0_20 = arith.constant 0 : index
    %c0_21 = arith.constant 0 : index
    %c0_22 = arith.constant 0 : index
    %49 = vector.load %arg7[%c0_20, %c0_21, %c0_22] : memref<1x8x8xf32, #tpu.memory_space<vmem>>, vector<1x8x8xf32>
    tpu.vector_store %arg7[%c0_20, %c0_21, %c0_22], %48 {strides = array<i32>} : memref<1x8x8xf32, #tpu.memory_space<vmem>>, vector<1x8x8xf32>,
    return
  }
  func.func @transform_0(%arg0: i32) -> (i32, i32, i32) {
    %c0_i32 = arith.constant 0 : i32
    %c0_i32_0 = arith.constant 0 : i32
    %c0_i32_1 = arith.constant 0 : i32
    return %arg0, %c0_i32, %c0_i32_0 : i32, i32, i32
  }
  func.func @transform_1(%arg0: i32) -> (i32, i32) {
    %c0_i32 = arith.constant 0 : i32
    %c0_i32_0 = arith.constant 0 : i32
    %c0_i32_1 = arith.constant 0 : i32
    return %c0_i32, %c0_i32_0 : i32, i32
  }
  func.func @transform_2(%arg0: i32) -> (i32, i32) {
    %c0_i32 = arith.constant 0 : i32
    %c0_i32_0 = arith.constant 0 : i32
    %c0_i32_1 = arith.constant 0 : i32
    return %c0_i32, %c0_i32_0 : i32, i32
  }
  func.func @transform_3(%arg0: i32) -> (i32, i32) {
    %c0_i32 = arith.constant 0 : i32
    %c0_i32_0 = arith.constant 0 : i32
    %c0_i32_1 = arith.constant 0 : i32
    return %c0_i32, %c0_i32_0 : i32, i32
  }
  func.func @transform_4(%arg0: i32) -> (i32, i32) {
    %c0_i32 = arith.constant 0 : i32
    %c0_i32_0 = arith.constant 0 : i32
    %c0_i32_1 = arith.constant 0 : i32
    return %c0_i32, %c0_i32_0 : i32, i32
  }
  func.func @transform_5(%arg0: i32) -> (i32, i32, i32) {
    %c0_i32 = arith.constant 0 : i32
    %c0_i32_0 = arith.constant 0 : i32
    %c0_i32_1 = arith.constant 0 : i32
    return %arg0, %c0_i32, %c0_i32_0 : i32, i32, i32
  }
  func.func @transform_6(%arg0: i32) -> (i32, i32, i32) {
    %c0_i32 = arith.constant 0 : i32
    %c0_i32_0 = arith.constant 0 : i32
    %c0_i32_1 = arith.constant 0 : i32
    return %arg0, %c0_i32, %c0_i32_0 : i32, i32, i32
  }
}

module attributes {stable_mosaic.version = 11 : i64} {
  func.func @_mha_kernel(%arg0: i32, %arg1: memref<1x8x32xbf16, #tpu.memory_space<vmem>>, %arg2: memref<32x96xbf16, #tpu.memory_space<vmem>>, %arg3: memref<1x96xf32, #tpu.memory_space<vmem>>, %arg4: memref<32x32xbf16, #tpu.memory_space<vmem>>, %arg5: memref<1x32xf32, #tpu.memory_space<vmem>>, %arg6: memref<1x8x32xf32, #tpu.memory_space<vmem>>, %arg7: memref<1x8x8xf32, #tpu.memory_space<vmem>>) attributes {dimension_semantics = [#tpu.dimension_semantics<parallel>], iteration_bounds = array<i64: 2>, scalar_prefetch = 0 : i64, scratch_operands = 0 : i64, tpu.core_type = #tpu.core_type<tc>, window_params = [{transform_indices = @transform_0, window_bounds = array<i64: 1, 8, 32>}, {pipeline_mode = #tpu.pipeline_mode<synchronous>, transform_indices = @transform_1, window_bounds = array<i64: 32, 96>}, {pipeline_mode = #tpu.pipeline_mode<synchronous>, transform_indices = @transform_2, window_bounds = array<i64: 1, 96>}, {pipeline_mode = #tpu.pipeline_mode<synchronous>, transform_indices = @transform_3, window_bounds = array<i64: 32, 32>}, {pipeline_mode = #tpu.pipeline_mode<synchronous>, transform_indices = @transform_4, window_bounds = array<i64: 1, 32>}, {transform_indices = @transform_5, window_bounds = array<i64: 1, 8, 32>}, {transform_indices = @transform_6, window_bounds = array<i64: 1, 8, 8>}]} {
    %c0 = arith.constant 0 : index
    %c0_0 = arith.constant 0 : index
    %c0_1 = arith.constant 0 : index
    %0 = vector.load %arg1[%c0, %c0_0, %c0_1] : memref<1x8x32xbf16, #tpu.memory_space<vmem>>, vector<1x8x32xbf16>
    %1 = vector.shape_cast %0 : vector<1x8x32xbf16> to vector<8x32xbf16>
    %c0_2 = arith.constant 0 : index
    %c0_3 = arith.constant 0 : index
    %2 = vector.load %arg2[%c0_2, %c0_3] : memref<32x96xbf16, #tpu.memory_space<vmem>>, vector<32x96xbf16>
    %cst = arith.constant dense<0.000000e+00> : vector<8x96xf32>
    %3 = tpu.matmul %1, %2, %cst {dimension_numbers = #tpu.dot_dimension_numbers<[1], [0], [0], [1], [0, 0, 1, 1], [], []>} : vector<8x32xbf16>, vector<32x96xbf16>, vector<8x96xf32> -> vector<8x96xf32>
    %c0_4 = arith.constant 0 : index
    %c0_5 = arith.constant 0 : index
    %4 = vector.load %arg3[%c0_4, %c0_5] : memref<1x96xf32, #tpu.memory_space<vmem>>, vector<1x96xf32>
    %5 = vector.broadcast %4 : vector<1x96xf32> to vector<8x96xf32>
    %6 = arith.addf %3, %5 : vector<8x96xf32>
    %7 = vector.extract_strided_slice %6 {offsets = [0, 0], sizes = [8, 32], strides = [1, 1]} : vector<8x96xf32> to vector<8x32xf32>
    %8 = vector.shape_cast %7 : vector<8x32xf32> to vector<1x8x4x8xf32>
    %9 = tpu.transpose %8, [0, 2, 1, 3] : vector<1x8x4x8xf32> -> vector<1x4x8x8xf32>
    %10 = vector.shape_cast %9 : vector<1x4x8x8xf32> to vector<4x8x8xf32>
    %11 = arith.truncf %10 : vector<4x8x8xf32> to vector<4x8x8xbf16>
    %12 = vector.extract_strided_slice %6 {offsets = [0, 32], sizes = [8, 32], strides = [1, 1]} : vector<8x96xf32> to vector<8x32xf32>
    %13 = vector.shape_cast %12 : vector<8x32xf32> to vector<1x8x4x8xf32>
    %14 = tpu.transpose %13, [0, 2, 1, 3] : vector<1x8x4x8xf32> -> vector<1x4x8x8xf32>
    %15 = vector.shape_cast %14 : vector<1x4x8x8xf32> to vector<4x8x8xf32>
    %16 = arith.truncf %15 : vector<4x8x8xf32> to vector<4x8x8xbf16>
    %17 = vector.extract_strided_slice %6 {offsets = [0, 64], sizes = [8, 32], strides = [1, 1]} : vector<8x96xf32> to vector<8x32xf32>
    %18 = vector.shape_cast %17 : vector<8x32xf32> to vector<1x8x4x8xf32>
    %19 = tpu.transpose %18, [0, 2, 1, 3] : vector<1x8x4x8xf32> -> vector<1x4x8x8xf32>
    %20 = vector.shape_cast %19 : vector<1x4x8x8xf32> to vector<4x8x8xf32>
    %21 = arith.truncf %20 : vector<4x8x8xf32> to vector<4x8x8xbf16>
    "tpu.trace_start"() <{level = 10 : i32, message = "bqd,bkd->bqk"}> : () -> ()
    %cst_6 = arith.constant dense<0.000000e+00> : vector<4x8x8xf32>
    %22 = tpu.matmul %11, %16, %cst_6 {dimension_numbers = #tpu.dot_dimension_numbers<[2], [2], [1], [1], [0, 0, 0, 1, 1, 1], [0], [0]>} : vector<4x8x8xbf16>, vector<4x8x8xbf16>, vector<4x8x8xf32> -> vector<4x8x8xf32>
    "tpu.trace_stop"() : () -> ()
    %cst_7 = arith.constant dense<0xFF800000> : vector<4x8xf32>
    %23 = vector.multi_reduction <maximumf>, %22, %cst_7 [2] : vector<4x8x8xf32> to vector<4x8xf32>
    %24 = vector.shape_cast %23 : vector<4x8xf32> to vector<4x8x1xf32>
    %25 = vector.broadcast %24 : vector<4x8x1xf32> to vector<4x8x8xf32>
    %26 = arith.subf %22, %25 : vector<4x8x8xf32>
    %27 = math.exp %26 : vector<4x8x8xf32>
    %cst_8 = arith.constant dense<0.000000e+00> : vector<4x8xf32>
    %28 = vector.multi_reduction <add>, %27, %cst_8 [2] : vector<4x8x8xf32> to vector<4x8xf32>
    %29 = vector.shape_cast %28 : vector<4x8xf32> to vector<4x8x1xf32>
    %30 = vector.broadcast %29 : vector<4x8x1xf32> to vector<4x8x8xf32>
    %31 = arith.divf %27, %30 : vector<4x8x8xf32>
    %32 = arith.truncf %31 : vector<4x8x8xf32> to vector<4x8x8xbf16>
    "tpu.trace_start"() <{level = 10 : i32, message = "bqk,bkd->bqd"}> : () -> ()
    %cst_9 = arith.constant dense<0.000000e+00> : vector<4x8x8xf32>
    %33 = tpu.matmul %32, %21, %cst_9 {dimension_numbers = #tpu.dot_dimension_numbers<[2], [1], [1], [2], [0, 0, 0, 1, 1, 2], [0], [0]>} : vector<4x8x8xbf16>, vector<4x8x8xbf16>, vector<4x8x8xf32> -> vector<4x8x8xf32>
    "tpu.trace_stop"() : () -> ()
    %34 = vector.shape_cast %33 : vector<4x8x8xf32> to vector<1x4x8x8xf32>
    %35 = tpu.transpose %34, [0, 2, 1, 3] : vector<1x4x8x8xf32> -> vector<1x8x4x8xf32>
    %36 = vector.shape_cast %35 : vector<1x8x4x8xf32> to vector<8x32xf32>
    %37 = arith.truncf %36 : vector<8x32xf32> to vector<8x32xbf16>
    %c0_10 = arith.constant 0 : index
    %c0_11 = arith.constant 0 : index
    %38 = vector.load %arg4[%c0_10, %c0_11] : memref<32x32xbf16, #tpu.memory_space<vmem>>, vector<32x32xbf16>
    %cst_12 = arith.constant dense<0.000000e+00> : vector<8x32xf32>
    %39 = tpu.matmul %37, %38, %cst_12 {dimension_numbers = #tpu.dot_dimension_numbers<[1], [0], [0], [1], [0, 0, 1, 1], [], []>} : vector<8x32xbf16>, vector<32x32xbf16>, vector<8x32xf32> -> vector<8x32xf32>
    %c0_13 = arith.constant 0 : index
    %c0_14 = arith.constant 0 : index
    %40 = vector.load %arg5[%c0_13, %c0_14] : memref<1x32xf32, #tpu.memory_space<vmem>>, vector<1x32xf32>
    %41 = vector.broadcast %40 : vector<1x32xf32> to vector<8x32xf32>
    %42 = arith.addf %39, %41 : vector<8x32xf32>
    %43 = vector.shape_cast %42 : vector<8x32xf32> to vector<1x8x32xf32>
    %c0_15 = arith.constant 0 : index
    %c0_16 = arith.constant 0 : index
    %c0_17 = arith.constant 0 : index
    %44 = vector.load %arg6[%c0_15, %c0_16, %c0_17] : memref<1x8x32xf32, #tpu.memory_space<vmem>>, vector<1x8x32xf32>
    tpu.vector_store %arg6[%c0_15, %c0_16, %c0_17], %43 {strides = array<i32>} : memref<1x8x32xf32, #tpu.memory_space<vmem>>, vector<1x8x32xf32>,
    %45 = vector.shape_cast %31 : vector<4x8x8xf32> to vector<1x4x8x8xf32>
    %cst_18 = arith.constant dense<0.000000e+00> : vector<1x8x8xf32>
    %46 = vector.multi_reduction <add>, %45, %cst_18 [1] : vector<1x4x8x8xf32> to vector<1x8x8xf32>
    %cst_19 = arith.constant 4.000000e+00 : f32
    %47 = vector.broadcast %cst_19 : f32 to vector<1x8x8xf32>
    %48 = arith.divf %46, %47 : vector<1x8x8xf32>
    %c0_20 = arith.constant 0 : index
    %c0_21 = arith.constant 0 : index
    %c0_22 = arith.constant 0 : index
    %49 = vector.load %arg7[%c0_20, %c0_21, %c0_22] : memref<1x8x8xf32, #tpu.memory_space<vmem>>, vector<1x8x8xf32>
    tpu.vector_store %arg7[%c0_20, %c0_21, %c0_22], %48 {strides = array<i32>} : memref<1x8x8xf32, #tpu.memory_space<vmem>>, vector<1x8x8xf32>,
    return
  }
  func.func @transform_0(%arg0: i32) -> (i32, i32, i32) {
    %c0_i32 = arith.constant 0 : i32
    %c0_i32_0 = arith.constant 0 : i32
    %c0_i32_1 = arith.constant 0 : i32
    return %arg0, %c0_i32, %c0_i32_0 : i32, i32, i32
  }
  func.func @transform_1(%arg0: i32) -> (i32, i32) {
    %c0_i32 = arith.constant 0 : i32
    %c0_i32_0 = arith.constant 0 : i32
    %c0_i32_1 = arith.constant 0 : i32
    return %c0_i32, %c0_i32_0 : i32, i32
  }
  func.func @transform_2(%arg0: i32) -> (i32, i32) {
    %c0_i32 = arith.constant 0 : i32
    %c0_i32_0 = arith.constant 0 : i32
    %c0_i32_1 = arith.constant 0 : i32
    return %c0_i32, %c0_i32_0 : i32, i32
  }
  func.func @transform_3(%arg0: i32) -> (i32, i32) {
    %c0_i32 = arith.constant 0 : i32
    %c0_i32_0 = arith.constant 0 : i32
    %c0_i32_1 = arith.constant 0 : i32
    return %c0_i32, %c0_i32_0 : i32, i32
  }
  func.func @transform_4(%arg0: i32) -> (i32, i32) {
    %c0_i32 = arith.constant 0 : i32
    %c0_i32_0 = arith.constant 0 : i32
    %c0_i32_1 = arith.constant 0 : i32
    return %c0_i32, %c0_i32_0 : i32, i32
  }
  func.func @transform_5(%arg0: i32) -> (i32, i32, i32) {
    %c0_i32 = arith.constant 0 : i32
    %c0_i32_0 = arith.constant 0 : i32
    %c0_i32_1 = arith.constant 0 : i32
    return %arg0, %c0_i32, %c0_i32_0 : i32, i32, i32
  }
  func.func @transform_6(%arg0: i32) -> (i32, i32, i32) {
    %c0_i32 = arith.constant 0 : i32
    %c0_i32_0 = arith.constant 0 : i32
    %c0_i32_1 = arith.constant 0 : i32
    return %arg0, %c0_i32, %c0_i32_0 : i32, i32, i32
  }
}

</mosaic_0001>

<llo_original>
// kernel: tpu_custom_call.1
$region0: #{tpu_custom_call.1}
  #allocation0 [shape = 'u32[]', space=smem, size = 0x4, offset = 0x4, fixed_abs, tag = 'smem constant byte address 0x4 - core index']
  #allocation1 [shape = 'u32[144,128]{1,0:T(1,128)}', space=vmem, size = 0x12000, scoped, tag = 'internal scratch']
  %s0 = inlined_call_operand.hbm [shape: bf16[2,8,32], index: 0, kind: input, shape index: {}]
  %s1 = inlined_call_operand.hbm [shape: bf16[32,96], index: 1, kind: input, shape index: {}]
  %s2 = inlined_call_operand.hbm [shape: f32[1,96], index: 2, kind: input, shape index: {}]
  %s3 = inlined_call_operand.hbm [shape: bf16[32,32], index: 3, kind: input, shape index: {}]
  %s4 = inlined_call_operand.hbm [shape: f32[1,32], index: 4, kind: input, shape index: {}]
  %s5 = inlined_call_operand.hbm [shape: f32[2,8,32], index: 5, kind: output, shape index: {0}]
  %s6 = inlined_call_operand.hbm [shape: f32[2,8,8], index: 6, kind: output, shape index: {1}]
  %7 = xla_tuple %s5, %s6
  %s8 = sld [smem:[#allocation0]]
  $region81: #{tpu_custom_call.1} parent=0
    _
  %s10 = ssub.s32 1, %s8
  %s11 = scalar_select 0, %s10, %s8
  $region1: #{tpu_custom_call.1} parent=0
    #allocation2 [shape = 'u8[4096]{0}', space=vmem, size = 0x1000, scoped, tag = 'input window, operand 0']
    #allocation3 [shape = 's32[2]{0}', space=sflag, size = 0x8, scoped, tag = 'scoped memory for tpu_custom_call.1']
    #allocation4 [shape = 's32[2]{0}', space=sflag, size = 0x8, scoped, tag = 'scoped memory for tpu_custom_call.1']
    #allocation5 [shape = 'u8[8192]{0}', space=vmem, size = 0x2000, scoped, tag = 'input window, operand 1, single buffered']
    #allocation6 [shape = 's32[1]{0}', space=sflag, size = 0x4, scoped, tag = 'scoped memory for tpu_custom_call.1']
    #allocation7 [shape = 'u8[512]{0}', space=vmem, size = 0x400, scoped, tag = 'input window, operand 2, single buffered']
    #allocation8 [shape = 'u8[8192]{0}', space=vmem, size = 0x2000, scoped, tag = 'input window, operand 3, single buffered']
    #allocation9 [shape = 's32[1]{0}', space=sflag, size = 0x4, scoped, tag = 'scoped memory for tpu_custom_call.1']
    #allocation10 [shape = 'u8[512]{0}', space=vmem, size = 0x400, scoped, tag = 'input window, operand 4, single buffered']
    #allocation11 [shape = 'u8[8192]{0}', space=vmem, size = 0x2000, scoped, tag = 'output window, operand 0']
    #allocation12 [shape = 'u8[8192]{0}', space=vmem, size = 0x2000, scoped, tag = 'output window, operand 1']
    #allocation13 [shape = 's32[2]{0}', space=sflag, size = 0x8, scoped, tag = 'scoped memory for tpu_custom_call.1']
    %12 = vsyncpa [#allocation3], 0
    %s13 = scalar_lea.sflag [#allocation3], 1
    %14 = vsyncpa %s13, 0
    %15 = vsyncpa [#allocation6], 0
    %16 = vsyncpa [#allocation9], 0
    %17 = vsyncpa [#allocation4], 0
    %s18 = scalar_lea.sflag [#allocation4], 1
    %19 = vsyncpa %s18, 0
    %20 = vsyncpa [#allocation13], 0
    %s21 = scalar_lea.sflag [#allocation13], 1
    %22 = vsyncpa %s21, 0
    loop: start=0, step=1, limit=4
    $region2: #{tpu_custom_call.1} parent=1 // loop_pre_header
      _
    $region3: #{tpu_custom_call.1} parent=1 // loop_header
      %s24 = sphi 0, %s28
      %p25 = scmp.ge.s32.totalorder %s24, 4
      %s34 = sphi 0, %s36
      %s37 = sphi 0, %s34
      %s38 = sphi 0, %s37
      %s54 = sphi 0, %s38
      %s58 = sphi 0, %s58
      %s60 = sphi 0, %s58
      %s61 = sphi 0, %s60
      %s75 = sphi 0, %s61
      %s79 = sphi 0, %s79
      %s81 = sphi 0, %s79
      %s82 = sphi 0, %s81
      %s96 = sphi 0, %s82
      %s100 = sphi 0, %s100
      %s102 = sphi 0, %s100
      %s103 = sphi 0, %s102
      %s117 = sphi 0, %s103
      %s121 = sphi 0, %s121
      %s123 = sphi 0, %s121
      %s124 = sphi 0, %s123
      %s138 = sphi 0, %s124
      %s144 = sphi 0, %s146
      %s147 = sphi 0, %s144
      %s148 = sphi 0, %s147
      %s164 = sphi 0, %s148
      %s170 = sphi 0, %s172
      %s173 = sphi 0, %s170
      %s174 = sphi 0, %s173
      %s190 = sphi 0, %s174
    $region4: #{tpu_custom_call.1} parent=1 // loop_header_branch
      %27 = sbr.rel (%p25) target = $region8
    $region5: #{tpu_custom_call.1} parent=1 // loop_body
      %s29 = ssub.s32 %s24, 1
      %s30 = ssub.s32 %s24, 2
      %s31 = sadd.s32 %s24, 1
      %s32 = ssub.s32 %s24, %s31
      %p33 = scmp.eq.s32.totalorder %s32, 0
      %s35 = sadd.s32 %s34, 1
      %s36 = scalar_select %p33, %s34, %s35
      %p39 = pneg %p33
      %p40 = scmp.eq.s32.totalorder %s24, 1
      %p41 = por %p39, %p40
      %p42 = scmp.ne.s32.totalorder %s34, %s37
      %p43 = scmp.eq.s32.totalorder %s24, 0
      %p44 = por %p42, %p43
      %p45 = scmp.ne.s32.totalorder %s34, %s37
      %p46 = scmp.eq.s32.totalorder %s29, 1
      %p47 = por %p45, %p46
      %p48 = scmp.ne.s32.totalorder %s37, %s38
      %p49 = scmp.eq.s32.totalorder %s29, 0
      %p50 = por %p48, %p49
      %p51 = scmp.ne.s32.totalorder %s37, %s38
      %p52 = scmp.eq.s32.totalorder %s30, 1
      %p53 = por %p51, %p52
      %p55 = scmp.ne.s32.totalorder %s38, %s54
      %p56 = scmp.eq.s32.totalorder %s30, 0
      %p57 = por %p55, %p56
      %s59 = sadd.s32 %s58, 1
      %p62 = scmp.eq.s32.totalorder %s24, 1
      %p63 = scmp.ne.s32.totalorder %s58, %s60
      %p64 = scmp.eq.s32.totalorder %s24, 0
      %p65 = por %p63, %p64
      %p66 = scmp.ne.s32.totalorder %s58, %s60
      %p67 = scmp.eq.s32.totalorder %s29, 1
      %p68 = por %p66, %p67
      %p69 = scmp.ne.s32.totalorder %s60, %s61
      %p70 = scmp.eq.s32.totalorder %s29, 0
      %p71 = por %p69, %p70
      %p72 = scmp.ne.s32.totalorder %s60, %s61
      %p73 = scmp.eq.s32.totalorder %s30, 1
      %p74 = por %p72, %p73
      %p76 = scmp.ne.s32.totalorder %s61, %s75
      %p77 = scmp.eq.s32.totalorder %s30, 0
      %p78 = por %p76, %p77
      %s80 = sadd.s32 %s79, 1
      %p83 = scmp.eq.s32.totalorder %s24, 1
      %p84 = scmp.ne.s32.totalorder %s79, %s81
      %p85 = scmp.eq.s32.totalorder %s24, 0
      %p86 = por %p84, %p85
      %p87 = scmp.ne.s32.totalorder %s79, %s81
      %p88 = scmp.eq.s32.totalorder %s29, 1
      %p89 = por %p87, %p88
      %p90 = scmp.ne.s32.totalorder %s81, %s82
      %p91 = scmp.eq.s32.totalorder %s29, 0
      %p92 = por %p90, %p91
      %p93 = scmp.ne.s32.totalorder %s81, %s82
      %p94 = scmp.eq.s32.totalorder %s30, 1
      %p95 = por %p93, %p94
      %p97 = scmp.ne.s32.totalorder %s82, %s96
      %p98 = scmp.eq.s32.totalorder %s30, 0
      %p99 = por %p97, %p98
      %s101 = sadd.s32 %s100, 1
      %p104 = scmp.eq.s32.totalorder %s24, 1
      %p105 = scmp.ne.s32.totalorder %s100, %s102
      %p106 = scmp.eq.s32.totalorder %s24, 0
      %p107 = por %p105, %p106
      %p108 = scmp.ne.s32.totalorder %s100, %s102
      %p109 = scmp.eq.s32.totalorder %s29, 1
      %p110 = por %p108, %p109
      %p111 = scmp.ne.s32.totalorder %s102, %s103
      %p112 = scmp.eq.s32.totalorder %s29, 0
      %p113 = por %p111, %p112
      %p114 = scmp.ne.s32.totalorder %s102, %s103
      %p115 = scmp.eq.s32.totalorder %s30, 1
      %p116 = por %p114, %p115
      %p118 = scmp.ne.s32.totalorder %s103, %s117
      %p119 = scmp.eq.s32.totalorder %s30, 0
      %p120 = por %p118, %p119
      %s122 = sadd.s32 %s121, 1
      %p125 = scmp.eq.s32.totalorder %s24, 1
      %p126 = scmp.ne.s32.totalorder %s121, %s123
      %p127 = scmp.eq.s32.totalorder %s24, 0
      %p128 = por %p126, %p127
      %p129 = scmp.ne.s32.totalorder %s121, %s123
      %p130 = scmp.eq.s32.totalorder %s29, 1
      %p131 = por %p129, %p130
      %p132 = scmp.ne.s32.totalorder %s123, %s124
      %p133 = scmp.eq.s32.totalorder %s29, 0
      %p134 = por %p132, %p133
      %p135 = scmp.ne.s32.totalorder %s123, %s124
      %p136 = scmp.eq.s32.totalorder %s30, 1
      %p137 = por %p135, %p136
      %p139 = scmp.ne.s32.totalorder %s124, %s138
      %p140 = scmp.eq.s32.totalorder %s30, 0
      %p141 = por %p139, %p140
      %s142 = ssub.s32 %s24, %s31
      %p143 = scmp.eq.s32.totalorder %s142, 0
      %s145 = sadd.s32 %s144, 1
      %s146 = scalar_select %p143, %s144, %s145
      %p149 = pneg %p143
      %p150 = scmp.eq.s32.totalorder %s24, 1
      %p151 = por %p149, %p150
      %p152 = scmp.ne.s32.totalorder %s144, %s147
      %p153 = scmp.eq.s32.totalorder %s24, 0
      %p154 = por %p152, %p153
      %p155 = scmp.ne.s32.totalorder %s144, %s147
      %p156 = scmp.eq.s32.totalorder %s29, 1
      %p157 = por %p155, %p156
      %p158 = scmp.ne.s32.totalorder %s147, %s148
      %p159 = scmp.eq.s32.totalorder %s29, 0
      %p160 = por %p158, %p159
      %p161 = scmp.ne.s32.totalorder %s147, %s148
      %p162 = scmp.eq.s32.totalorder %s30, 1
      %p163 = por %p161, %p162
      %p165 = scmp.ne.s32.totalorder %s148, %s164
      %p166 = scmp.eq.s32.totalorder %s30, 0
      %p167 = por %p165, %p166
      %s168 = ssub.s32 %s24, %s31
      %p169 = scmp.eq.s32.totalorder %s168, 0
      %s171 = sadd.s32 %s170, 1
      %s172 = scalar_select %p169, %s170, %s171
      %p175 = pneg %p169
      %p176 = scmp.eq.s32.totalorder %s24, 1
      %p177 = por %p175, %p176
      %p178 = scmp.ne.s32.totalorder %s170, %s173
      %p179 = scmp.eq.s32.totalorder %s24, 0
      %p180 = por %p178, %p179
      %p181 = scmp.ne.s32.totalorder %s170, %s173
      %p182 = scmp.eq.s32.totalorder %s29, 1
      %p183 = por %p181, %p182
      %p184 = scmp.ne.s32.totalorder %s173, %s174
      %p185 = scmp.eq.s32.totalorder %s29, 0
      %p186 = por %p184, %p185
      %p187 = scmp.ne.s32.totalorder %s173, %s174
      %p188 = scmp.eq.s32.totalorder %s30, 1
      %p189 = por %p187, %p188
      %p191 = scmp.ne.s32.totalorder %s174, %s190
      %p192 = scmp.eq.s32.totalorder %s30, 0
      %p193 = por %p191, %p192
      %p194 = scmp.le.s32.totalorder 1, %s24
      %p195 = scmp.lt.s32.totalorder %s24, 3
      %p196 = pnand %p194, %p195
      %p197 = pneg %p196
      // Predicated region
      $region9: #{tpu_custom_call.1} parent=5 // pred_check
        _
      $region10: #{tpu_custom_call.1} parent=5 // pred_check_branch
        %199 = sbr.rel (%p196) target = $region12
      $region11: #{tpu_custom_call.1} parent=5 // pred_region
        %s200 = ssub.s32 %s24, 1
        // Predicated region
        $region13: #{tpu_custom_call.1} parent=11 // pred_check
          %p201 = pneg %p71
        $region14: #{tpu_custom_call.1} parent=11 // pred_check_branch
          %203 = sbr.rel (%p201) target = $region16
        $region15: #{tpu_custom_call.1} parent=11 // pred_region
          %s205 = ssub.s32 256, 256
          %206 = vsyncadd [#allocation6], %s205
          %s207 = sshll.u32 [#allocation5], 4
          %s208 = int_to_ptr.vmem [resolvable:$true] %s207
          %213 = dma.hbm_to_vmem [thread:$0]  %s1, 256, %s208, [#allocation6], 64, 64, 4
        $region16: #{tpu_custom_call.1} parent=11 // pred_fallthru
          _
        // Predicated region
        $region17: #{tpu_custom_call.1} parent=11 // pred_check
          %p214 = pneg %p92
        $region18: #{tpu_custom_call.1} parent=11 // pred_check_branch
          %216 = sbr.rel (%p214) target = $region20
        $region19: #{tpu_custom_call.1} parent=11 // pred_region
          %s218 = ssub.s32 16, 16
          %219 = vsyncadd [#allocation6], %s218
          %s221 = sshll.u32 [#allocation7], 4
          %s222 = int_to_ptr.vmem [resolvable:$true] %s221
          %224 = dma.hbm_to_vmem [thread:$0]  %s2, 16, %s222, [#allocation6]
        $region20: #{tpu_custom_call.1} parent=11 // pred_fallthru
          _
        // Predicated region
        $region21: #{tpu_custom_call.1} parent=11 // pred_check
          %p225 = pneg %p113
        $region22: #{tpu_custom_call.1} parent=11 // pred_check_branch
          %227 = sbr.rel (%p225) target = $region24
        $region23: #{tpu_custom_call.1} parent=11 // pred_region
          %s229 = ssub.s32 256, 256
          %230 = vsyncadd [#allocation9], %s229
          %s231 = sshll.u32 [#allocation8], 4
          %s232 = int_to_ptr.vmem [resolvable:$true] %s231
          %237 = dma.hbm_to_vmem [thread:$0]  %s3, 256, %s232, [#allocation9], 64, 64, 4
        $region24: #{tpu_custom_call.1} parent=11 // pred_fallthru
          _
        // Predicated region
        $region25: #{tpu_custom_call.1} parent=11 // pred_check
          %p238 = pneg %p134
        $region26: #{tpu_custom_call.1} parent=11 // pred_check_branch
          %240 = sbr.rel (%p238) target = $region28
        $region27: #{tpu_custom_call.1} parent=11 // pred_region
          %s242 = ssub.s32 16, 16
          %243 = vsyncadd [#allocation9], %s242
          %s245 = sshll.u32 [#allocation10], 4
          %s246 = int_to_ptr.vmem [resolvable:$true] %s245
          %248 = dma.hbm_to_vmem [thread:$0]  %s4, 16, %s246, [#allocation9]
        $region28: #{tpu_custom_call.1} parent=11 // pred_fallthru
          _
      $region12: #{tpu_custom_call.1} parent=5 // pred_fallthru
        _
      %p249 = scmp.lt.s32.totalorder %s24, 2
      // Predicated region
      $region29: #{tpu_custom_call.1} parent=5 // pred_check
        %p250 = pneg %p249
      $region30: #{tpu_custom_call.1} parent=5 // pred_check_branch
        %252 = sbr.rel (%p250) target = $region32
      $region31: #{tpu_custom_call.1} parent=5 // pred_region
        // Predicated region
        $region33: #{tpu_custom_call.1} parent=31 // pred_check
          %p253 = pneg %p44
        $region34: #{tpu_custom_call.1} parent=31 // pred_check_branch
          %255 = sbr.rel (%p253) target = $region36
        $region35: #{tpu_custom_call.1} parent=31 // pred_region
          %s256 = sand.u32 %s34, 1
          %s257 = scalar_lea.sflag [#allocation3], %s256
          %s258 = sand.u32 %s34, 1
          %s259 = smul.addr %s258, 4
          %s260 = scalar_lea.vmem [#allocation2], %s259
          %s262 = ssub.s32 64, 64
          %263 = vsyncadd %s257, %s262
          %s264 = smul.addr %s24, 64
          %s265 = scalar_lea.hbm %s0, %s264
          %s267 = sshll.u32 %s260, 4
          %s268 = int_to_ptr.vmem [resolvable:$true] %s267
          %270 = dma.hbm_to_vmem [thread:$0]  %s265, 64, %s268, %s257
        $region36: #{tpu_custom_call.1} parent=31 // pred_fallthru
          _
      $region32: #{tpu_custom_call.1} parent=5 // pred_fallthru
        _
      %p271 = scmp.le.s32.totalorder 1, %s24
      %p272 = scmp.lt.s32.totalorder %s24, 3
      %p273 = pnand %p271, %p272
      %p274 = pneg %p273
      // Predicated region
      $region37: #{tpu_custom_call.1} parent=5 // pred_check
        _
      $region38: #{tpu_custom_call.1} parent=5 // pred_check_branch
        %276 = sbr.rel (%p273) target = $region40
      $region39: #{tpu_custom_call.1} parent=5 // pred_region
        %s277 = ssub.s32 %s24, 1
        %s278 = sand.u32 %s37, 1
        %s279 = scalar_lea.sflag [#allocation3], %s278
        %s280 = sand.u32 %s37, 1
        %s281 = smul.addr %s280, 4
        %s282 = scalar_lea.vmem [#allocation2], %s281
        // Predicated region
        $region41: #{tpu_custom_call.1} parent=39 // pred_check
          %p283 = pneg %p50
        $region42: #{tpu_custom_call.1} parent=39 // pred_check_branch
          %285 = sbr.rel (%p283) target = $region44
        $region43: #{tpu_custom_call.1} parent=39 // pred_region
          %286 = dma.done %s279, 64
        $region44: #{tpu_custom_call.1} parent=39 // pred_fallthru
          _
        // Predicated region
        $region45: #{tpu_custom_call.1} parent=39 // pred_check
          %p287 = pneg %p71
        $region46: #{tpu_custom_call.1} parent=39 // pred_check_branch
          %289 = sbr.rel (%p287) target = $region48
        $region47: #{tpu_custom_call.1} parent=39 // pred_region
          %290 = dma.done [#allocation6], 256
        $region48: #{tpu_custom_call.1} parent=39 // pred_fallthru
          _
        // Predicated region
        $region49: #{tpu_custom_call.1} parent=39 // pred_check
          %p291 = pneg %p92
        $region50: #{tpu_custom_call.1} parent=39 // pred_check_branch
          %293 = sbr.rel (%p291) target = $region52
        $region51: #{tpu_custom_call.1} parent=39 // pred_region
          %294 = dma.done [#allocation6], 16
        $region52: #{tpu_custom_call.1} parent=39 // pred_fallthru
          _
        // Predicated region
        $region53: #{tpu_custom_call.1} parent=39 // pred_check
          %p295 = pneg %p113
        $region54: #{tpu_custom_call.1} parent=39 // pred_check_branch
          %297 = sbr.rel (%p295) target = $region56
        $region55: #{tpu_custom_call.1} parent=39 // pred_region
          %298 = dma.done [#allocation9], 256
        $region56: #{tpu_custom_call.1} parent=39 // pred_fallthru
          _
        // Predicated region
        $region57: #{tpu_custom_call.1} parent=39 // pred_check
          %p299 = pneg %p134
        $region58: #{tpu_custom_call.1} parent=39 // pred_check_branch
          %301 = sbr.rel (%p299) target = $region60
        $region59: #{tpu_custom_call.1} parent=39 // pred_region
          %302 = dma.done [#allocation9], 16
        $region60: #{tpu_custom_call.1} parent=39 // pred_fallthru
          _
        %s303 = sand.u32 %s37, 1
        %s304 = scalar_lea.sflag [#allocation3], %s303
        %s305 = sand.u32 %s37, 1
        %s306 = smul.addr %s305, 4
        %s307 = scalar_lea.vmem [#allocation2], %s306
        %p308 = pneg %p50
        %p309 = pneg %p47
        %p310 = pneg %p71
        %p311 = pneg %p68
        %p312 = pneg %p92
        %p313 = pneg %p89
        %p314 = pneg %p113
        %p315 = pneg %p110
        %p316 = pneg %p134
        %p317 = pneg %p131
        %p318 = pneg %p160
        %p319 = pneg %p157
        %s320 = sand.u32 %s147, 1
        %s321 = scalar_lea.sflag [#allocation4], %s320
        %s322 = sand.u32 %s147, 1
        %s323 = smul.addr %s322, 8
        %s324 = scalar_lea.vmem [#allocation11], %s323
        %p325 = pneg %p186
        %p326 = pneg %p183
        %s327 = sand.u32 %s173, 1
        %s328 = scalar_lea.sflag [#allocation13], %s327
        %s329 = sand.u32 %s173, 1
        %s330 = smul.addr %s329, 8
        %s331 = scalar_lea.vmem [#allocation12], %s330
        %v333 = vld [vmem:[%s282] sm:$0xf]
        %v334 = vld [vmem:[#allocation5] sm:$0xf]
        %v335 = vld [vmem:[#allocation5 + $0x4] sm:$0xf]
        %v336 = vld [vmem:[#allocation5 + $0x8] sm:$0xf]
        %v337 = vld [vmem:[#allocation5 + $0xc] sm:$0xf]
        %v338 = vld [vmem:[#allocation7] sm:$0x1]
        %v340 = vlaneseq
        %v341 = vshrl.u32 %v340, 7
        %v342 = vsub.s32 0, %v341
        %v343 = vrot.slane %v338, %v342
        %v349 = vunpack.c.l.b16 %v334
        %v350 = vunpack.c.l.b16 %v335
        %v351 = vunpack.c.l.b16 %v336
        %v352 = vunpack.c.l.b16 %v337
        %v353 = vpack.c.b16 %v350, %v349
        %v354 = vpack.c.b16 %v352, %v351
        %vm357 = vcmask 261120
        %v359 = vsel %vm357, %v333, 0
        %361 = vmatprep.subr.bf16.mxu0 0
        %362 = vmatpush1.bf16.msra.mxu0 %v353
        %363 = vmatprep.subr.bf16.mxu0 0
        %364 = vmatpush1.bf16.msra.mxu0 %v354
        %365 = vmatprep.subr.bf16.mxu0 0
        %366 = vmatpush1.bf16.msra.mxu0 0
        %367 = vmatprep.subr.bf16.mxu0 0
        %368 = vmatpush1.bf16.msra.mxu0 0
        %369 = vmatprep.subr.bf16.mxu0 0
        %370 = vmatpush1.bf16.msra.mxu0 0
        %371 = vmatprep.subr.bf16.mxu0 0
        %372 = vmatpush1.bf16.msra.mxu0 0
        %373 = vmatprep.subr.bf16.mxu0 0
        %374 = vmatpush1.bf16.msra.mxu0 0
        %375 = vmatprep.subr.bf16.mxu0 0
        %376 = vmatpush1.bf16.msra.mxu0 0
        %377 = vmatprep.subr.bf16.mxu0 0
        %378 = vmatpush1.bf16.msra.mxu0 0
        %379 = vmatprep.subr.bf16.mxu0 0
        %380 = vmatpush1.bf16.msra.mxu0 0
        %381 = vmatprep.subr.bf16.mxu0 0
        %382 = vmatpush1.bf16.msra.mxu0 0
        %383 = vmatprep.subr.bf16.mxu0 0
        %384 = vmatpush1.bf16.msra.mxu0 0
        %385 = vmatprep.subr.bf16.mxu0 0
        %386 = vmatpush1.bf16.msra.mxu0 0
        %387 = vmatprep.subr.bf16.mxu0 0
        %388 = vmatpush1.bf16.msra.mxu0 0
        %389 = vmatprep.subr.bf16.mxu0 0
        %390 = vmatpush1.bf16.msra.mxu0 0
        %391 = vmatprep.subr.bf16.mxu0 0
        %392 = vmatpush1.bf16.msra.mxu0 0
        %393 = vmatprep.mubr.bf16.mxu0 0
        %394 = vmatmul.mubr.bf16.gmra.mrb[0].mxu0 %v359
        %v395 = vpop.f32.mrb[0].mxu0
        %v396 = vadd.f32 %v343, %v395
        %v397 = vpop.f32.mrb[0].mxu0
        %v398 = vpop.f32.mrb[0].mxu0
        %v399 = vpop.f32.mrb[0].mxu0
        %400 = vdwg.mxu0
        %402 = vrot.lane.b32.xlu0 %v396, 120
        %v403 = vpop.permute.xlu0 %402
        %405 = vrot.lane.b32.xlu0 %v396, 112
        %v406 = vpop.permute.xlu0 %405
        %408 = vrot.lane.b32.xlu0 %v396, 104
        %v409 = vpop.permute.xlu0 %408
        %v411 = vcombine.low %v396, %v406
        %v412 = vcombine.high %v396, %v406
        %v414 = vunpack.c.l.s4 1983009808
        %v415 = vunpack.c.0.s8 %v414
        %v416 = vlaneseq
        %v417 = vshrl.u32 %v416, 7
        %v418 = vsub.s32 %v415, %v417
        %v419 = vrot.slane %v411, %v418
        %v421 = vunpack.c.l.s4 1983009808
        %v422 = vunpack.c.0.s8 %v421
        %v423 = vlaneseq
        %v424 = vshrl.u32 %v423, 7
        %v425 = vsub.s32 %v422, %v424
        %v426 = vrot.slane %v412, %v425
        %v427 = vcombine.low %v403, %v409
        %v428 = vcombine.high %v403, %v409
        %v430 = vunpack.c.l.s4 1983009808
        %v431 = vunpack.c.0.s8 %v430
        %v432 = vlaneseq
        %v433 = vshrl.u32 %v432, 7
        %v434 = vsub.s32 %v431, %v433
        %v435 = vrot.slane %v427, %v434
        %v437 = vunpack.c.l.s4 1983009808
        %v438 = vunpack.c.0.s8 %v437
        %v439 = vlaneseq
        %v440 = vshrl.u32 %v439, 7
        %v441 = vsub.s32 %v438, %v440
        %v442 = vrot.slane %v428, %v441
        %v443 = vcombine.low %v419, %v435
        %v444 = vcombine.high %v419, %v435
        %v446 = vunpack.c.l.s4 1934713408
        %v447 = vunpack.c.0.s8 %v446
        %v448 = vlaneseq
        %v449 = vshrl.u32 %v448, 7
        %v450 = vsub.s32 %v447, %v449
        %v451 = vrot.slane %v443, %v450
        %v453 = vunpack.c.l.s4 1934713408
        %v454 = vunpack.c.0.s8 %v453
        %v455 = vlaneseq
        %v456 = vshrl.u32 %v455, 7
        %v457 = vsub.s32 %v454, %v456
        %v458 = vrot.slane %v444, %v457
        %v459 = vcombine.low %v426, %v442
        %v460 = vcombine.high %v426, %v442
        %v462 = vunpack.c.l.s4 1934713408
        %v463 = vunpack.c.0.s8 %v462
        %v464 = vlaneseq
        %v465 = vshrl.u32 %v464, 7
        %v466 = vsub.s32 %v463, %v465
        %v467 = vrot.slane %v459, %v466
        %v469 = vunpack.c.l.s4 1934713408
        %v470 = vunpack.c.0.s8 %v469
        %v471 = vlaneseq
        %v472 = vshrl.u32 %v471, 7
        %v473 = vsub.s32 %v470, %v472
        %v474 = vrot.slane %v460, %v473
        %v475 = vcombine.high %v451, 0.0
        %v476 = vcombine.high %v458, 0.0
        %v477 = vcombine.high %v467, 0.0
        %v478 = vcombine.high %v474, 0.0
        %v479 = vcombine.low %v451, %v458
        %v481 = vunpack.c.l.s4 1983009808
        %v482 = vunpack.c.0.s8 %v481
        %v483 = vlaneseq
        %v484 = vshrl.u32 %v483, 7
        %v485 = vsub.s32 %v482, %v484
        %v486 = vrot.slane %v479, %v485
        %v487 = vcombine.low %v475, %v476
        %v489 = vunpack.c.l.s4 1983009808
        %v490 = vunpack.c.0.s8 %v489
        %v491 = vlaneseq
        %v492 = vshrl.u32 %v491, 7
        %v493 = vsub.s32 %v490, %v492
        %v494 = vrot.slane %v487, %v493
        %v495 = vcombine.low %v467, %v474
        %v497 = vunpack.c.l.s4 1983009808
        %v498 = vunpack.c.0.s8 %v497
        %v499 = vlaneseq
        %v500 = vshrl.u32 %v499, 7
        %v501 = vsub.s32 %v498, %v500
        %v502 = vrot.slane %v495, %v501
        %v503 = vcombine.low %v477, %v478
        %v505 = vunpack.c.l.s4 1983009808
        %v506 = vunpack.c.0.s8 %v505
        %v507 = vlaneseq
        %v508 = vshrl.u32 %v507, 7
        %v509 = vsub.s32 %v506, %v508
        %v510 = vrot.slane %v503, %v509
        %v511 = vcombine.low %v486, %v494
        %v512 = vcombine.high %v486, %v494
        %v514 = vunpack.c.l.s4 1934713408
        %v515 = vunpack.c.0.s8 %v514
        %v516 = vlaneseq
        %v517 = vshrl.u32 %v516, 7
        %v518 = vsub.s32 %v515, %v517
        %v519 = vrot.slane %v511, %v518
        %v521 = vunpack.c.l.s4 1934713408
        %v522 = vunpack.c.0.s8 %v521
        %v523 = vlaneseq
        %v524 = vshrl.u32 %v523, 7
        %v525 = vsub.s32 %v522, %v524
        %v526 = vrot.slane %v512, %v525
        %v527 = vcombine.low %v502, %v510
        %v528 = vcombine.high %v502, %v510
        %v530 = vunpack.c.l.s4 1934713408
        %v531 = vunpack.c.0.s8 %v530
        %v532 = vlaneseq
        %v533 = vshrl.u32 %v532, 7
        %v534 = vsub.s32 %v531, %v533
        %v535 = vrot.slane %v527, %v534
        %v537 = vunpack.c.l.s4 1934713408
        %v538 = vunpack.c.0.s8 %v537
        %v539 = vlaneseq
        %v540 = vshrl.u32 %v539, 7
        %v541 = vsub.s32 %v538, %v540
        %v542 = vrot.slane %v528, %v541
        %v543 = vcombine.low %v519, %v535
        %v544 = vcombine.high %v519, %v535
        %v545 = vcombine.low %v526, %v542
        %v546 = vcombine.high %v526, %v542
        %v547 = vpack.c.bf16 %v543, %v543
        %v548 = vpack.c.bf16 %v544, %v544
        %v549 = vpack.c.bf16 %v545, %v545
        %v550 = vpack.c.bf16 %v546, %v546
        %551 = vrot.lane.b32.xlu0 %v396, 96
        %v552 = vpop.permute.xlu0 %551
        %553 = vrot.lane.b32.xlu0 %v403, 96
        %v554 = vpop.permute.xlu0 %553
        %555 = vrot.lane.b32.xlu0 %v406, 96
        %v556 = vpop.permute.xlu0 %555
        %557 = vrot.lane.b32.xlu0 %v409, 96
        %v558 = vpop.permute.xlu0 %557
        %v563 = vcombine.low %v552, %v556
        %v564 = vcombine.high %v552, %v556
        %v566 = vunpack.c.l.s4 1983009808
        %v567 = vunpack.c.0.s8 %v566
        %v568 = vlaneseq
        %v569 = vshrl.u32 %v568, 7
        %v570 = vsub.s32 %v567, %v569
        %v571 = vrot.slane %v563, %v570
        %v573 = vunpack.c.l.s4 1983009808
        %v574 = vunpack.c.0.s8 %v573
        %v575 = vlaneseq
        %v576 = vshrl.u32 %v575, 7
        %v577 = vsub.s32 %v574, %v576
        %v578 = vrot.slane %v564, %v577
        %v579 = vcombine.low %v554, %v558
        %v580 = vcombine.high %v554, %v558
        %v582 = vunpack.c.l.s4 1983009808
        %v583 = vunpack.c.0.s8 %v582
        %v584 = vlaneseq
        %v585 = vshrl.u32 %v584, 7
        %v586 = vsub.s32 %v583, %v585
        %v587 = vrot.slane %v579, %v586
        %v589 = vunpack.c.l.s4 1983009808
        %v590 = vunpack.c.0.s8 %v589
        %v591 = vlaneseq
        %v592 = vshrl.u32 %v591, 7
        %v593 = vsub.s32 %v590, %v592
        %v594 = vrot.slane %v580, %v593
        %v595 = vcombine.low %v571, %v587
        %v596 = vcombine.high %v571, %v587
        %v598 = vunpack.c.l.s4 1934713408
        %v599 = vunpack.c.0.s8 %v598
        %v600 = vlaneseq
        %v601 = vshrl.u32 %v600, 7
        %v602 = vsub.s32 %v599, %v601
        %v603 = vrot.slane %v595, %v602
        %v605 = vunpack.c.l.s4 1934713408
        %v606 = vunpack.c.0.s8 %v605
        %v607 = vlaneseq
        %v608 = vshrl.u32 %v607, 7
        %v609 = vsub.s32 %v606, %v608
        %v610 = vrot.slane %v596, %v609
        %v611 = vcombine.low %v578, %v594
        %v612 = vcombine.high %v578, %v594
        %v614 = vunpack.c.l.s4 1934713408
        %v615 = vunpack.c.0.s8 %v614
        %v616 = vlaneseq
        %v617 = vshrl.u32 %v616, 7
        %v618 = vsub.s32 %v615, %v617
        %v619 = vrot.slane %v611, %v618
        %v621 = vunpack.c.l.s4 1934713408
        %v622 = vunpack.c.0.s8 %v621
        %v623 = vlaneseq
        %v624 = vshrl.u32 %v623, 7
        %v625 = vsub.s32 %v622, %v624
        %v626 = vrot.slane %v612, %v625
        %v627 = vcombine.high %v603, 0.0
        %v628 = vcombine.high %v610, 0.0
        %v629 = vcombine.high %v619, 0.0
        %v630 = vcombine.high %v626, 0.0
        %v631 = vcombine.low %v603, %v610
        %v633 = vunpack.c.l.s4 1983009808
        %v634 = vunpack.c.0.s8 %v633
        %v635 = vlaneseq
        %v636 = vshrl.u32 %v635, 7
        %v637 = vsub.s32 %v634, %v636
        %v638 = vrot.slane %v631, %v637
        %v639 = vcombine.low %v627, %v628
        %v641 = vunpack.c.l.s4 1983009808
        %v642 = vunpack.c.0.s8 %v641
        %v643 = vlaneseq
        %v644 = vshrl.u32 %v643, 7
        %v645 = vsub.s32 %v642, %v644
        %v646 = vrot.slane %v639, %v645
        %v647 = vcombine.low %v619, %v626
        %v649 = vunpack.c.l.s4 1983009808
        %v650 = vunpack.c.0.s8 %v649
        %v651 = vlaneseq
        %v652 = vshrl.u32 %v651, 7
        %v653 = vsub.s32 %v650, %v652
        %v654 = vrot.slane %v647, %v653
        %v655 = vcombine.low %v629, %v630
        %v657 = vunpack.c.l.s4 1983009808
        %v658 = vunpack.c.0.s8 %v657
        %v659 = vlaneseq
        %v660 = vshrl.u32 %v659, 7
        %v661 = vsub.s32 %v658, %v660
        %v662 = vrot.slane %v655, %v661
        %v663 = vcombine.low %v638, %v646
        %v664 = vcombine.high %v638, %v646
        %v666 = vunpack.c.l.s4 1934713408
        %v667 = vunpack.c.0.s8 %v666
        %v668 = vlaneseq
        %v669 = vshrl.u32 %v668, 7
        %v670 = vsub.s32 %v667, %v669
        %v671 = vrot.slane %v663, %v670
        %v673 = vunpack.c.l.s4 1934713408
        %v674 = vunpack.c.0.s8 %v673
        %v675 = vlaneseq
        %v676 = vshrl.u32 %v675, 7
        %v677 = vsub.s32 %v674, %v676
        %v678 = vrot.slane %v664, %v677
        %v679 = vcombine.low %v654, %v662
        %v680 = vcombine.high %v654, %v662
        %v682 = vunpack.c.l.s4 1934713408
        %v683 = vunpack.c.0.s8 %v682
        %v684 = vlaneseq
        %v685 = vshrl.u32 %v684, 7
        %v686 = vsub.s32 %v683, %v685
        %v687 = vrot.slane %v679, %v686
        %v689 = vunpack.c.l.s4 1934713408
        %v690 = vunpack.c.0.s8 %v689
        %v691 = vlaneseq
        %v692 = vshrl.u32 %v691, 7
        %v693 = vsub.s32 %v690, %v692
        %v694 = vrot.slane %v680, %v693
        %v695 = vcombine.low %v671, %v687
        %v696 = vcombine.high %v671, %v687
        %v697 = vcombine.low %v678, %v694
        %v698 = vcombine.high %v678, %v694
        %v699 = vpack.c.bf16 %v695, %v695
        %v700 = vpack.c.bf16 %v696, %v696
        %v701 = vpack.c.bf16 %v697, %v697
        %v702 = vpack.c.bf16 %v698, %v698
        %703 = vrot.lane.b32.xlu0 %v396, 64
        %v704 = vpop.permute.xlu0 %703
        %705 = vrot.lane.b32.xlu0 %v403, 64
        %v706 = vpop.permute.xlu0 %705
        %707 = vrot.lane.b32.xlu0 %v406, 64
        %v708 = vpop.permute.xlu0 %707
        %709 = vrot.lane.b32.xlu0 %v409, 64
        %v710 = vpop.permute.xlu0 %709
        %v715 = vcombine.low %v704, %v708
        %v716 = vcombine.high %v704, %v708
        %v718 = vunpack.c.l.s4 1983009808
        %v719 = vunpack.c.0.s8 %v718
        %v720 = vlaneseq
        %v721 = vshrl.u32 %v720, 7
        %v722 = vsub.s32 %v719, %v721
        %v723 = vrot.slane %v715, %v722
        %v725 = vunpack.c.l.s4 1983009808
        %v726 = vunpack.c.0.s8 %v725
        %v727 = vlaneseq
        %v728 = vshrl.u32 %v727, 7
        %v729 = vsub.s32 %v726, %v728
        %v730 = vrot.slane %v716, %v729
        %v731 = vcombine.low %v706, %v710
        %v732 = vcombine.high %v706, %v710
        %v734 = vunpack.c.l.s4 1983009808
        %v735 = vunpack.c.0.s8 %v734
        %v736 = vlaneseq
        %v737 = vshrl.u32 %v736, 7
        %v738 = vsub.s32 %v735, %v737
        %v739 = vrot.slane %v731, %v738
        %v741 = vunpack.c.l.s4 1983009808
        %v742 = vunpack.c.0.s8 %v741
        %v743 = vlaneseq
        %v744 = vshrl.u32 %v743, 7
        %v745 = vsub.s32 %v742, %v744
        %v746 = vrot.slane %v732, %v745
        %v747 = vcombine.low %v723, %v739
        %v748 = vcombine.high %v723, %v739
        %v750 = vunpack.c.l.s4 1934713408
        %v751 = vunpack.c.0.s8 %v750
        %v752 = vlaneseq
        %v753 = vshrl.u32 %v752, 7
        %v754 = vsub.s32 %v751, %v753
        %v755 = vrot.slane %v747, %v754
        %v757 = vunpack.c.l.s4 1934713408
        %v758 = vunpack.c.0.s8 %v757
        %v759 = vlaneseq
        %v760 = vshrl.u32 %v759, 7
        %v761 = vsub.s32 %v758, %v760
        %v762 = vrot.slane %v748, %v761
        %v763 = vcombine.low %v730, %v746
        %v764 = vcombine.high %v730, %v746
        %v766 = vunpack.c.l.s4 1934713408
        %v767 = vunpack.c.0.s8 %v766
        %v768 = vlaneseq
        %v769 = vshrl.u32 %v768, 7
        %v770 = vsub.s32 %v767, %v769
        %v771 = vrot.slane %v763, %v770
        %v773 = vunpack.c.l.s4 1934713408
        %v774 = vunpack.c.0.s8 %v773
        %v775 = vlaneseq
        %v776 = vshrl.u32 %v775, 7
        %v777 = vsub.s32 %v774, %v776
        %v778 = vrot.slane %v764, %v777
        %v779 = vcombine.high %v755, 0.0
        %v780 = vcombine.high %v762, 0.0
        %v781 = vcombine.high %v771, 0.0
        %v782 = vcombine.high %v778, 0.0
        %v783 = vcombine.low %v755, %v762
        %v785 = vunpack.c.l.s4 1983009808
        %v786 = vunpack.c.0.s8 %v785
        %v787 = vlaneseq
        %v788 = vshrl.u32 %v787, 7
        %v789 = vsub.s32 %v786, %v788
        %v790 = vrot.slane %v783, %v789
        %v791 = vcombine.low %v779, %v780
        %v793 = vunpack.c.l.s4 1983009808
        %v794 = vunpack.c.0.s8 %v793
        %v795 = vlaneseq
        %v796 = vshrl.u32 %v795, 7
        %v797 = vsub.s32 %v794, %v796
        %v798 = vrot.slane %v791, %v797
        %v799 = vcombine.low %v771, %v778
        %v801 = vunpack.c.l.s4 1983009808
        %v802 = vunpack.c.0.s8 %v801
        %v803 = vlaneseq
        %v804 = vshrl.u32 %v803, 7
        %v805 = vsub.s32 %v802, %v804
        %v806 = vrot.slane %v799, %v805
        %v807 = vcombine.low %v781, %v782
        %v809 = vunpack.c.l.s4 1983009808
        %v810 = vunpack.c.0.s8 %v809
        %v811 = vlaneseq
        %v812 = vshrl.u32 %v811, 7
        %v813 = vsub.s32 %v810, %v812
        %v814 = vrot.slane %v807, %v813
        %v815 = vcombine.low %v790, %v798
        %v816 = vcombine.high %v790, %v798
        %v818 = vunpack.c.l.s4 1934713408
        %v819 = vunpack.c.0.s8 %v818
        %v820 = vlaneseq
        %v821 = vshrl.u32 %v820, 7
        %v822 = vsub.s32 %v819, %v821
        %v823 = vrot.slane %v815, %v822
        %v825 = vunpack.c.l.s4 1934713408
        %v826 = vunpack.c.0.s8 %v825
        %v827 = vlaneseq
        %v828 = vshrl.u32 %v827, 7
        %v829 = vsub.s32 %v826, %v828
        %v830 = vrot.slane %v816, %v829
        %v831 = vcombine.low %v806, %v814
        %v832 = vcombine.high %v806, %v814
        %v834 = vunpack.c.l.s4 1934713408
        %v835 = vunpack.c.0.s8 %v834
        %v836 = vlaneseq
        %v837 = vshrl.u32 %v836, 7
        %v838 = vsub.s32 %v835, %v837
        %v839 = vrot.slane %v831, %v838
        %v841 = vunpack.c.l.s4 1934713408
        %v842 = vunpack.c.0.s8 %v841
        %v843 = vlaneseq
        %v844 = vshrl.u32 %v843, 7
        %v845 = vsub.s32 %v842, %v844
        %v846 = vrot.slane %v832, %v845
        %v847 = vcombine.low %v823, %v839
        %v848 = vcombine.high %v823, %v839
        %v849 = vcombine.low %v830, %v846
        %v850 = vcombine.high %v830, %v846
        %v851 = vpack.c.bf16 %v847, %v847
        %v852 = vpack.c.bf16 %v848, %v848
        %v853 = vpack.c.bf16 %v849, %v849
        %v854 = vpack.c.bf16 %v850, %v850
        %vm855 = vcmask 64512
        %v857 = vsel %vm855, %v547, 0
        %v860 = vsel %vm855, %v699, 0
        %862 = vmatprep.subr.bf16.mxu0 0
        %863 = vmatpush1.bf16.xpose.msra.mxu0 %v860
        %864 = vmatprep.subr.bf16.mxu0 0
        %865 = vmatpush1.bf16.xpose.msra.mxu0 0
        %866 = vmatprep.subr.bf16.mxu0 0
        %867 = vmatpush1.bf16.xpose.msra.mxu0 0
        %868 = vmatprep.subr.bf16.mxu0 0
        %869 = vmatpush1.bf16.xpose.msra.mxu0 0
        %870 = vmatprep.subr.bf16.mxu0 0
        %871 = vmatpush1.bf16.xpose.msra.mxu0 0
        %872 = vmatprep.subr.bf16.mxu0 0
        %873 = vmatpush1.bf16.xpose.msra.mxu0 0
        %874 = vmatprep.subr.bf16.mxu0 0
        %875 = vmatpush1.bf16.xpose.msra.mxu0 0
        %876 = vmatprep.subr.bf16.mxu0 0
        %877 = vmatpush1.bf16.xpose.msra.mxu0 0
        %878 = vmatprep.subr.bf16.mxu0 0
        %879 = vmatpush1.bf16.xpose.msra.mxu0 0
        %880 = vmatprep.subr.bf16.mxu0 0
        %881 = vmatpush1.bf16.xpose.msra.mxu0 0
        %882 = vmatprep.subr.bf16.mxu0 0
        %883 = vmatpush1.bf16.xpose.msra.mxu0 0
        %884 = vmatprep.subr.bf16.mxu0 0
        %885 = vmatpush1.bf16.xpose.msra.mxu0 0
        %886 = vmatprep.subr.bf16.mxu0 0
        %887 = vmatpush1.bf16.xpose.msra.mxu0 0
        %888 = vmatprep.subr.bf16.mxu0 0
        %889 = vmatpush1.bf16.xpose.msra.mxu0 0
        %890 = vmatprep.subr.bf16.mxu0 0
        %891 = vmatpush1.bf16.xpose.msra.mxu0 0
        %892 = vmatprep.subr.bf16.mxu0 0
        %893 = vmatpush1.bf16.xpose.msra.mxu0 0
        %894 = vmatprep.mubr.bf16.mxu0 0
        %895 = vmatmul.mubr.bf16.gmra.mrb[0].mxu0 %v857
        %v896 = vpop.f32.mrb[0].mxu0
        %v897 = vadd.f32 0.0, %v896
        %v898 = vpop.f32.mrb[0].mxu0
        %v899 = vpop.f32.mrb[0].mxu0
        %v900 = vpop.f32.mrb[0].mxu0
        %901 = vdwg.mxu0
        %v903 = vsel %vm855, %v548, 0
        %v906 = vsel %vm855, %v700, 0
        %908 = vmatprep.subr.bf16.mxu0 0
        %909 = vmatpush1.bf16.xpose.msra.mxu0 %v906
        %910 = vmatprep.subr.bf16.mxu0 0
        %911 = vmatpush1.bf16.xpose.msra.mxu0 0
        %912 = vmatprep.subr.bf16.mxu0 0
        %913 = vmatpush1.bf16.xpose.msra.mxu0 0
        %914 = vmatprep.subr.bf16.mxu0 0
        %915 = vmatpush1.bf16.xpose.msra.mxu0 0
        %916 = vmatprep.subr.bf16.mxu0 0
        %917 = vmatpush1.bf16.xpose.msra.mxu0 0
        %918 = vmatprep.subr.bf16.mxu0 0
        %919 = vmatpush1.bf16.xpose.msra.mxu0 0
        %920 = vmatprep.subr.bf16.mxu0 0
        %921 = vmatpush1.bf16.xpose.msra.mxu0 0
        %922 = vmatprep.subr.bf16.mxu0 0
        %923 = vmatpush1.bf16.xpose.msra.mxu0 0
        %924 = vmatprep.subr.bf16.mxu0 0
        %925 = vmatpush1.bf16.xpose.msra.mxu0 0
        %926 = vmatprep.subr.bf16.mxu0 0
        %927 = vmatpush1.bf16.xpose.msra.mxu0 0
        %928 = vmatprep.subr.bf16.mxu0 0
        %929 = vmatpush1.bf16.xpose.msra.mxu0 0
        %930 = vmatprep.subr.bf16.mxu0 0
        %931 = vmatpush1.bf16.xpose.msra.mxu0 0
        %932 = vmatprep.subr.bf16.mxu0 0
        %933 = vmatpush1.bf16.xpose.msra.mxu0 0
        %934 = vmatprep.subr.bf16.mxu0 0
        %935 = vmatpush1.bf16.xpose.msra.mxu0 0
        %936 = vmatprep.subr.bf16.mxu0 0
        %937 = vmatpush1.bf16.xpose.msra.mxu0 0
        %938 = vmatprep.subr.bf16.mxu0 0
        %939 = vmatpush1.bf16.xpose.msra.mxu0 0
        %940 = vmatprep.mubr.bf16.mxu0 0
        %941 = vmatmul.mubr.bf16.gmra.mrb[0].mxu0 %v903
        %v942 = vpop.f32.mrb[0].mxu0
        %v943 = vadd.f32 0.0, %v942
        %v944 = vpop.f32.mrb[0].mxu0
        %v945 = vpop.f32.mrb[0].mxu0
        %v946 = vpop.f32.mrb[0].mxu0
        %947 = vdwg.mxu0
        %v949 = vsel %vm855, %v549, 0
        %v952 = vsel %vm855, %v701, 0
        %954 = vmatprep.subr.bf16.mxu0 0
        %955 = vmatpush1.bf16.xpose.msra.mxu0 %v952
        %956 = vmatprep.subr.bf16.mxu0 0
        %957 = vmatpush1.bf16.xpose.msra.mxu0 0
        %958 = vmatprep.subr.bf16.mxu0 0
        %959 = vmatpush1.bf16.xpose.msra.mxu0 0
        %960 = vmatprep.subr.bf16.mxu0 0
        %961 = vmatpush1.bf16.xpose.msra.mxu0 0
        %962 = vmatprep.subr.bf16.mxu0 0
        %963 = vmatpush1.bf16.xpose.msra.mxu0 0
        %964 = vmatprep.subr.bf16.mxu0 0
        %965 = vmatpush1.bf16.xpose.msra.mxu0 0
        %966 = vmatprep.subr.bf16.mxu0 0
        %967 = vmatpush1.bf16.xpose.msra.mxu0 0
        %968 = vmatprep.subr.bf16.mxu0 0
        %969 = vmatpush1.bf16.xpose.msra.mxu0 0
        %970 = vmatprep.subr.bf16.mxu0 0
        %971 = vmatpush1.bf16.xpose.msra.mxu0 0
        %972 = vmatprep.subr.bf16.mxu0 0
        %973 = vmatpush1.bf16.xpose.msra.mxu0 0
        %974 = vmatprep.subr.bf16.mxu0 0
        %975 = vmatpush1.bf16.xpose.msra.mxu0 0
        %976 = vmatprep.subr.bf16.mxu0 0
        %977 = vmatpush1.bf16.xpose.msra.mxu0 0
        %978 = vmatprep.subr.bf16.mxu0 0
        %979 = vmatpush1.bf16.xpose.msra.mxu0 0
        %980 = vmatprep.subr.bf16.mxu0 0
        %981 = vmatpush1.bf16.xpose.msra.mxu0 0
        %982 = vmatprep.subr.bf16.mxu0 0
        %983 = vmatpush1.bf16.xpose.msra.mxu0 0
        %984 = vmatprep.subr.bf16.mxu0 0
        %985 = vmatpush1.bf16.xpose.msra.mxu0 0
        %986 = vmatprep.mubr.bf16.mxu0 0
        %987 = vmatmul.mubr.bf16.gmra.mrb[0].mxu0 %v949
        %v988 = vpop.f32.mrb[0].mxu0
        %v989 = vadd.f32 0.0, %v988
        %v990 = vpop.f32.mrb[0].mxu0
        %v991 = vpop.f32.mrb[0].mxu0
        %v992 = vpop.f32.mrb[0].mxu0
        %993 = vdwg.mxu0
        %v995 = vsel %vm855, %v550, 0
        %v998 = vsel %vm855, %v702, 0
        %1000 = vmatprep.subr.bf16.mxu0 0
        %1001 = vmatpush1.bf16.xpose.msra.mxu0 %v998
        %1002 = vmatprep.subr.bf16.mxu0 0
        %1003 = vmatpush1.bf16.xpose.msra.mxu0 0
        %1004 = vmatprep.subr.bf16.mxu0 0
        %1005 = vmatpush1.bf16.xpose.msra.mxu0 0
        %1006 = vmatprep.subr.bf16.mxu0 0
        %1007 = vmatpush1.bf16.xpose.msra.mxu0 0
        %1008 = vmatprep.subr.bf16.mxu0 0
        %1009 = vmatpush1.bf16.xpose.msra.mxu0 0
        %1010 = vmatprep.subr.bf16.mxu0 0
        %1011 = vmatpush1.bf16.xpose.msra.mxu0 0
        %1012 = vmatprep.subr.bf16.mxu0 0
        %1013 = vmatpush1.bf16.xpose.msra.mxu0 0
        %1014 = vmatprep.subr.bf16.mxu0 0
        %1015 = vmatpush1.bf16.xpose.msra.mxu0 0
        %1016 = vmatprep.subr.bf16.mxu0 0
        %1017 = vmatpush1.bf16.xpose.msra.mxu0 0
        %1018 = vmatprep.subr.bf16.mxu0 0
        %1019 = vmatpush1.bf16.xpose.msra.mxu0 0
        %1020 = vmatprep.subr.bf16.mxu0 0
        %1021 = vmatpush1.bf16.xpose.msra.mxu0 0
        %1022 = vmatprep.subr.bf16.mxu0 0
        %1023 = vmatpush1.bf16.xpose.msra.mxu0 0
        %1024 = vmatprep.subr.bf16.mxu0 0
        %1025 = vmatpush1.bf16.xpose.msra.mxu0 0
        %1026 = vmatprep.subr.bf16.mxu0 0
        %1027 = vmatpush1.bf16.xpose.msra.mxu0 0
        %1028 = vmatprep.subr.bf16.mxu0 0
        %1029 = vmatpush1.bf16.xpose.msra.mxu0 0
        %1030 = vmatprep.subr.bf16.mxu0 0
        %1031 = vmatpush1.bf16.xpose.msra.mxu0 0
        %1032 = vmatprep.mubr.bf16.mxu0 0
        %1033 = vmatmul.mubr.bf16.gmra.mrb[0].mxu0 %v995
        %v1034 = vpop.f32.mrb[0].mxu0
        %v1035 = vadd.f32 0.0, %v1034
        %v1036 = vpop.f32.mrb[0].mxu0
        %v1037 = vpop.f32.mrb[0].mxu0
        %v1038 = vpop.f32.mrb[0].mxu0
        %1039 = vdwg.mxu0
        %v1040 = vsel %vm855, %v897, -inf
        %1041 = vmax.xlane.f32.xlu0 %v1040
        %v1042 = vpop.xlane.xlu0 %1041
        %v1043 = vsel %vm855, %v943, -inf
        %1044 = vmax.xlane.f32.xlu0 %v1043
        %v1045 = vpop.xlane.xlu0 %1044
        %v1046 = vsel %vm855, %v989, -inf
        %1047 = vmax.xlane.f32.xlu0 %v1046
        %v1048 = vpop.xlane.xlu0 %1047
        %v1049 = vsel %vm855, %v1035, -inf
        %1050 = vmax.xlane.f32.xlu0 %v1049
        %v1051 = vpop.xlane.xlu0 %1050
        %v1052 = vsub.f32 %v897, %v1042
        %v1053 = vsub.f32 %v943, %v1045
        %v1054 = vsub.f32 %v989, %v1048
        %v1055 = vsub.f32 %v1035, %v1051
        %v1056 = vmul.f32 %v1052, 1.442695
        %v1057 = vpow.pop %v1056
        %v1058 = vmul.f32 %v1053, 1.442695
        %v1059 = vpow.pop %v1058
        %v1060 = vmul.f32 %v1054, 1.442695
        %v1061 = vpow.pop %v1060
        %v1062 = vmul.f32 %v1055, 1.442695
        %v1063 = vpow.pop %v1062
        %v1064 = vsel %vm855, %v1057, 0.0
        %1065 = vadd.xlane.f32.xlu0 %v1064
        %v1066 = vpop.xlane.xlu0 %1065
        %v1067 = vsel %vm855, %v1059, 0.0
        %1068 = vadd.xlane.f32.xlu0 %v1067
        %v1069 = vpop.xlane.xlu0 %1068
        %v1070 = vsel %vm855, %v1061, 0.0
        %1071 = vadd.xlane.f32.xlu0 %v1070
        %v1072 = vpop.xlane.xlu0 %1071
        %v1073 = vsel %vm855, %v1063, 0.0
        %1074 = vadd.xlane.f32.xlu0 %v1073
        %v1075 = vpop.xlane.xlu0 %1074
        %v1076 = vrcp.pop %v1066
        %v1077 = vmul.f32 %v1057, %v1076
        %v1078 = vrcp.pop %v1069
        %v1079 = vmul.f32 %v1059, %v1078
        %v1080 = vrcp.pop %v1072
        %v1081 = vmul.f32 %v1061, %v1080
        %v1082 = vrcp.pop %v1075
        %v1083 = vmul.f32 %v1063, %v1082
        %v1084 = vpack.c.bf16 %v1077, %v1077
        %v1085 = vpack.c.bf16 %v1079, %v1079
        %v1086 = vpack.c.bf16 %v1081, %v1081
        %v1087 = vpack.c.bf16 %v1083, %v1083
        %v1089 = vsel %vm855, %v1084, 0
        %vm1091 = vcmask 1043456
        %v1093 = vsel %vm1091, %v851, 0
        %1095 = vmatprep.subr.bf16.mxu0 0
        %1096 = vmatpush1.bf16.msra.mxu0 %v1093
        %1097 = vmatprep.subr.bf16.mxu0 0
        %1098 = vmatpush1.bf16.msra.mxu0 0
        %1099 = vmatprep.subr.bf16.mxu0 0
        %1100 = vmatpush1.bf16.msra.mxu0 0
        %1101 = vmatprep.subr.bf16.mxu0 0
        %1102 = vmatpush1.bf16.msra.mxu0 0
        %1103 = vmatprep.subr.bf16.mxu0 0
        %1104 = vmatpush1.bf16.msra.mxu0 0
        %1105 = vmatprep.subr.bf16.mxu0 0
        %1106 = vmatpush1.bf16.msra.mxu0 0
        %1107 = vmatprep.subr.bf16.mxu0 0
        %1108 = vmatpush1.bf16.msra.mxu0 0
        %1109 = vmatprep.subr.bf16.mxu0 0
        %1110 = vmatpush1.bf16.msra.mxu0 0
        %1111 = vmatprep.subr.bf16.mxu0 0
        %1112 = vmatpush1.bf16.msra.mxu0 0
        %1113 = vmatprep.subr.bf16.mxu0 0
        %1114 = vmatpush1.bf16.msra.mxu0 0
        %1115 = vmatprep.subr.bf16.mxu0 0
        %1116 = vmatpush1.bf16.msra.mxu0 0
        %1117 = vmatprep.subr.bf16.mxu0 0
        %1118 = vmatpush1.bf16.msra.mxu0 0
        %1119 = vmatprep.subr.bf16.mxu0 0
        %1120 = vmatpush1.bf16.msra.mxu0 0
        %1121 = vmatprep.subr.bf16.mxu0 0
        %1122 = vmatpush1.bf16.msra.mxu0 0
        %1123 = vmatprep.subr.bf16.mxu0 0
        %1124 = vmatpush1.bf16.msra.mxu0 0
        %1125 = vmatprep.subr.bf16.mxu0 0
        %1126 = vmatpush1.bf16.msra.mxu0 0
        %1127 = vmatprep.mubr.bf16.mxu0 0
        %1128 = vmatmul.mubr.bf16.gmra.mrb[0].mxu0 %v1089
        %v1129 = vpop.f32.mrb[0].mxu0
        %v1130 = vadd.f32 0.0, %v1129
        %v1131 = vpop.f32.mrb[0].mxu0
        %v1132 = vpop.f32.mrb[0].mxu0
        %v1133 = vpop.f32.mrb[0].mxu0
        %1134 = vdwg.mxu0
        %v1136 = vsel %vm855, %v1085, 0
        %v1139 = vsel %vm1091, %v852, 0
        %1141 = vmatprep.subr.bf16.mxu0 0
        %1142 = vmatpush1.bf16.msra.mxu0 %v1139
        %1143 = vmatprep.subr.bf16.mxu0 0
        %1144 = vmatpush1.bf16.msra.mxu0 0
        %1145 = vmatprep.subr.bf16.mxu0 0
        %1146 = vmatpush1.bf16.msra.mxu0 0
        %1147 = vmatprep.subr.bf16.mxu0 0
        %1148 = vmatpush1.bf16.msra.mxu0 0
        %1149 = vmatprep.subr.bf16.mxu0 0
        %1150 = vmatpush1.bf16.msra.mxu0 0
        %1151 = vmatprep.subr.bf16.mxu0 0
        %1152 = vmatpush1.bf16.msra.mxu0 0
        %1153 = vmatprep.subr.bf16.mxu0 0
        %1154 = vmatpush1.bf16.msra.mxu0 0
        %1155 = vmatprep.subr.bf16.mxu0 0
        %1156 = vmatpush1.bf16.msra.mxu0 0
        %1157 = vmatprep.subr.bf16.mxu0 0
        %1158 = vmatpush1.bf16.msra.mxu0 0
        %1159 = vmatprep.subr.bf16.mxu0 0
        %1160 = vmatpush1.bf16.msra.mxu0 0
        %1161 = vmatprep.subr.bf16.mxu0 0
        %1162 = vmatpush1.bf16.msra.mxu0 0
        %1163 = vmatprep.subr.bf16.mxu0 0
        %1164 = vmatpush1.bf16.msra.mxu0 0
        %1165 = vmatprep.subr.bf16.mxu0 0
        %1166 = vmatpush1.bf16.msra.mxu0 0
        %1167 = vmatprep.subr.bf16.mxu0 0
        %1168 = vmatpush1.bf16.msra.mxu0 0
        %1169 = vmatprep.subr.bf16.mxu0 0
        %1170 = vmatpush1.bf16.msra.mxu0 0
        %1171 = vmatprep.subr.bf16.mxu0 0
        %1172 = vmatpush1.bf16.msra.mxu0 0
        %1173 = vmatprep.mubr.bf16.mxu0 0
        %1174 = vmatmul.mubr.bf16.gmra.mrb[0].mxu0 %v1136
        %v1175 = vpop.f32.mrb[0].mxu0
        %v1176 = vadd.f32 0.0, %v1175
        %v1177 = vpop.f32.mrb[0].mxu0
        %v1178 = vpop.f32.mrb[0].mxu0
        %v1179 = vpop.f32.mrb[0].mxu0
        %1180 = vdwg.mxu0
        %v1182 = vsel %vm855, %v1086, 0
        %v1185 = vsel %vm1091, %v853, 0
        %1187 = vmatprep.subr.bf16.mxu0 0
        %1188 = vmatpush1.bf16.msra.mxu0 %v1185
        %1189 = vmatprep.subr.bf16.mxu0 0
        %1190 = vmatpush1.bf16.msra.mxu0 0
        %1191 = vmatprep.subr.bf16.mxu0 0
        %1192 = vmatpush1.bf16.msra.mxu0 0
        %1193 = vmatprep.subr.bf16.mxu0 0
        %1194 = vmatpush1.bf16.msra.mxu0 0
        %1195 = vmatprep.subr.bf16.mxu0 0
        %1196 = vmatpush1.bf16.msra.mxu0 0
        %1197 = vmatprep.subr.bf16.mxu0 0
        %1198 = vmatpush1.bf16.msra.mxu0 0
        %1199 = vmatprep.subr.bf16.mxu0 0
        %1200 = vmatpush1.bf16.msra.mxu0 0
        %1201 = vmatprep.subr.bf16.mxu0 0
        %1202 = vmatpush1.bf16.msra.mxu0 0
        %1203 = vmatprep.subr.bf16.mxu0 0
        %1204 = vmatpush1.bf16.msra.mxu0 0
        %1205 = vmatprep.subr.bf16.mxu0 0
        %1206 = vmatpush1.bf16.msra.mxu0 0
        %1207 = vmatprep.subr.bf16.mxu0 0
        %1208 = vmatpush1.bf16.msra.mxu0 0
        %1209 = vmatprep.subr.bf16.mxu0 0
        %1210 = vmatpush1.bf16.msra.mxu0 0
        %1211 = vmatprep.subr.bf16.mxu0 0
        %1212 = vmatpush1.bf16.msra.mxu0 0
        %1213 = vmatprep.subr.bf16.mxu0 0
        %1214 = vmatpush1.bf16.msra.mxu0 0
        %1215 = vmatprep.subr.bf16.mxu0 0
        %1216 = vmatpush1.bf16.msra.mxu0 0
        %1217 = vmatprep.subr.bf16.mxu0 0
        %1218 = vmatpush1.bf16.msra.mxu0 0
        %1219 = vmatprep.mubr.bf16.mxu0 0
        %1220 = vmatmul.mubr.bf16.gmra.mrb[0].mxu0 %v1182
        %v1221 = vpop.f32.mrb[0].mxu0
        %v1222 = vadd.f32 0.0, %v1221
        %v1223 = vpop.f32.mrb[0].mxu0
        %v1224 = vpop.f32.mrb[0].mxu0
        %v1225 = vpop.f32.mrb[0].mxu0
        %1226 = vdwg.mxu0
        %v1228 = vsel %vm855, %v1087, 0
        %v1231 = vsel %vm1091, %v854, 0
        %1233 = vmatprep.subr.bf16.mxu0 0
        %1234 = vmatpush1.bf16.msra.mxu0 %v1231
        %1235 = vmatprep.subr.bf16.mxu0 0
        %1236 = vmatpush1.bf16.msra.mxu0 0
        %1237 = vmatprep.subr.bf16.mxu0 0
        %1238 = vmatpush1.bf16.msra.mxu0 0
        %1239 = vmatprep.subr.bf16.mxu0 0
        %1240 = vmatpush1.bf16.msra.mxu0 0
        %1241 = vmatprep.subr.bf16.mxu0 0
        %1242 = vmatpush1.bf16.msra.mxu0 0
        %1243 = vmatprep.subr.bf16.mxu0 0
        %1244 = vmatpush1.bf16.msra.mxu0 0
        %1245 = vmatprep.subr.bf16.mxu0 0
        %1246 = vmatpush1.bf16.msra.mxu0 0
        %1247 = vmatprep.subr.bf16.mxu0 0
        %1248 = vmatpush1.bf16.msra.mxu0 0
        %1249 = vmatprep.subr.bf16.mxu0 0
        %1250 = vmatpush1.bf16.msra.mxu0 0
        %1251 = vmatprep.subr.bf16.mxu0 0
        %1252 = vmatpush1.bf16.msra.mxu0 0
        %1253 = vmatprep.subr.bf16.mxu0 0
        %1254 = vmatpush1.bf16.msra.mxu0 0
        %1255 = vmatprep.subr.bf16.mxu0 0
        %1256 = vmatpush1.bf16.msra.mxu0 0
        %1257 = vmatprep.subr.bf16.mxu0 0
        %1258 = vmatpush1.bf16.msra.mxu0 0
        %1259 = vmatprep.subr.bf16.mxu0 0
        %1260 = vmatpush1.bf16.msra.mxu0 0
        %1261 = vmatprep.subr.bf16.mxu0 0
        %1262 = vmatpush1.bf16.msra.mxu0 0
        %1263 = vmatprep.subr.bf16.mxu0 0
        %1264 = vmatpush1.bf16.msra.mxu0 0
        %1265 = vmatprep.mubr.bf16.mxu0 0
        %1266 = vmatmul.mubr.bf16.gmra.mrb[0].mxu0 %v1228
        %v1267 = vpop.f32.mrb[0].mxu0
        %v1268 = vadd.f32 0.0, %v1267
        %v1269 = vpop.f32.mrb[0].mxu0
        %v1270 = vpop.f32.mrb[0].mxu0
        %v1271 = vpop.f32.mrb[0].mxu0
        %1272 = vdwg.mxu0
        %v1273 = vcombine.low %v1130, %v1222
        %v1274 = vcombine.high %v1130, %v1222
        %v1276 = vunpack.c.l.s4 1983009808
        %v1277 = vunpack.c.0.s8 %v1276
        %v1278 = vlaneseq
        %v1279 = vshrl.u32 %v1278, 7
        %v1280 = vsub.s32 %v1277, %v1279
        %v1281 = vrot.slane %v1273, %v1280
        %v1283 = vunpack.c.l.s4 1983009808
        %v1284 = vunpack.c.0.s8 %v1283
        %v1285 = vlaneseq
        %v1286 = vshrl.u32 %v1285, 7
        %v1287 = vsub.s32 %v1284, %v1286
        %v1288 = vrot.slane %v1274, %v1287
        %v1289 = vcombine.low %v1176, %v1268
        %v1290 = vcombine.high %v1176, %v1268
        %v1292 = vunpack.c.l.s4 1983009808
        %v1293 = vunpack.c.0.s8 %v1292
        %v1294 = vlaneseq
        %v1295 = vshrl.u32 %v1294, 7
        %v1296 = vsub.s32 %v1293, %v1295
        %v1297 = vrot.slane %v1289, %v1296
        %v1299 = vunpack.c.l.s4 1983009808
        %v1300 = vunpack.c.0.s8 %v1299
        %v1301 = vlaneseq
        %v1302 = vshrl.u32 %v1301, 7
        %v1303 = vsub.s32 %v1300, %v1302
        %v1304 = vrot.slane %v1290, %v1303
        %v1305 = vcombine.low %v1281, %v1297
        %v1306 = vcombine.high %v1281, %v1297
        %v1308 = vunpack.c.l.s4 1934713408
        %v1309 = vunpack.c.0.s8 %v1308
        %v1310 = vlaneseq
        %v1311 = vshrl.u32 %v1310, 7
        %v1312 = vsub.s32 %v1309, %v1311
        %v1313 = vrot.slane %v1305, %v1312
        %v1315 = vunpack.c.l.s4 1934713408
        %v1316 = vunpack.c.0.s8 %v1315
        %v1317 = vlaneseq
        %v1318 = vshrl.u32 %v1317, 7
        %v1319 = vsub.s32 %v1316, %v1318
        %v1320 = vrot.slane %v1306, %v1319
        %v1321 = vcombine.low %v1288, %v1304
        %v1322 = vcombine.high %v1288, %v1304
        %v1324 = vunpack.c.l.s4 1934713408
        %v1325 = vunpack.c.0.s8 %v1324
        %v1326 = vlaneseq
        %v1327 = vshrl.u32 %v1326, 7
        %v1328 = vsub.s32 %v1325, %v1327
        %v1329 = vrot.slane %v1321, %v1328
        %v1331 = vunpack.c.l.s4 1934713408
        %v1332 = vunpack.c.0.s8 %v1331
        %v1333 = vlaneseq
        %v1334 = vshrl.u32 %v1333, 7
        %v1335 = vsub.s32 %v1332, %v1334
        %v1336 = vrot.slane %v1322, %v1335
        %v1337 = vcombine.high %v1313, 0.0
        %v1338 = vcombine.high %v1320, 0.0
        %v1339 = vcombine.high %v1329, 0.0
        %v1340 = vcombine.high %v1336, 0.0
        %v1341 = vcombine.low %v1313, %v1320
        %v1343 = vunpack.c.l.s4 1983009808
        %v1344 = vunpack.c.0.s8 %v1343
        %v1345 = vlaneseq
        %v1346 = vshrl.u32 %v1345, 7
        %v1347 = vsub.s32 %v1344, %v1346
        %v1348 = vrot.slane %v1341, %v1347
        %v1349 = vcombine.low %v1337, %v1338
        %v1351 = vunpack.c.l.s4 1983009808
        %v1352 = vunpack.c.0.s8 %v1351
        %v1353 = vlaneseq
        %v1354 = vshrl.u32 %v1353, 7
        %v1355 = vsub.s32 %v1352, %v1354
        %v1356 = vrot.slane %v1349, %v1355
        %v1357 = vcombine.low %v1329, %v1336
        %v1359 = vunpack.c.l.s4 1983009808
        %v1360 = vunpack.c.0.s8 %v1359
        %v1361 = vlaneseq
        %v1362 = vshrl.u32 %v1361, 7
        %v1363 = vsub.s32 %v1360, %v1362
        %v1364 = vrot.slane %v1357, %v1363
        %v1365 = vcombine.low %v1339, %v1340
        %v1367 = vunpack.c.l.s4 1983009808
        %v1368 = vunpack.c.0.s8 %v1367
        %v1369 = vlaneseq
        %v1370 = vshrl.u32 %v1369, 7
        %v1371 = vsub.s32 %v1368, %v1370
        %v1372 = vrot.slane %v1365, %v1371
        %v1373 = vcombine.low %v1348, %v1356
        %v1374 = vcombine.high %v1348, %v1356
        %v1376 = vunpack.c.l.s4 1934713408
        %v1377 = vunpack.c.0.s8 %v1376
        %v1378 = vlaneseq
        %v1379 = vshrl.u32 %v1378, 7
        %v1380 = vsub.s32 %v1377, %v1379
        %v1381 = vrot.slane %v1373, %v1380
        %v1383 = vunpack.c.l.s4 1934713408
        %v1384 = vunpack.c.0.s8 %v1383
        %v1385 = vlaneseq
        %v1386 = vshrl.u32 %v1385, 7
        %v1387 = vsub.s32 %v1384, %v1386
        %v1388 = vrot.slane %v1374, %v1387
        %v1389 = vcombine.low %v1364, %v1372
        %v1390 = vcombine.high %v1364, %v1372
        %v1392 = vunpack.c.l.s4 1934713408
        %v1393 = vunpack.c.0.s8 %v1392
        %v1394 = vlaneseq
        %v1395 = vshrl.u32 %v1394, 7
        %v1396 = vsub.s32 %v1393, %v1395
        %v1397 = vrot.slane %v1389, %v1396
        %v1399 = vunpack.c.l.s4 1934713408
        %v1400 = vunpack.c.0.s8 %v1399
        %v1401 = vlaneseq
        %v1402 = vshrl.u32 %v1401, 7
        %v1403 = vsub.s32 %v1400, %v1402
        %v1404 = vrot.slane %v1390, %v1403
        %v1405 = vcombine.low %v1381, %v1397
        %v1406 = vcombine.high %v1381, %v1397
        %v1407 = vcombine.low %v1388, %v1404
        %v1408 = vcombine.high %v1388, %v1404
        %1410 = vrot.lane.b32.xlu0 %v1406, 8
        %v1411 = vpop.permute.xlu0 %1410
        %1414 = vrot.lane.b32.xlu0 %v1407, 16
        %v1415 = vpop.permute.xlu0 %1414
        %1418 = vrot.lane.b32.xlu0 %v1408, 24
        %v1419 = vpop.permute.xlu0 %1418
        %v1421 = vsel %vm855, %v1405, %v1411
        %vm1422 = vcmask 130048
        %v1423 = vsel %vm1422, %v1421, %v1415
        %vm1424 = vcmask 195584
        %v1425 = vsel %vm1424, %v1423, %v1419
        %v1426 = vpack.c.bf16 %v1425, %v1425
        %v1427 = vld [vmem:[#allocation8] sm:$0xf]
        %v1428 = vld [vmem:[#allocation8 + $0x4] sm:$0xf]
        %v1429 = vld [vmem:[#allocation8 + $0x8] sm:$0xf]
        %v1430 = vld [vmem:[#allocation8 + $0xc] sm:$0xf]
        %v1431 = vld [vmem:[#allocation10] sm:$0x1]
        %v1433 = vlaneseq
        %v1434 = vshrl.u32 %v1433, 7
        %v1435 = vsub.s32 0, %v1434
        %v1436 = vrot.slane %v1431, %v1435
        %v1442 = vunpack.c.l.b16 %v1427
        %v1443 = vunpack.c.l.b16 %v1428
        %v1444 = vunpack.c.l.b16 %v1429
        %v1445 = vunpack.c.l.b16 %v1430
        %v1446 = vpack.c.b16 %v1443, %v1442
        %v1447 = vpack.c.b16 %v1445, %v1444
        %v1451 = vsel %vm357, %v1426, 0
        %1453 = vmatprep.subr.bf16.mxu0 0
        %1454 = vmatpush1.bf16.msra.mxu0 %v1446
        %1455 = vmatprep.subr.bf16.mxu0 0
        %1456 = vmatpush1.bf16.msra.mxu0 %v1447
        %1457 = vmatprep.subr.bf16.mxu0 0
        %1458 = vmatpush1.bf16.msra.mxu0 0
        %1459 = vmatprep.subr.bf16.mxu0 0
        %1460 = vmatpush1.bf16.msra.mxu0 0
        %1461 = vmatprep.subr.bf16.mxu0 0
        %1462 = vmatpush1.bf16.msra.mxu0 0
        %1463 = vmatprep.subr.bf16.mxu0 0
        %1464 = vmatpush1.bf16.msra.mxu0 0
        %1465 = vmatprep.subr.bf16.mxu0 0
        %1466 = vmatpush1.bf16.msra.mxu0 0
        %1467 = vmatprep.subr.bf16.mxu0 0
        %1468 = vmatpush1.bf16.msra.mxu0 0
        %1469 = vmatprep.subr.bf16.mxu0 0
        %1470 = vmatpush1.bf16.msra.mxu0 0
        %1471 = vmatprep.subr.bf16.mxu0 0
        %1472 = vmatpush1.bf16.msra.mxu0 0
        %1473 = vmatprep.subr.bf16.mxu0 0
        %1474 = vmatpush1.bf16.msra.mxu0 0
        %1475 = vmatprep.subr.bf16.mxu0 0
        %1476 = vmatpush1.bf16.msra.mxu0 0
        %1477 = vmatprep.subr.bf16.mxu0 0
        %1478 = vmatpush1.bf16.msra.mxu0 0
        %1479 = vmatprep.subr.bf16.mxu0 0
        %1480 = vmatpush1.bf16.msra.mxu0 0
        %1481 = vmatprep.subr.bf16.mxu0 0
        %1482 = vmatpush1.bf16.msra.mxu0 0
        %1483 = vmatprep.subr.bf16.mxu0 0
        %1484 = vmatpush1.bf16.msra.mxu0 0
        %1485 = vmatprep.mubr.bf16.mxu0 0
        %1486 = vmatmul.mubr.bf16.gmra.mrb[0].mxu0 %v1451
        %v1487 = vpop.f32.mrb[0].mxu0
        %v1488 = vadd.f32 %v1436, %v1487
        %v1489 = vpop.f32.mrb[0].mxu0
        %v1490 = vpop.f32.mrb[0].mxu0
        %v1491 = vpop.f32.mrb[0].mxu0
        %1492 = vdwg.mxu0
        %1493 = vst.msk [vmem:[%s324] sm:$0xff] %vm357, %v1488
        %v1494 = vsel %vm855, %v1077, 0.0
        %v1495 = vsel %vm855, %v1079, 0.0
        %v1496 = vadd.f32 %v1494, %v1495
        %v1497 = vsel %vm855, %v1081, 0.0
        %v1498 = vadd.f32 %v1496, %v1497
        %v1499 = vsel %vm855, %v1083, 0.0
        %v1500 = vadd.f32 %v1498, %v1499
        %v1501 = vrcp.pop 4.0
        %v1502 = vmul.f32 %v1500, %v1501
        %1503 = vst.msk [vmem:[%s331] sm:$0xff] %vm855, %v1502
        %s1504 = sand.u32 %s147, 1
        %s1505 = scalar_lea.sflag [#allocation4], %s1504
        %s1506 = sand.u32 %s147, 1
        %s1507 = smul.addr %s1506, 8
        %s1508 = scalar_lea.vmem [#allocation11], %s1507
        %s1509 = sand.u32 %s173, 1
        %s1510 = scalar_lea.sflag [#allocation13], %s1509
        %s1511 = sand.u32 %s173, 1
        %s1512 = smul.addr %s1511, 8
        %s1513 = scalar_lea.vmem [#allocation12], %s1512
        // Predicated region
        $region61: #{tpu_custom_call.1} parent=39 // pred_check
          %p1514 = pneg %p157
        $region62: #{tpu_custom_call.1} parent=39 // pred_check_branch
          %1516 = sbr.rel (%p1514) target = $region64
        $region63: #{tpu_custom_call.1} parent=39 // pred_region
          %s1518 = ssub.s32 128, 128
          %1519 = vsyncadd %s1505, %s1518
          %s1520 = smul.addr %s29, 128
          %s1521 = scalar_lea.hbm %s5, %s1520
          %s1523 = sshll.u32 %s1508, 4
          %s1524 = int_to_ptr.vmem [resolvable:$true] %s1523
          %1526 = dma.vmem_to_hbm [thread:$0]  %s1524, 128, %s1521, %s1505
        $region64: #{tpu_custom_call.1} parent=39 // pred_fallthru
          _
        // Predicated region
        $region65: #{tpu_custom_call.1} parent=39 // pred_check
          %p1527 = pneg %p183
        $region66: #{tpu_custom_call.1} parent=39 // pred_check_branch
          %1529 = sbr.rel (%p1527) target = $region68
        $region67: #{tpu_custom_call.1} parent=39 // pred_region
          %s1531 = ssub.s32 128, 128
          %1532 = vsyncadd %s1510, %s1531
          %s1533 = smul.addr %s29, 128
          %s1534 = scalar_lea.hbm %s6, %s1533
          %s1536 = sshll.u32 %s1513, 4
          %s1537 = int_to_ptr.vmem [resolvable:$true] %s1536
          %1539 = dma.vmem_to_hbm [thread:$0]  %s1537, 128, %s1534, %s1510
        $region68: #{tpu_custom_call.1} parent=39 // pred_fallthru
          _
      $region40: #{tpu_custom_call.1} parent=5 // pred_fallthru
        _
      %p1540 = scmp.le.s32.totalorder 2, %s24
      // Predicated region
      $region69: #{tpu_custom_call.1} parent=5 // pred_check
        %p1541 = pneg %p1540
      $region70: #{tpu_custom_call.1} parent=5 // pred_check_branch
        %1543 = sbr.rel (%p1541) target = $region72
      $region71: #{tpu_custom_call.1} parent=5 // pred_region
        %s1544 = ssub.s32 %s24, 2
        // Predicated region
        $region73: #{tpu_custom_call.1} parent=71 // pred_check
          %p1545 = pneg %p163
        $region74: #{tpu_custom_call.1} parent=71 // pred_check_branch
          %1547 = sbr.rel (%p1545) target = $region76
        $region75: #{tpu_custom_call.1} parent=71 // pred_region
          %s1548 = sand.u32 %s148, 1
          %s1549 = scalar_lea.sflag [#allocation4], %s1548
          %s1550 = sand.u32 %s148, 1
          %s1551 = smul.addr %s1550, 8
          %s1552 = scalar_lea.vmem [#allocation11], %s1551
          %1553 = dma.done %s1549, 128
        $region76: #{tpu_custom_call.1} parent=71 // pred_fallthru
          _
        // Predicated region
        $region77: #{tpu_custom_call.1} parent=71 // pred_check
          %p1554 = pneg %p189
        $region78: #{tpu_custom_call.1} parent=71 // pred_check_branch
          %1556 = sbr.rel (%p1554) target = $region80
        $region79: #{tpu_custom_call.1} parent=71 // pred_region
          %s1557 = sand.u32 %s174, 1
          %s1558 = scalar_lea.sflag [#allocation13], %s1557
          %s1559 = sand.u32 %s174, 1
          %s1560 = smul.addr %s1559, 8
          %s1561 = scalar_lea.vmem [#allocation12], %s1560
          %1562 = dma.done %s1558, 128
        $region80: #{tpu_custom_call.1} parent=71 // pred_fallthru
          _
      $region72: #{tpu_custom_call.1} parent=5 // pred_fallthru
        _
    $region6: #{tpu_custom_call.1} parent=1 // loop_footer
      %s28 = sadd.s32 1, %s24
    $region7: #{tpu_custom_call.1} parent=1 // loop_footer_branch
      %23 = sbr.rel target = $region3
    $region8: #{tpu_custom_call.1} parent=1 // loop_exit
      _
    %1563 = vsyncpa [#allocation3], 1
    %s1564 = scalar_lea.sflag [#allocation3], 1
    %1565 = vsyncpa %s1564, 1
    %1566 = vsyncpa [#allocation6], 1
    %1567 = vsyncpa [#allocation9], 1
    %1568 = vsyncpa [#allocation4], 1
    %s1569 = scalar_lea.sflag [#allocation4], 1
    %1570 = vsyncpa %s1569, 1
    %1571 = vsyncpa [#allocation13], 1
    %s1572 = scalar_lea.sflag [#allocation13], 1
    %1573 = vsyncpa %s1572, 1

// kernel: tpu_custom_call.1
$region0: #{tpu_custom_call.1}
  #allocation0 [shape = 'u32[]', space=smem, size = 0x4, offset = 0x4, fixed_abs, tag = 'smem constant byte address 0x4 - core index']
  #allocation1 [shape = 'u32[144,128]{1,0:T(1,128)}', space=vmem, size = 0x12000, scoped, tag = 'internal scratch']
  %s0 = inlined_call_operand.hbm [shape: bf16[2,8,32], index: 0, kind: input, shape index: {}]
  %s1 = inlined_call_operand.hbm [shape: bf16[32,96], index: 1, kind: input, shape index: {}]
  %s2 = inlined_call_operand.hbm [shape: f32[1,96], index: 2, kind: input, shape index: {}]
  %s3 = inlined_call_operand.hbm [shape: bf16[32,32], index: 3, kind: input, shape index: {}]
  %s4 = inlined_call_operand.hbm [shape: f32[1,32], index: 4, kind: input, shape index: {}]
  %s5 = inlined_call_operand.hbm [shape: f32[2,8,32], index: 5, kind: output, shape index: {0}]
  %s6 = inlined_call_operand.hbm [shape: f32[2,8,8], index: 6, kind: output, shape index: {1}]
  %7 = xla_tuple %s5, %s6
  %s8 = sld [smem:[#allocation0]]
  $region81: #{tpu_custom_call.1} parent=0
    _
  %s10 = ssub.s32 1, %s8
  %s11 = scalar_select 0, %s10, %s8
  $region1: #{tpu_custom_call.1} parent=0
    #allocation2 [shape = 'u8[4096]{0}', space=vmem, size = 0x1000, scoped, tag = 'input window, operand 0']
    #allocation3 [shape = 's32[2]{0}', space=sflag, size = 0x8, scoped, tag = 'scoped memory for tpu_custom_call.1']
    #allocation4 [shape = 's32[2]{0}', space=sflag, size = 0x8, scoped, tag = 'scoped memory for tpu_custom_call.1']
    #allocation5 [shape = 'u8[8192]{0}', space=vmem, size = 0x2000, scoped, tag = 'input window, operand 1, single buffered']
    #allocation6 [shape = 's32[1]{0}', space=sflag, size = 0x4, scoped, tag = 'scoped memory for tpu_custom_call.1']
    #allocation7 [shape = 'u8[512]{0}', space=vmem, size = 0x400, scoped, tag = 'input window, operand 2, single buffered']
    #allocation8 [shape = 'u8[8192]{0}', space=vmem, size = 0x2000, scoped, tag = 'input window, operand 3, single buffered']
    #allocation9 [shape = 's32[1]{0}', space=sflag, size = 0x4, scoped, tag = 'scoped memory for tpu_custom_call.1']
    #allocation10 [shape = 'u8[512]{0}', space=vmem, size = 0x400, scoped, tag = 'input window, operand 4, single buffered']
    #allocation11 [shape = 'u8[8192]{0}', space=vmem, size = 0x2000, scoped, tag = 'output window, operand 0']
    #allocation12 [shape = 'u8[8192]{0}', space=vmem, size = 0x2000, scoped, tag = 'output window, operand 1']
    #allocation13 [shape = 's32[2]{0}', space=sflag, size = 0x8, scoped, tag = 'scoped memory for tpu_custom_call.1']
    %12 = vsyncpa [#allocation3], 0
    %s13 = scalar_lea.sflag [#allocation3], 1
    %14 = vsyncpa %s13, 0
    %15 = vsyncpa [#allocation6], 0
    %16 = vsyncpa [#allocation9], 0
    %17 = vsyncpa [#allocation4], 0
    %s18 = scalar_lea.sflag [#allocation4], 1
    %19 = vsyncpa %s18, 0
    %20 = vsyncpa [#allocation13], 0
    %s21 = scalar_lea.sflag [#allocation13], 1
    %22 = vsyncpa %s21, 0
    loop: start=0, step=1, limit=4
    $region2: #{tpu_custom_call.1} parent=1 // loop_pre_header
      _
    $region3: #{tpu_custom_call.1} parent=1 // loop_header
      %s24 = sphi 0, %s28
      %p25 = scmp.ge.s32.totalorder %s24, 4
      %s34 = sphi 0, %s36
      %s37 = sphi 0, %s34
      %s38 = sphi 0, %s37
      %s54 = sphi 0, %s38
      %s58 = sphi 0, %s58
      %s60 = sphi 0, %s58
      %s61 = sphi 0, %s60
      %s75 = sphi 0, %s61
      %s79 = sphi 0, %s79
      %s81 = sphi 0, %s79
      %s82 = sphi 0, %s81
      %s96 = sphi 0, %s82
      %s100 = sphi 0, %s100
      %s102 = sphi 0, %s100
      %s103 = sphi 0, %s102
      %s117 = sphi 0, %s103
      %s121 = sphi 0, %s121
      %s123 = sphi 0, %s121
      %s124 = sphi 0, %s123
      %s138 = sphi 0, %s124
      %s144 = sphi 0, %s146
      %s147 = sphi 0, %s144
      %s148 = sphi 0, %s147
      %s164 = sphi 0, %s148
      %s170 = sphi 0, %s172
      %s173 = sphi 0, %s170
      %s174 = sphi 0, %s173
      %s190 = sphi 0, %s174
    $region4: #{tpu_custom_call.1} parent=1 // loop_header_branch
      %27 = sbr.rel (%p25) target = $region8
    $region5: #{tpu_custom_call.1} parent=1 // loop_body
      %s29 = ssub.s32 %s24, 1
      %s30 = ssub.s32 %s24, 2
      %s31 = sadd.s32 %s24, 1
      %s32 = ssub.s32 %s24, %s31
      %p33 = scmp.eq.s32.totalorder %s32, 0
      %s35 = sadd.s32 %s34, 1
      %s36 = scalar_select %p33, %s34, %s35
      %p39 = pneg %p33
      %p40 = scmp.eq.s32.totalorder %s24, 1
      %p41 = por %p39, %p40
      %p42 = scmp.ne.s32.totalorder %s34, %s37
      %p43 = scmp.eq.s32.totalorder %s24, 0
      %p44 = por %p42, %p43
      %p45 = scmp.ne.s32.totalorder %s34, %s37
      %p46 = scmp.eq.s32.totalorder %s29, 1
      %p47 = por %p45, %p46
      %p48 = scmp.ne.s32.totalorder %s37, %s38
      %p49 = scmp.eq.s32.totalorder %s29, 0
      %p50 = por %p48, %p49
      %p51 = scmp.ne.s32.totalorder %s37, %s38
      %p52 = scmp.eq.s32.totalorder %s30, 1
      %p53 = por %p51, %p52
      %p55 = scmp.ne.s32.totalorder %s38, %s54
      %p56 = scmp.eq.s32.totalorder %s30, 0
      %p57 = por %p55, %p56
      %s59 = sadd.s32 %s58, 1
      %p62 = scmp.eq.s32.totalorder %s24, 1
      %p63 = scmp.ne.s32.totalorder %s58, %s60
      %p64 = scmp.eq.s32.totalorder %s24, 0
      %p65 = por %p63, %p64
      %p66 = scmp.ne.s32.totalorder %s58, %s60
      %p67 = scmp.eq.s32.totalorder %s29, 1
      %p68 = por %p66, %p67
      %p69 = scmp.ne.s32.totalorder %s60, %s61
      %p70 = scmp.eq.s32.totalorder %s29, 0
      %p71 = por %p69, %p70
      %p72 = scmp.ne.s32.totalorder %s60, %s61
      %p73 = scmp.eq.s32.totalorder %s30, 1
      %p74 = por %p72, %p73
      %p76 = scmp.ne.s32.totalorder %s61, %s75
      %p77 = scmp.eq.s32.totalorder %s30, 0
      %p78 = por %p76, %p77
      %s80 = sadd.s32 %s79, 1
      %p83 = scmp.eq.s32.totalorder %s24, 1
      %p84 = scmp.ne.s32.totalorder %s79, %s81
      %p85 = scmp.eq.s32.totalorder %s24, 0
      %p86 = por %p84, %p85
      %p87 = scmp.ne.s32.totalorder %s79, %s81
      %p88 = scmp.eq.s32.totalorder %s29, 1
      %p89 = por %p87, %p88
      %p90 = scmp.ne.s32.totalorder %s81, %s82
      %p91 = scmp.eq.s32.totalorder %s29, 0
      %p92 = por %p90, %p91
      %p93 = scmp.ne.s32.totalorder %s81, %s82
      %p94 = scmp.eq.s32.totalorder %s30, 1
      %p95 = por %p93, %p94
      %p97 = scmp.ne.s32.totalorder %s82, %s96
      %p98 = scmp.eq.s32.totalorder %s30, 0
      %p99 = por %p97, %p98
      %s101 = sadd.s32 %s100, 1
      %p104 = scmp.eq.s32.totalorder %s24, 1
      %p105 = scmp.ne.s32.totalorder %s100, %s102
      %p106 = scmp.eq.s32.totalorder %s24, 0
      %p107 = por %p105, %p106
      %p108 = scmp.ne.s32.totalorder %s100, %s102
      %p109 = scmp.eq.s32.totalorder %s29, 1
      %p110 = por %p108, %p109
      %p111 = scmp.ne.s32.totalorder %s102, %s103
      %p112 = scmp.eq.s32.totalorder %s29, 0
      %p113 = por %p111, %p112
      %p114 = scmp.ne.s32.totalorder %s102, %s103
      %p115 = scmp.eq.s32.totalorder %s30, 1
      %p116 = por %p114, %p115
      %p118 = scmp.ne.s32.totalorder %s103, %s117
      %p119 = scmp.eq.s32.totalorder %s30, 0
      %p120 = por %p118, %p119
      %s122 = sadd.s32 %s121, 1
      %p125 = scmp.eq.s32.totalorder %s24, 1
      %p126 = scmp.ne.s32.totalorder %s121, %s123
      %p127 = scmp.eq.s32.totalorder %s24, 0
      %p128 = por %p126, %p127
      %p129 = scmp.ne.s32.totalorder %s121, %s123
      %p130 = scmp.eq.s32.totalorder %s29, 1
      %p131 = por %p129, %p130
      %p132 = scmp.ne.s32.totalorder %s123, %s124
      %p133 = scmp.eq.s32.totalorder %s29, 0
      %p134 = por %p132, %p133
      %p135 = scmp.ne.s32.totalorder %s123, %s124
      %p136 = scmp.eq.s32.totalorder %s30, 1
      %p137 = por %p135, %p136
      %p139 = scmp.ne.s32.totalorder %s124, %s138
      %p140 = scmp.eq.s32.totalorder %s30, 0
      %p141 = por %p139, %p140
      %s142 = ssub.s32 %s24, %s31
      %p143 = scmp.eq.s32.totalorder %s142, 0
      %s145 = sadd.s32 %s144, 1
      %s146 = scalar_select %p143, %s144, %s145
      %p149 = pneg %p143
      %p150 = scmp.eq.s32.totalorder %s24, 1
      %p151 = por %p149, %p150
      %p152 = scmp.ne.s32.totalorder %s144, %s147
      %p153 = scmp.eq.s32.totalorder %s24, 0
      %p154 = por %p152, %p153
      %p155 = scmp.ne.s32.totalorder %s144, %s147
      %p156 = scmp.eq.s32.totalorder %s29, 1
      %p157 = por %p155, %p156
      %p158 = scmp.ne.s32.totalorder %s147, %s148
      %p159 = scmp.eq.s32.totalorder %s29, 0
      %p160 = por %p158, %p159
      %p161 = scmp.ne.s32.totalorder %s147, %s148
      %p162 = scmp.eq.s32.totalorder %s30, 1
      %p163 = por %p161, %p162
      %p165 = scmp.ne.s32.totalorder %s148, %s164
      %p166 = scmp.eq.s32.totalorder %s30, 0
      %p167 = por %p165, %p166
      %s168 = ssub.s32 %s24, %s31
      %p169 = scmp.eq.s32.totalorder %s168, 0
      %s171 = sadd.s32 %s170, 1
      %s172 = scalar_select %p169, %s170, %s171
      %p175 = pneg %p169
      %p176 = scmp.eq.s32.totalorder %s24, 1
      %p177 = por %p175, %p176
      %p178 = scmp.ne.s32.totalorder %s170, %s173
      %p179 = scmp.eq.s32.totalorder %s24, 0
      %p180 = por %p178, %p179
      %p181 = scmp.ne.s32.totalorder %s170, %s173
      %p182 = scmp.eq.s32.totalorder %s29, 1
      %p183 = por %p181, %p182
      %p184 = scmp.ne.s32.totalorder %s173, %s174
      %p185 = scmp.eq.s32.totalorder %s29, 0
      %p186 = por %p184, %p185
      %p187 = scmp.ne.s32.totalorder %s173, %s174
      %p188 = scmp.eq.s32.totalorder %s30, 1
      %p189 = por %p187, %p188
      %p191 = scmp.ne.s32.totalorder %s174, %s190
      %p192 = scmp.eq.s32.totalorder %s30, 0
      %p193 = por %p191, %p192
      %p194 = scmp.le.s32.totalorder 1, %s24
      %p195 = scmp.lt.s32.totalorder %s24, 3
      %p196 = pnand %p194, %p195
      %p197 = pneg %p196
      // Predicated region
      $region9: #{tpu_custom_call.1} parent=5 // pred_check
        _
      $region10: #{tpu_custom_call.1} parent=5 // pred_check_branch
        %199 = sbr.rel (%p196) target = $region12
      $region11: #{tpu_custom_call.1} parent=5 // pred_region
        %s200 = ssub.s32 %s24, 1
        // Predicated region
        $region13: #{tpu_custom_call.1} parent=11 // pred_check
          %p201 = pneg %p71
        $region14: #{tpu_custom_call.1} parent=11 // pred_check_branch
          %203 = sbr.rel (%p201) target = $region16
        $region15: #{tpu_custom_call.1} parent=11 // pred_region
          %s205 = ssub.s32 256, 256
          %206 = vsyncadd [#allocation6], %s205
          %s207 = sshll.u32 [#allocation5], 4
          %s208 = int_to_ptr.vmem [resolvable:$true] %s207
          %213 = dma.hbm_to_vmem [thread:$0]  %s1, 256, %s208, [#allocation6], 64, 64, 4
        $region16: #{tpu_custom_call.1} parent=11 // pred_fallthru
          _
        // Predicated region
        $region17: #{tpu_custom_call.1} parent=11 // pred_check
          %p214 = pneg %p92
        $region18: #{tpu_custom_call.1} parent=11 // pred_check_branch
          %216 = sbr.rel (%p214) target = $region20
        $region19: #{tpu_custom_call.1} parent=11 // pred_region
          %s218 = ssub.s32 16, 16
          %219 = vsyncadd [#allocation6], %s218
          %s221 = sshll.u32 [#allocation7], 4
          %s222 = int_to_ptr.vmem [resolvable:$true] %s221
          %224 = dma.hbm_to_vmem [thread:$0]  %s2, 16, %s222, [#allocation6]
        $region20: #{tpu_custom_call.1} parent=11 // pred_fallthru
          _
        // Predicated region
        $region21: #{tpu_custom_call.1} parent=11 // pred_check
          %p225 = pneg %p113
        $region22: #{tpu_custom_call.1} parent=11 // pred_check_branch
          %227 = sbr.rel (%p225) target = $region24
        $region23: #{tpu_custom_call.1} parent=11 // pred_region
          %s229 = ssub.s32 256, 256
          %230 = vsyncadd [#allocation9], %s229
          %s231 = sshll.u32 [#allocation8], 4
          %s232 = int_to_ptr.vmem [resolvable:$true] %s231
          %237 = dma.hbm_to_vmem [thread:$0]  %s3, 256, %s232, [#allocation9], 64, 64, 4
        $region24: #{tpu_custom_call.1} parent=11 // pred_fallthru
          _
        // Predicated region
        $region25: #{tpu_custom_call.1} parent=11 // pred_check
          %p238 = pneg %p134
        $region26: #{tpu_custom_call.1} parent=11 // pred_check_branch
          %240 = sbr.rel (%p238) target = $region28
        $region27: #{tpu_custom_call.1} parent=11 // pred_region
          %s242 = ssub.s32 16, 16
          %243 = vsyncadd [#allocation9], %s242
          %s245 = sshll.u32 [#allocation10], 4
          %s246 = int_to_ptr.vmem [resolvable:$true] %s245
          %248 = dma.hbm_to_vmem [thread:$0]  %s4, 16, %s246, [#allocation9]
        $region28: #{tpu_custom_call.1} parent=11 // pred_fallthru
          _
      $region12: #{tpu_custom_call.1} parent=5 // pred_fallthru
        _
      %p249 = scmp.lt.s32.totalorder %s24, 2
      // Predicated region
      $region29: #{tpu_custom_call.1} parent=5 // pred_check
        %p250 = pneg %p249
      $region30: #{tpu_custom_call.1} parent=5 // pred_check_branch
        %252 = sbr.rel (%p250) target = $region32
      $region31: #{tpu_custom_call.1} parent=5 // pred_region
        // Predicated region
        $region33: #{tpu_custom_call.1} parent=31 // pred_check
          %p253 = pneg %p44
        $region34: #{tpu_custom_call.1} parent=31 // pred_check_branch
          %255 = sbr.rel (%p253) target = $region36
        $region35: #{tpu_custom_call.1} parent=31 // pred_region
          %s256 = sand.u32 %s34, 1
          %s257 = scalar_lea.sflag [#allocation3], %s256
          %s258 = sand.u32 %s34, 1
          %s259 = smul.addr %s258, 4
          %s260 = scalar_lea.vmem [#allocation2], %s259
          %s262 = ssub.s32 64, 64
          %263 = vsyncadd %s257, %s262
          %s264 = smul.addr %s24, 64
          %s265 = scalar_lea.hbm %s0, %s264
          %s267 = sshll.u32 %s260, 4
          %s268 = int_to_ptr.vmem [resolvable:$true] %s267
          %270 = dma.hbm_to_vmem [thread:$0]  %s265, 64, %s268, %s257
        $region36: #{tpu_custom_call.1} parent=31 // pred_fallthru
          _
      $region32: #{tpu_custom_call.1} parent=5 // pred_fallthru
        _
      %p271 = scmp.le.s32.totalorder 1, %s24
      %p272 = scmp.lt.s32.totalorder %s24, 3
      %p273 = pnand %p271, %p272
      %p274 = pneg %p273
      // Predicated region
      $region37: #{tpu_custom_call.1} parent=5 // pred_check
        _
      $region38: #{tpu_custom_call.1} parent=5 // pred_check_branch
        %276 = sbr.rel (%p273) target = $region40
      $region39: #{tpu_custom_call.1} parent=5 // pred_region
        %s277 = ssub.s32 %s24, 1
        %s278 = sand.u32 %s37, 1
        %s279 = scalar_lea.sflag [#allocation3], %s278
        %s280 = sand.u32 %s37, 1
        %s281 = smul.addr %s280, 4
        %s282 = scalar_lea.vmem [#allocation2], %s281
        // Predicated region
        $region41: #{tpu_custom_call.1} parent=39 // pred_check
          %p283 = pneg %p50
        $region42: #{tpu_custom_call.1} parent=39 // pred_check_branch
          %285 = sbr.rel (%p283) target = $region44
        $region43: #{tpu_custom_call.1} parent=39 // pred_region
          %286 = dma.done %s279, 64
        $region44: #{tpu_custom_call.1} parent=39 // pred_fallthru
          _
        // Predicated region
        $region45: #{tpu_custom_call.1} parent=39 // pred_check
          %p287 = pneg %p71
        $region46: #{tpu_custom_call.1} parent=39 // pred_check_branch
          %289 = sbr.rel (%p287) target = $region48
        $region47: #{tpu_custom_call.1} parent=39 // pred_region
          %290 = dma.done [#allocation6], 256
        $region48: #{tpu_custom_call.1} parent=39 // pred_fallthru
          _
        // Predicated region
        $region49: #{tpu_custom_call.1} parent=39 // pred_check
          %p291 = pneg %p92
        $region50: #{tpu_custom_call.1} parent=39 // pred_check_branch
          %293 = sbr.rel (%p291) target = $region52
        $region51: #{tpu_custom_call.1} parent=39 // pred_region
          %294 = dma.done [#allocation6], 16
        $region52: #{tpu_custom_call.1} parent=39 // pred_fallthru
          _
        // Predicated region
        $region53: #{tpu_custom_call.1} parent=39 // pred_check
          %p295 = pneg %p113
        $region54: #{tpu_custom_call.1} parent=39 // pred_check_branch
          %297 = sbr.rel (%p295) target = $region56
        $region55: #{tpu_custom_call.1} parent=39 // pred_region
          %298 = dma.done [#allocation9], 256
        $region56: #{tpu_custom_call.1} parent=39 // pred_fallthru
          _
        // Predicated region
        $region57: #{tpu_custom_call.1} parent=39 // pred_check
          %p299 = pneg %p134
        $region58: #{tpu_custom_call.1} parent=39 // pred_check_branch
          %301 = sbr.rel (%p299) target = $region60
        $region59: #{tpu_custom_call.1} parent=39 // pred_region
          %302 = dma.done [#allocation9], 16
        $region60: #{tpu_custom_call.1} parent=39 // pred_fallthru
          _
        %s303 = sand.u32 %s37, 1
        %s304 = scalar_lea.sflag [#allocation3], %s303
        %s305 = sand.u32 %s37, 1
        %s306 = smul.addr %s305, 4
        %s307 = scalar_lea.vmem [#allocation2], %s306
        %p308 = pneg %p50
        %p309 = pneg %p47
        %p310 = pneg %p71
        %p311 = pneg %p68
        %p312 = pneg %p92
        %p313 = pneg %p89
        %p314 = pneg %p113
        %p315 = pneg %p110
        %p316 = pneg %p134
        %p317 = pneg %p131
        %p318 = pneg %p160
        %p319 = pneg %p157
        %s320 = sand.u32 %s147, 1
        %s321 = scalar_lea.sflag [#allocation4], %s320
        %s322 = sand.u32 %s147, 1
        %s323 = smul.addr %s322, 8
        %s324 = scalar_lea.vmem [#allocation11], %s323
        %p325 = pneg %p186
        %p326 = pneg %p183
        %s327 = sand.u32 %s173, 1
        %s328 = scalar_lea.sflag [#allocation13], %s327
        %s329 = sand.u32 %s173, 1
        %s330 = smul.addr %s329, 8
        %s331 = scalar_lea.vmem [#allocation12], %s330
        %v333 = vld [vmem:[%s282] sm:$0xf]
        %v334 = vld [vmem:[#allocation5] sm:$0xf]
        %v335 = vld [vmem:[#allocation5 + $0x4] sm:$0xf]
        %v336 = vld [vmem:[#allocation5 + $0x8] sm:$0xf]
        %v337 = vld [vmem:[#allocation5 + $0xc] sm:$0xf]
        %v338 = vld [vmem:[#allocation7] sm:$0x1]
        %v340 = vlaneseq
        %v341 = vshrl.u32 %v340, 7
        %v342 = vsub.s32 0, %v341
        %v343 = vrot.slane %v338, %v342
        %v349 = vunpack.c.l.b16 %v334
        %v350 = vunpack.c.l.b16 %v335
        %v351 = vunpack.c.l.b16 %v336
        %v352 = vunpack.c.l.b16 %v337
        %v353 = vpack.c.b16 %v350, %v349
        %v354 = vpack.c.b16 %v352, %v351
        %vm357 = vcmask 261120
        %v359 = vsel %vm357, %v333, 0
        %361 = vmatprep.subr.bf16.mxu0 0
        %362 = vmatpush1.bf16.msra.mxu0 %v353
        %363 = vmatprep.subr.bf16.mxu0 0
        %364 = vmatpush1.bf16.msra.mxu0 %v354
        %365 = vmatprep.subr.bf16.mxu0 0
        %366 = vmatpush1.bf16.msra.mxu0 0
        %367 = vmatprep.subr.bf16.mxu0 0
        %368 = vmatpush1.bf16.msra.mxu0 0
        %369 = vmatprep.subr.bf16.mxu0 0
        %370 = vmatpush1.bf16.msra.mxu0 0
        %371 = vmatprep.subr.bf16.mxu0 0
        %372 = vmatpush1.bf16.msra.mxu0 0
        %373 = vmatprep.subr.bf16.mxu0 0
        %374 = vmatpush1.bf16.msra.mxu0 0
        %375 = vmatprep.subr.bf16.mxu0 0
        %376 = vmatpush1.bf16.msra.mxu0 0
        %377 = vmatprep.subr.bf16.mxu0 0
        %378 = vmatpush1.bf16.msra.mxu0 0
        %379 = vmatprep.subr.bf16.mxu0 0
        %380 = vmatpush1.bf16.msra.mxu0 0
        %381 = vmatprep.subr.bf16.mxu0 0
        %382 = vmatpush1.bf16.msra.mxu0 0
        %383 = vmatprep.subr.bf16.mxu0 0
        %384 = vmatpush1.bf16.msra.mxu0 0
        %385 = vmatprep.subr.bf16.mxu0 0
        %386 = vmatpush1.bf16.msra.mxu0 0
        %387 = vmatprep.subr.bf16.mxu0 0
        %388 = vmatpush1.bf16.msra.mxu0 0
        %389 = vmatprep.subr.bf16.mxu0 0
        %390 = vmatpush1.bf16.msra.mxu0 0
        %391 = vmatprep.subr.bf16.mxu0 0
        %392 = vmatpush1.bf16.msra.mxu0 0
        %393 = vmatprep.mubr.bf16.mxu0 0
        %394 = vmatmul.mubr.bf16.gmra.mrb[0].mxu0 %v359
        %v395 = vpop.f32.mrb[0].mxu0
        %v396 = vadd.f32 %v343, %v395
        %v397 = vpop.f32.mrb[0].mxu0
        %v398 = vpop.f32.mrb[0].mxu0
        %v399 = vpop.f32.mrb[0].mxu0
        %400 = vdwg.mxu0
        %402 = vrot.lane.b32.xlu0 %v396, 120
        %v403 = vpop.permute.xlu0 %402
        %405 = vrot.lane.b32.xlu0 %v396, 112
        %v406 = vpop.permute.xlu0 %405
        %408 = vrot.lane.b32.xlu0 %v396, 104
        %v409 = vpop.permute.xlu0 %408
        %v411 = vcombine.low %v396, %v406
        %v412 = vcombine.high %v396, %v406
        %v414 = vunpack.c.l.s4 1983009808
        %v415 = vunpack.c.0.s8 %v414
        %v416 = vlaneseq
        %v417 = vshrl.u32 %v416, 7
        %v418 = vsub.s32 %v415, %v417
        %v419 = vrot.slane %v411, %v418
        %v421 = vunpack.c.l.s4 1983009808
        %v422 = vunpack.c.0.s8 %v421
        %v423 = vlaneseq
        %v424 = vshrl.u32 %v423, 7
        %v425 = vsub.s32 %v422, %v424
        %v426 = vrot.slane %v412, %v425
        %v427 = vcombine.low %v403, %v409
        %v428 = vcombine.high %v403, %v409
        %v430 = vunpack.c.l.s4 1983009808
        %v431 = vunpack.c.0.s8 %v430
        %v432 = vlaneseq
        %v433 = vshrl.u32 %v432, 7
        %v434 = vsub.s32 %v431, %v433
        %v435 = vrot.slane %v427, %v434
        %v437 = vunpack.c.l.s4 1983009808
        %v438 = vunpack.c.0.s8 %v437
        %v439 = vlaneseq
        %v440 = vshrl.u32 %v439, 7
        %v441 = vsub.s32 %v438, %v440
        %v442 = vrot.slane %v428, %v441
        %v443 = vcombine.low %v419, %v435
        %v444 = vcombine.high %v419, %v435
        %v446 = vunpack.c.l.s4 1934713408
        %v447 = vunpack.c.0.s8 %v446
        %v448 = vlaneseq
        %v449 = vshrl.u32 %v448, 7
        %v450 = vsub.s32 %v447, %v449
        %v451 = vrot.slane %v443, %v450
        %v453 = vunpack.c.l.s4 1934713408
        %v454 = vunpack.c.0.s8 %v453
        %v455 = vlaneseq
        %v456 = vshrl.u32 %v455, 7
        %v457 = vsub.s32 %v454, %v456
        %v458 = vrot.slane %v444, %v457
        %v459 = vcombine.low %v426, %v442
        %v460 = vcombine.high %v426, %v442
        %v462 = vunpack.c.l.s4 1934713408
        %v463 = vunpack.c.0.s8 %v462
        %v464 = vlaneseq
        %v465 = vshrl.u32 %v464, 7
        %v466 = vsub.s32 %v463, %v465
        %v467 = vrot.slane %v459, %v466
        %v469 = vunpack.c.l.s4 1934713408
        %v470 = vunpack.c.0.s8 %v469
        %v471 = vlaneseq
        %v472 = vshrl.u32 %v471, 7
        %v473 = vsub.s32 %v470, %v472
        %v474 = vrot.slane %v460, %v473
        %v475 = vcombine.high %v451, 0.0
        %v476 = vcombine.high %v458, 0.0
        %v477 = vcombine.high %v467, 0.0
        %v478 = vcombine.high %v474, 0.0
        %v479 = vcombine.low %v451, %v458
        %v481 = vunpack.c.l.s4 1983009808
        %v482 = vunpack.c.0.s8 %v481
        %v483 = vlaneseq
        %v484 = vshrl.u32 %v483, 7
        %v485 = vsub.s32 %v482, %v484
        %v486 = vrot.slane %v479, %v485
        %v487 = vcombine.low %v475, %v476
        %v489 = vunpack.c.l.s4 1983009808
        %v490 = vunpack.c.0.s8 %v489
        %v491 = vlaneseq
        %v492 = vshrl.u32 %v491, 7
        %v493 = vsub.s32 %v490, %v492
        %v494 = vrot.slane %v487, %v493
        %v495 = vcombine.low %v467, %v474
        %v497 = vunpack.c.l.s4 1983009808
        %v498 = vunpack.c.0.s8 %v497
        %v499 = vlaneseq
        %v500 = vshrl.u32 %v499, 7
        %v501 = vsub.s32 %v498, %v500
        %v502 = vrot.slane %v495, %v501
        %v503 = vcombine.low %v477, %v478
        %v505 = vunpack.c.l.s4 1983009808
        %v506 = vunpack.c.0.s8 %v505
        %v507 = vlaneseq
        %v508 = vshrl.u32 %v507, 7
        %v509 = vsub.s32 %v506, %v508
        %v510 = vrot.slane %v503, %v509
        %v511 = vcombine.low %v486, %v494
        %v512 = vcombine.high %v486, %v494
        %v514 = vunpack.c.l.s4 1934713408
        %v515 = vunpack.c.0.s8 %v514
        %v516 = vlaneseq
        %v517 = vshrl.u32 %v516, 7
        %v518 = vsub.s32 %v515, %v517
        %v519 = vrot.slane %v511, %v518
        %v521 = vunpack.c.l.s4 1934713408
        %v522 = vunpack.c.0.s8 %v521
        %v523 = vlaneseq
        %v524 = vshrl.u32 %v523, 7
        %v525 = vsub.s32 %v522, %v524
        %v526 = vrot.slane %v512, %v525
        %v527 = vcombine.low %v502, %v510
        %v528 = vcombine.high %v502, %v510
        %v530 = vunpack.c.l.s4 1934713408
        %v531 = vunpack.c.0.s8 %v530
        %v532 = vlaneseq
        %v533 = vshrl.u32 %v532, 7
        %v534 = vsub.s32 %v531, %v533
        %v535 = vrot.slane %v527, %v534
        %v537 = vunpack.c.l.s4 1934713408
        %v538 = vunpack.c.0.s8 %v537
        %v539 = vlaneseq
        %v540 = vshrl.u32 %v539, 7
        %v541 = vsub.s32 %v538, %v540
        %v542 = vrot.slane %v528, %v541
        %v543 = vcombine.low %v519, %v535
        %v544 = vcombine.high %v519, %v535
        %v545 = vcombine.low %v526, %v542
        %v546 = vcombine.high %v526, %v542
        %v547 = vpack.c.bf16 %v543, %v543
        %v548 = vpack.c.bf16 %v544, %v544
        %v549 = vpack.c.bf16 %v545, %v545
        %v550 = vpack.c.bf16 %v546, %v546
        %551 = vrot.lane.b32.xlu0 %v396, 96
        %v552 = vpop.permute.xlu0 %551
        %553 = vrot.lane.b32.xlu0 %v403, 96
        %v554 = vpop.permute.xlu0 %553
        %555 = vrot.lane.b32.xlu0 %v406, 96
        %v556 = vpop.permute.xlu0 %555
        %557 = vrot.lane.b32.xlu0 %v409, 96
        %v558 = vpop.permute.xlu0 %557
        %v563 = vcombine.low %v552, %v556
        %v564 = vcombine.high %v552, %v556
        %v566 = vunpack.c.l.s4 1983009808
        %v567 = vunpack.c.0.s8 %v566
        %v568 = vlaneseq
        %v569 = vshrl.u32 %v568, 7
        %v570 = vsub.s32 %v567, %v569
        %v571 = vrot.slane %v563, %v570
        %v573 = vunpack.c.l.s4 1983009808
        %v574 = vunpack.c.0.s8 %v573
        %v575 = vlaneseq
        %v576 = vshrl.u32 %v575, 7
        %v577 = vsub.s32 %v574, %v576
        %v578 = vrot.slane %v564, %v577
        %v579 = vcombine.low %v554, %v558
        %v580 = vcombine.high %v554, %v558
        %v582 = vunpack.c.l.s4 1983009808
        %v583 = vunpack.c.0.s8 %v582
        %v584 = vlaneseq
        %v585 = vshrl.u32 %v584, 7
        %v586 = vsub.s32 %v583, %v585
        %v587 = vrot.slane %v579, %v586
        %v589 = vunpack.c.l.s4 1983009808
        %v590 = vunpack.c.0.s8 %v589
        %v591 = vlaneseq
        %v592 = vshrl.u32 %v591, 7
        %v593 = vsub.s32 %v590, %v592
        %v594 = vrot.slane %v580, %v593
        %v595 = vcombine.low %v571, %v587
        %v596 = vcombine.high %v571, %v587
        %v598 = vunpack.c.l.s4 1934713408
        %v599 = vunpack.c.0.s8 %v598
        %v600 = vlaneseq
        %v601 = vshrl.u32 %v600, 7
        %v602 = vsub.s32 %v599, %v601
        %v603 = vrot.slane %v595, %v602
        %v605 = vunpack.c.l.s4 1934713408
        %v606 = vunpack.c.0.s8 %v605
        %v607 = vlaneseq
        %v608 = vshrl.u32 %v607, 7
        %v609 = vsub.s32 %v606, %v608
        %v610 = vrot.slane %v596, %v609
        %v611 = vcombine.low %v578, %v594
        %v612 = vcombine.high %v578, %v594
        %v614 = vunpack.c.l.s4 1934713408
        %v615 = vunpack.c.0.s8 %v614
        %v616 = vlaneseq
        %v617 = vshrl.u32 %v616, 7
        %v618 = vsub.s32 %v615, %v617
        %v619 = vrot.slane %v611, %v618
        %v621 = vunpack.c.l.s4 1934713408
        %v622 = vunpack.c.0.s8 %v621
        %v623 = vlaneseq
        %v624 = vshrl.u32 %v623, 7
        %v625 = vsub.s32 %v622, %v624
        %v626 = vrot.slane %v612, %v625
        %v627 = vcombine.high %v603, 0.0
        %v628 = vcombine.high %v610, 0.0
        %v629 = vcombine.high %v619, 0.0
        %v630 = vcombine.high %v626, 0.0
        %v631 = vcombine.low %v603, %v610
        %v633 = vunpack.c.l.s4 1983009808
        %v634 = vunpack.c.0.s8 %v633
        %v635 = vlaneseq
        %v636 = vshrl.u32 %v635, 7
        %v637 = vsub.s32 %v634, %v636
        %v638 = vrot.slane %v631, %v637
        %v639 = vcombine.low %v627, %v628
        %v641 = vunpack.c.l.s4 1983009808
        %v642 = vunpack.c.0.s8 %v641
        %v643 = vlaneseq
        %v644 = vshrl.u32 %v643, 7
        %v645 = vsub.s32 %v642, %v644
        %v646 = vrot.slane %v639, %v645
        %v647 = vcombine.low %v619, %v626
        %v649 = vunpack.c.l.s4 1983009808
        %v650 = vunpack.c.0.s8 %v649
        %v651 = vlaneseq
        %v652 = vshrl.u32 %v651, 7
        %v653 = vsub.s32 %v650, %v652
        %v654 = vrot.slane %v647, %v653
        %v655 = vcombine.low %v629, %v630
        %v657 = vunpack.c.l.s4 1983009808
        %v658 = vunpack.c.0.s8 %v657
        %v659 = vlaneseq
        %v660 = vshrl.u32 %v659, 7
        %v661 = vsub.s32 %v658, %v660
        %v662 = vrot.slane %v655, %v661
        %v663 = vcombine.low %v638, %v646
        %v664 = vcombine.high %v638, %v646
        %v666 = vunpack.c.l.s4 1934713408
        %v667 = vunpack.c.0.s8 %v666
        %v668 = vlaneseq
        %v669 = vshrl.u32 %v668, 7
        %v670 = vsub.s32 %v667, %v669
        %v671 = vrot.slane %v663, %v670
        %v673 = vunpack.c.l.s4 1934713408
        %v674 = vunpack.c.0.s8 %v673
        %v675 = vlaneseq
        %v676 = vshrl.u32 %v675, 7
        %v677 = vsub.s32 %v674, %v676
        %v678 = vrot.slane %v664, %v677
        %v679 = vcombine.low %v654, %v662
        %v680 = vcombine.high %v654, %v662
        %v682 = vunpack.c.l.s4 1934713408
        %v683 = vunpack.c.0.s8 %v682
        %v684 = vlaneseq
        %v685 = vshrl.u32 %v684, 7
        %v686 = vsub.s32 %v683, %v685
        %v687 = vrot.slane %v679, %v686
        %v689 = vunpack.c.l.s4 1934713408
        %v690 = vunpack.c.0.s8 %v689
        %v691 = vlaneseq
        %v692 = vshrl.u32 %v691, 7
        %v693 = vsub.s32 %v690, %v692
        %v694 = vrot.slane %v680, %v693
        %v695 = vcombine.low %v671, %v687
        %v696 = vcombine.high %v671, %v687
        %v697 = vcombine.low %v678, %v694
        %v698 = vcombine.high %v678, %v694
        %v699 = vpack.c.bf16 %v695, %v695
        %v700 = vpack.c.bf16 %v696, %v696
        %v701 = vpack.c.bf16 %v697, %v697
        %v702 = vpack.c.bf16 %v698, %v698
        %703 = vrot.lane.b32.xlu0 %v396, 64
        %v704 = vpop.permute.xlu0 %703
        %705 = vrot.lane.b32.xlu0 %v403, 64
        %v706 = vpop.permute.xlu0 %705
        %707 = vrot.lane.b32.xlu0 %v406, 64
        %v708 = vpop.permute.xlu0 %707
        %709 = vrot.lane.b32.xlu0 %v409, 64
        %v710 = vpop.permute.xlu0 %709
        %v715 = vcombine.low %v704, %v708
        %v716 = vcombine.high %v704, %v708
        %v718 = vunpack.c.l.s4 1983009808
        %v719 = vunpack.c.0.s8 %v718
        %v720 = vlaneseq
        %v721 = vshrl.u32 %v720, 7
        %v722 = vsub.s32 %v719, %v721
        %v723 = vrot.slane %v715, %v722
        %v725 = vunpack.c.l.s4 1983009808
        %v726 = vunpack.c.0.s8 %v725
        %v727 = vlaneseq
        %v728 = vshrl.u32 %v727, 7
        %v729 = vsub.s32 %v726, %v728
        %v730 = vrot.slane %v716, %v729
        %v731 = vcombine.low %v706, %v710
        %v732 = vcombine.high %v706, %v710
        %v734 = vunpack.c.l.s4 1983009808
        %v735 = vunpack.c.0.s8 %v734
        %v736 = vlaneseq
        %v737 = vshrl.u32 %v736, 7
        %v738 = vsub.s32 %v735, %v737
        %v739 = vrot.slane %v731, %v738
        %v741 = vunpack.c.l.s4 1983009808
        %v742 = vunpack.c.0.s8 %v741
        %v743 = vlaneseq
        %v744 = vshrl.u32 %v743, 7
        %v745 = vsub.s32 %v742, %v744
        %v746 = vrot.slane %v732, %v745
        %v747 = vcombine.low %v723, %v739
        %v748 = vcombine.high %v723, %v739
        %v750 = vunpack.c.l.s4 1934713408
        %v751 = vunpack.c.0.s8 %v750
        %v752 = vlaneseq
        %v753 = vshrl.u32 %v752, 7
        %v754 = vsub.s32 %v751, %v753
        %v755 = vrot.slane %v747, %v754
        %v757 = vunpack.c.l.s4 1934713408
        %v758 = vunpack.c.0.s8 %v757
        %v759 = vlaneseq
        %v760 = vshrl.u32 %v759, 7
        %v761 = vsub.s32 %v758, %v760
        %v762 = vrot.slane %v748, %v761
        %v763 = vcombine.low %v730, %v746
        %v764 = vcombine.high %v730, %v746
        %v766 = vunpack.c.l.s4 1934713408
        %v767 = vunpack.c.0.s8 %v766
        %v768 = vlaneseq
        %v769 = vshrl.u32 %v768, 7
        %v770 = vsub.s32 %v767, %v769
        %v771 = vrot.slane %v763, %v770
        %v773 = vunpack.c.l.s4 1934713408
        %v774 = vunpack.c.0.s8 %v773
        %v775 = vlaneseq
        %v776 = vshrl.u32 %v775, 7
        %v777 = vsub.s32 %v774, %v776
        %v778 = vrot.slane %v764, %v777
        %v779 = vcombine.high %v755, 0.0
        %v780 = vcombine.high %v762, 0.0
        %v781 = vcombine.high %v771, 0.0
        %v782 = vcombine.high %v778, 0.0
        %v783 = vcombine.low %v755, %v762
        %v785 = vunpack.c.l.s4 1983009808
        %v786 = vunpack.c.0.s8 %v785
        %v787 = vlaneseq
        %v788 = vshrl.u32 %v787, 7
        %v789 = vsub.s32 %v786, %v788
        %v790 = vrot.slane %v783, %v789
        %v791 = vcombine.low %v779, %v780
        %v793 = vunpack.c.l.s4 1983009808
        %v794 = vunpack.c.0.s8 %v793
        %v795 = vlaneseq
        %v796 = vshrl.u32 %v795, 7
        %v797 = vsub.s32 %v794, %v796
        %v798 = vrot.slane %v791, %v797
        %v799 = vcombine.low %v771, %v778
        %v801 = vunpack.c.l.s4 1983009808
        %v802 = vunpack.c.0.s8 %v801
        %v803 = vlaneseq
        %v804 = vshrl.u32 %v803, 7
        %v805 = vsub.s32 %v802, %v804
        %v806 = vrot.slane %v799, %v805
        %v807 = vcombine.low %v781, %v782
        %v809 = vunpack.c.l.s4 1983009808
        %v810 = vunpack.c.0.s8 %v809
        %v811 = vlaneseq
        %v812 = vshrl.u32 %v811, 7
        %v813 = vsub.s32 %v810, %v812
        %v814 = vrot.slane %v807, %v813
        %v815 = vcombine.low %v790, %v798
        %v816 = vcombine.high %v790, %v798
        %v818 = vunpack.c.l.s4 1934713408
        %v819 = vunpack.c.0.s8 %v818
        %v820 = vlaneseq
        %v821 = vshrl.u32 %v820, 7
        %v822 = vsub.s32 %v819, %v821
        %v823 = vrot.slane %v815, %v822
        %v825 = vunpack.c.l.s4 1934713408
        %v826 = vunpack.c.0.s8 %v825
        %v827 = vlaneseq
        %v828 = vshrl.u32 %v827, 7
        %v829 = vsub.s32 %v826, %v828
        %v830 = vrot.slane %v816, %v829
        %v831 = vcombine.low %v806, %v814
        %v832 = vcombine.high %v806, %v814
        %v834 = vunpack.c.l.s4 1934713408
        %v835 = vunpack.c.0.s8 %v834
        %v836 = vlaneseq
        %v837 = vshrl.u32 %v836, 7
        %v838 = vsub.s32 %v835, %v837
        %v839 = vrot.slane %v831, %v838
        %v841 = vunpack.c.l.s4 1934713408
        %v842 = vunpack.c.0.s8 %v841
        %v843 = vlaneseq
        %v844 = vshrl.u32 %v843, 7
        %v845 = vsub.s32 %v842, %v844
        %v846 = vrot.slane %v832, %v845
        %v847 = vcombine.low %v823, %v839
        %v848 = vcombine.high %v823, %v839
        %v849 = vcombine.low %v830, %v846
        %v850 = vcombine.high %v830, %v846
        %v851 = vpack.c.bf16 %v847, %v847
        %v852 = vpack.c.bf16 %v848, %v848
        %v853 = vpack.c.bf16 %v849, %v849
        %v854 = vpack.c.bf16 %v850, %v850
        %vm855 = vcmask 64512
        %v857 = vsel %vm855, %v547, 0
        %v860 = vsel %vm855, %v699, 0
        %862 = vmatprep.subr.bf16.mxu0 0
        %863 = vmatpush1.bf16.xpose.msra.mxu0 %v860
        %864 = vmatprep.subr.bf16.mxu0 0
        %865 = vmatpush1.bf16.xpose.msra.mxu0 0
        %866 = vmatprep.subr.bf16.mxu0 0
        %867 = vmatpush1.bf16.xpose.msra.mxu0 0
        %868 = vmatprep.subr.bf16.mxu0 0
        %869 = vmatpush1.bf16.xpose.msra.mxu0 0
        %870 = vmatprep.subr.bf16.mxu0 0
        %871 = vmatpush1.bf16.xpose.msra.mxu0 0
        %872 = vmatprep.subr.bf16.mxu0 0
        %873 = vmatpush1.bf16.xpose.msra.mxu0 0
        %874 = vmatprep.subr.bf16.mxu0 0
        %875 = vmatpush1.bf16.xpose.msra.mxu0 0
        %876 = vmatprep.subr.bf16.mxu0 0
        %877 = vmatpush1.bf16.xpose.msra.mxu0 0
        %878 = vmatprep.subr.bf16.mxu0 0
        %879 = vmatpush1.bf16.xpose.msra.mxu0 0
        %880 = vmatprep.subr.bf16.mxu0 0
        %881 = vmatpush1.bf16.xpose.msra.mxu0 0
        %882 = vmatprep.subr.bf16.mxu0 0
        %883 = vmatpush1.bf16.xpose.msra.mxu0 0
        %884 = vmatprep.subr.bf16.mxu0 0
        %885 = vmatpush1.bf16.xpose.msra.mxu0 0
        %886 = vmatprep.subr.bf16.mxu0 0
        %887 = vmatpush1.bf16.xpose.msra.mxu0 0
        %888 = vmatprep.subr.bf16.mxu0 0
        %889 = vmatpush1.bf16.xpose.msra.mxu0 0
        %890 = vmatprep.subr.bf16.mxu0 0
        %891 = vmatpush1.bf16.xpose.msra.mxu0 0
        %892 = vmatprep.subr.bf16.mxu0 0
        %893 = vmatpush1.bf16.xpose.msra.mxu0 0
        %894 = vmatprep.mubr.bf16.mxu0 0
        %895 = vmatmul.mubr.bf16.gmra.mrb[0].mxu0 %v857
        %v896 = vpop.f32.mrb[0].mxu0
        %v897 = vadd.f32 0.0, %v896
        %v898 = vpop.f32.mrb[0].mxu0
        %v899 = vpop.f32.mrb[0].mxu0
        %v900 = vpop.f32.mrb[0].mxu0
        %901 = vdwg.mxu0
        %v903 = vsel %vm855, %v548, 0
        %v906 = vsel %vm855, %v700, 0
        %908 = vmatprep.subr.bf16.mxu0 0
        %909 = vmatpush1.bf16.xpose.msra.mxu0 %v906
        %910 = vmatprep.subr.bf16.mxu0 0
        %911 = vmatpush1.bf16.xpose.msra.mxu0 0
        %912 = vmatprep.subr.bf16.mxu0 0
        %913 = vmatpush1.bf16.xpose.msra.mxu0 0
        %914 = vmatprep.subr.bf16.mxu0 0
        %915 = vmatpush1.bf16.xpose.msra.mxu0 0
        %916 = vmatprep.subr.bf16.mxu0 0
        %917 = vmatpush1.bf16.xpose.msra.mxu0 0
        %918 = vmatprep.subr.bf16.mxu0 0
        %919 = vmatpush1.bf16.xpose.msra.mxu0 0
        %920 = vmatprep.subr.bf16.mxu0 0
        %921 = vmatpush1.bf16.xpose.msra.mxu0 0
        %922 = vmatprep.subr.bf16.mxu0 0
        %923 = vmatpush1.bf16.xpose.msra.mxu0 0
        %924 = vmatprep.subr.bf16.mxu0 0
        %925 = vmatpush1.bf16.xpose.msra.mxu0 0
        %926 = vmatprep.subr.bf16.mxu0 0
        %927 = vmatpush1.bf16.xpose.msra.mxu0 0
        %928 = vmatprep.subr.bf16.mxu0 0
        %929 = vmatpush1.bf16.xpose.msra.mxu0 0
        %930 = vmatprep.subr.bf16.mxu0 0
        %931 = vmatpush1.bf16.xpose.msra.mxu0 0
        %932 = vmatprep.subr.bf16.mxu0 0
        %933 = vmatpush1.bf16.xpose.msra.mxu0 0
        %934 = vmatprep.subr.bf16.mxu0 0
        %935 = vmatpush1.bf16.xpose.msra.mxu0 0
        %936 = vmatprep.subr.bf16.mxu0 0
        %937 = vmatpush1.bf16.xpose.msra.mxu0 0
        %938 = vmatprep.subr.bf16.mxu0 0
        %939 = vmatpush1.bf16.xpose.msra.mxu0 0
        %940 = vmatprep.mubr.bf16.mxu0 0
        %941 = vmatmul.mubr.bf16.gmra.mrb[0].mxu0 %v903
        %v942 = vpop.f32.mrb[0].mxu0
        %v943 = vadd.f32 0.0, %v942
        %v944 = vpop.f32.mrb[0].mxu0
        %v945 = vpop.f32.mrb[0].mxu0
        %v946 = vpop.f32.mrb[0].mxu0
        %947 = vdwg.mxu0
        %v949 = vsel %vm855, %v549, 0
        %v952 = vsel %vm855, %v701, 0
        %954 = vmatprep.subr.bf16.mxu0 0
        %955 = vmatpush1.bf16.xpose.msra.mxu0 %v952
        %956 = vmatprep.subr.bf16.mxu0 0
        %957 = vmatpush1.bf16.xpose.msra.mxu0 0
        %958 = vmatprep.subr.bf16.mxu0 0
        %959 = vmatpush1.bf16.xpose.msra.mxu0 0
        %960 = vmatprep.subr.bf16.mxu0 0
        %961 = vmatpush1.bf16.xpose.msra.mxu0 0
        %962 = vmatprep.subr.bf16.mxu0 0
        %963 = vmatpush1.bf16.xpose.msra.mxu0 0
        %964 = vmatprep.subr.bf16.mxu0 0
        %965 = vmatpush1.bf16.xpose.msra.mxu0 0
        %966 = vmatprep.subr.bf16.mxu0 0
        %967 = vmatpush1.bf16.xpose.msra.mxu0 0
        %968 = vmatprep.subr.bf16.mxu0 0
        %969 = vmatpush1.bf16.xpose.msra.mxu0 0
        %970 = vmatprep.subr.bf16.mxu0 0
        %971 = vmatpush1.bf16.xpose.msra.mxu0 0
        %972 = vmatprep.subr.bf16.mxu0 0
        %973 = vmatpush1.bf16.xpose.msra.mxu0 0
        %974 = vmatprep.subr.bf16.mxu0 0
        %975 = vmatpush1.bf16.xpose.msra.mxu0 0
        %976 = vmatprep.subr.bf16.mxu0 0
        %977 = vmatpush1.bf16.xpose.msra.mxu0 0
        %978 = vmatprep.subr.bf16.mxu0 0
        %979 = vmatpush1.bf16.xpose.msra.mxu0 0
        %980 = vmatprep.subr.bf16.mxu0 0
        %981 = vmatpush1.bf16.xpose.msra.mxu0 0
        %982 = vmatprep.subr.bf16.mxu0 0
        %983 = vmatpush1.bf16.xpose.msra.mxu0 0
        %984 = vmatprep.subr.bf16.mxu0 0
        %985 = vmatpush1.bf16.xpose.msra.mxu0 0
        %986 = vmatprep.mubr.bf16.mxu0 0
        %987 = vmatmul.mubr.bf16.gmra.mrb[0].mxu0 %v949
        %v988 = vpop.f32.mrb[0].mxu0
        %v989 = vadd.f32 0.0, %v988
        %v990 = vpop.f32.mrb[0].mxu0
        %v991 = vpop.f32.mrb[0].mxu0
        %v992 = vpop.f32.mrb[0].mxu0
        %993 = vdwg.mxu0
        %v995 = vsel %vm855, %v550, 0
        %v998 = vsel %vm855, %v702, 0
        %1000 = vmatprep.subr.bf16.mxu0 0
        %1001 = vmatpush1.bf16.xpose.msra.mxu0 %v998
        %1002 = vmatprep.subr.bf16.mxu0 0
        %1003 = vmatpush1.bf16.xpose.msra.mxu0 0
        %1004 = vmatprep.subr.bf16.mxu0 0
        %1005 = vmatpush1.bf16.xpose.msra.mxu0 0
        %1006 = vmatprep.subr.bf16.mxu0 0
        %1007 = vmatpush1.bf16.xpose.msra.mxu0 0
        %1008 = vmatprep.subr.bf16.mxu0 0
        %1009 = vmatpush1.bf16.xpose.msra.mxu0 0
        %1010 = vmatprep.subr.bf16.mxu0 0
        %1011 = vmatpush1.bf16.xpose.msra.mxu0 0
        %1012 = vmatprep.subr.bf16.mxu0 0
        %1013 = vmatpush1.bf16.xpose.msra.mxu0 0
        %1014 = vmatprep.subr.bf16.mxu0 0
        %1015 = vmatpush1.bf16.xpose.msra.mxu0 0
        %1016 = vmatprep.subr.bf16.mxu0 0
        %1017 = vmatpush1.bf16.xpose.msra.mxu0 0
        %1018 = vmatprep.subr.bf16.mxu0 0
        %1019 = vmatpush1.bf16.xpose.msra.mxu0 0
        %1020 = vmatprep.subr.bf16.mxu0 0
        %1021 = vmatpush1.bf16.xpose.msra.mxu0 0
        %1022 = vmatprep.subr.bf16.mxu0 0
        %1023 = vmatpush1.bf16.xpose.msra.mxu0 0
        %1024 = vmatprep.subr.bf16.mxu0 0
        %1025 = vmatpush1.bf16.xpose.msra.mxu0 0
        %1026 = vmatprep.subr.bf16.mxu0 0
        %1027 = vmatpush1.bf16.xpose.msra.mxu0 0
        %1028 = vmatprep.subr.bf16.mxu0 0
        %1029 = vmatpush1.bf16.xpose.msra.mxu0 0
        %1030 = vmatprep.subr.bf16.mxu0 0
        %1031 = vmatpush1.bf16.xpose.msra.mxu0 0
        %1032 = vmatprep.mubr.bf16.mxu0 0
        %1033 = vmatmul.mubr.bf16.gmra.mrb[0].mxu0 %v995
        %v1034 = vpop.f32.mrb[0].mxu0
        %v1035 = vadd.f32 0.0, %v1034
        %v1036 = vpop.f32.mrb[0].mxu0
        %v1037 = vpop.f32.mrb[0].mxu0
        %v1038 = vpop.f32.mrb[0].mxu0
        %1039 = vdwg.mxu0
        %v1040 = vsel %vm855, %v897, -inf
        %1041 = vmax.xlane.f32.xlu0 %v1040
        %v1042 = vpop.xlane.xlu0 %1041
        %v1043 = vsel %vm855, %v943, -inf
        %1044 = vmax.xlane.f32.xlu0 %v1043
        %v1045 = vpop.xlane.xlu0 %1044
        %v1046 = vsel %vm855, %v989, -inf
        %1047 = vmax.xlane.f32.xlu0 %v1046
        %v1048 = vpop.xlane.xlu0 %1047
        %v1049 = vsel %vm855, %v1035, -inf
        %1050 = vmax.xlane.f32.xlu0 %v1049
        %v1051 = vpop.xlane.xlu0 %1050
        %v1052 = vsub.f32 %v897, %v1042
        %v1053 = vsub.f32 %v943, %v1045
        %v1054 = vsub.f32 %v989, %v1048
        %v1055 = vsub.f32 %v1035, %v1051
        %v1056 = vmul.f32 %v1052, 1.442695
        %v1057 = vpow.pop %v1056
        %v1058 = vmul.f32 %v1053, 1.442695
        %v1059 = vpow.pop %v1058
        %v1060 = vmul.f32 %v1054, 1.442695
        %v1061 = vpow.pop %v1060
        %v1062 = vmul.f32 %v1055, 1.442695
        %v1063 = vpow.pop %v1062
        %v1064 = vsel %vm855, %v1057, 0.0
        %1065 = vadd.xlane.f32.xlu0 %v1064
        %v1066 = vpop.xlane.xlu0 %1065
        %v1067 = vsel %vm855, %v1059, 0.0
        %1068 = vadd.xlane.f32.xlu0 %v1067
        %v1069 = vpop.xlane.xlu0 %1068
        %v1070 = vsel %vm855, %v1061, 0.0
        %1071 = vadd.xlane.f32.xlu0 %v1070
        %v1072 = vpop.xlane.xlu0 %1071
        %v1073 = vsel %vm855, %v1063, 0.0
        %1074 = vadd.xlane.f32.xlu0 %v1073
        %v1075 = vpop.xlane.xlu0 %1074
        %v1076 = vrcp.pop %v1066
        %v1077 = vmul.f32 %v1057, %v1076
        %v1078 = vrcp.pop %v1069
        %v1079 = vmul.f32 %v1059, %v1078
        %v1080 = vrcp.pop %v1072
        %v1081 = vmul.f32 %v1061, %v1080
        %v1082 = vrcp.pop %v1075
        %v1083 = vmul.f32 %v1063, %v1082
        %v1084 = vpack.c.bf16 %v1077, %v1077
        %v1085 = vpack.c.bf16 %v1079, %v1079
        %v1086 = vpack.c.bf16 %v1081, %v1081
        %v1087 = vpack.c.bf16 %v1083, %v1083
        %v1089 = vsel %vm855, %v1084, 0
        %vm1091 = vcmask 1043456
        %v1093 = vsel %vm1091, %v851, 0
        %1095 = vmatprep.subr.bf16.mxu0 0
        %1096 = vmatpush1.bf16.msra.mxu0 %v1093
        %1097 = vmatprep.subr.bf16.mxu0 0
        %1098 = vmatpush1.bf16.msra.mxu0 0
        %1099 = vmatprep.subr.bf16.mxu0 0
        %1100 = vmatpush1.bf16.msra.mxu0 0
        %1101 = vmatprep.subr.bf16.mxu0 0
        %1102 = vmatpush1.bf16.msra.mxu0 0
        %1103 = vmatprep.subr.bf16.mxu0 0
        %1104 = vmatpush1.bf16.msra.mxu0 0
        %1105 = vmatprep.subr.bf16.mxu0 0
        %1106 = vmatpush1.bf16.msra.mxu0 0
        %1107 = vmatprep.subr.bf16.mxu0 0
        %1108 = vmatpush1.bf16.msra.mxu0 0
        %1109 = vmatprep.subr.bf16.mxu0 0
        %1110 = vmatpush1.bf16.msra.mxu0 0
        %1111 = vmatprep.subr.bf16.mxu0 0
        %1112 = vmatpush1.bf16.msra.mxu0 0
        %1113 = vmatprep.subr.bf16.mxu0 0
        %1114 = vmatpush1.bf16.msra.mxu0 0
        %1115 = vmatprep.subr.bf16.mxu0 0
        %1116 = vmatpush1.bf16.msra.mxu0 0
        %1117 = vmatprep.subr.bf16.mxu0 0
        %1118 = vmatpush1.bf16.msra.mxu0 0
        %1119 = vmatprep.subr.bf16.mxu0 0
        %1120 = vmatpush1.bf16.msra.mxu0 0
        %1121 = vmatprep.subr.bf16.mxu0 0
        %1122 = vmatpush1.bf16.msra.mxu0 0
        %1123 = vmatprep.subr.bf16.mxu0 0
        %1124 = vmatpush1.bf16.msra.mxu0 0
        %1125 = vmatprep.subr.bf16.mxu0 0
        %1126 = vmatpush1.bf16.msra.mxu0 0
        %1127 = vmatprep.mubr.bf16.mxu0 0
        %1128 = vmatmul.mubr.bf16.gmra.mrb[0].mxu0 %v1089
        %v1129 = vpop.f32.mrb[0].mxu0
        %v1130 = vadd.f32 0.0, %v1129
        %v1131 = vpop.f32.mrb[0].mxu0
        %v1132 = vpop.f32.mrb[0].mxu0
        %v1133 = vpop.f32.mrb[0].mxu0
        %1134 = vdwg.mxu0
        %v1136 = vsel %vm855, %v1085, 0
        %v1139 = vsel %vm1091, %v852, 0
        %1141 = vmatprep.subr.bf16.mxu0 0
        %1142 = vmatpush1.bf16.msra.mxu0 %v1139
        %1143 = vmatprep.subr.bf16.mxu0 0
        %1144 = vmatpush1.bf16.msra.mxu0 0
        %1145 = vmatprep.subr.bf16.mxu0 0
        %1146 = vmatpush1.bf16.msra.mxu0 0
        %1147 = vmatprep.subr.bf16.mxu0 0
        %1148 = vmatpush1.bf16.msra.mxu0 0
        %1149 = vmatprep.subr.bf16.mxu0 0
        %1150 = vmatpush1.bf16.msra.mxu0 0
        %1151 = vmatprep.subr.bf16.mxu0 0
        %1152 = vmatpush1.bf16.msra.mxu0 0
        %1153 = vmatprep.subr.bf16.mxu0 0
        %1154 = vmatpush1.bf16.msra.mxu0 0
        %1155 = vmatprep.subr.bf16.mxu0 0
        %1156 = vmatpush1.bf16.msra.mxu0 0
        %1157 = vmatprep.subr.bf16.mxu0 0
        %1158 = vmatpush1.bf16.msra.mxu0 0
        %1159 = vmatprep.subr.bf16.mxu0 0
        %1160 = vmatpush1.bf16.msra.mxu0 0
        %1161 = vmatprep.subr.bf16.mxu0 0
        %1162 = vmatpush1.bf16.msra.mxu0 0
        %1163 = vmatprep.subr.bf16.mxu0 0
        %1164 = vmatpush1.bf16.msra.mxu0 0
        %1165 = vmatprep.subr.bf16.mxu0 0
        %1166 = vmatpush1.bf16.msra.mxu0 0
        %1167 = vmatprep.subr.bf16.mxu0 0
        %1168 = vmatpush1.bf16.msra.mxu0 0
        %1169 = vmatprep.subr.bf16.mxu0 0
        %1170 = vmatpush1.bf16.msra.mxu0 0
        %1171 = vmatprep.subr.bf16.mxu0 0
        %1172 = vmatpush1.bf16.msra.mxu0 0
        %1173 = vmatprep.mubr.bf16.mxu0 0
        %1174 = vmatmul.mubr.bf16.gmra.mrb[0].mxu0 %v1136
        %v1175 = vpop.f32.mrb[0].mxu0
        %v1176 = vadd.f32 0.0, %v1175
        %v1177 = vpop.f32.mrb[0].mxu0
        %v1178 = vpop.f32.mrb[0].mxu0
        %v1179 = vpop.f32.mrb[0].mxu0
        %1180 = vdwg.mxu0
        %v1182 = vsel %vm855, %v1086, 0
        %v1185 = vsel %vm1091, %v853, 0
        %1187 = vmatprep.subr.bf16.mxu0 0
        %1188 = vmatpush1.bf16.msra.mxu0 %v1185
        %1189 = vmatprep.subr.bf16.mxu0 0
        %1190 = vmatpush1.bf16.msra.mxu0 0
        %1191 = vmatprep.subr.bf16.mxu0 0
        %1192 = vmatpush1.bf16.msra.mxu0 0
        %1193 = vmatprep.subr.bf16.mxu0 0
        %1194 = vmatpush1.bf16.msra.mxu0 0
        %1195 = vmatprep.subr.bf16.mxu0 0
        %1196 = vmatpush1.bf16.msra.mxu0 0
        %1197 = vmatprep.subr.bf16.mxu0 0
        %1198 = vmatpush1.bf16.msra.mxu0 0
        %1199 = vmatprep.subr.bf16.mxu0 0
        %1200 = vmatpush1.bf16.msra.mxu0 0
        %1201 = vmatprep.subr.bf16.mxu0 0
        %1202 = vmatpush1.bf16.msra.mxu0 0
        %1203 = vmatprep.subr.bf16.mxu0 0
        %1204 = vmatpush1.bf16.msra.mxu0 0
        %1205 = vmatprep.subr.bf16.mxu0 0
        %1206 = vmatpush1.bf16.msra.mxu0 0
        %1207 = vmatprep.subr.bf16.mxu0 0
        %1208 = vmatpush1.bf16.msra.mxu0 0
        %1209 = vmatprep.subr.bf16.mxu0 0
        %1210 = vmatpush1.bf16.msra.mxu0 0
        %1211 = vmatprep.subr.bf16.mxu0 0
        %1212 = vmatpush1.bf16.msra.mxu0 0
        %1213 = vmatprep.subr.bf16.mxu0 0
        %1214 = vmatpush1.bf16.msra.mxu0 0
        %1215 = vmatprep.subr.bf16.mxu0 0
        %1216 = vmatpush1.bf16.msra.mxu0 0
        %1217 = vmatprep.subr.bf16.mxu0 0
        %1218 = vmatpush1.bf16.msra.mxu0 0
        %1219 = vmatprep.mubr.bf16.mxu0 0
        %1220 = vmatmul.mubr.bf16.gmra.mrb[0].mxu0 %v1182
        %v1221 = vpop.f32.mrb[0].mxu0
        %v1222 = vadd.f32 0.0, %v1221
        %v1223 = vpop.f32.mrb[0].mxu0
        %v1224 = vpop.f32.mrb[0].mxu0
        %v1225 = vpop.f32.mrb[0].mxu0
        %1226 = vdwg.mxu0
        %v1228 = vsel %vm855, %v1087, 0
        %v1231 = vsel %vm1091, %v854, 0
        %1233 = vmatprep.subr.bf16.mxu0 0
        %1234 = vmatpush1.bf16.msra.mxu0 %v1231
        %1235 = vmatprep.subr.bf16.mxu0 0
        %1236 = vmatpush1.bf16.msra.mxu0 0
        %1237 = vmatprep.subr.bf16.mxu0 0
        %1238 = vmatpush1.bf16.msra.mxu0 0
        %1239 = vmatprep.subr.bf16.mxu0 0
        %1240 = vmatpush1.bf16.msra.mxu0 0
        %1241 = vmatprep.subr.bf16.mxu0 0
        %1242 = vmatpush1.bf16.msra.mxu0 0
        %1243 = vmatprep.subr.bf16.mxu0 0
        %1244 = vmatpush1.bf16.msra.mxu0 0
        %1245 = vmatprep.subr.bf16.mxu0 0
        %1246 = vmatpush1.bf16.msra.mxu0 0
        %1247 = vmatprep.subr.bf16.mxu0 0
        %1248 = vmatpush1.bf16.msra.mxu0 0
        %1249 = vmatprep.subr.bf16.mxu0 0
        %1250 = vmatpush1.bf16.msra.mxu0 0
        %1251 = vmatprep.subr.bf16.mxu0 0
        %1252 = vmatpush1.bf16.msra.mxu0 0
        %1253 = vmatprep.subr.bf16.mxu0 0
        %1254 = vmatpush1.bf16.msra.mxu0 0
        %1255 = vmatprep.subr.bf16.mxu0 0
        %1256 = vmatpush1.bf16.msra.mxu0 0
        %1257 = vmatprep.subr.bf16.mxu0 0
        %1258 = vmatpush1.bf16.msra.mxu0 0
        %1259 = vmatprep.subr.bf16.mxu0 0
        %1260 = vmatpush1.bf16.msra.mxu0 0
        %1261 = vmatprep.subr.bf16.mxu0 0
        %1262 = vmatpush1.bf16.msra.mxu0 0
        %1263 = vmatprep.subr.bf16.mxu0 0
        %1264 = vmatpush1.bf16.msra.mxu0 0
        %1265 = vmatprep.mubr.bf16.mxu0 0
        %1266 = vmatmul.mubr.bf16.gmra.mrb[0].mxu0 %v1228
        %v1267 = vpop.f32.mrb[0].mxu0
        %v1268 = vadd.f32 0.0, %v1267
        %v1269 = vpop.f32.mrb[0].mxu0
        %v1270 = vpop.f32.mrb[0].mxu0
        %v1271 = vpop.f32.mrb[0].mxu0
        %1272 = vdwg.mxu0
        %v1273 = vcombine.low %v1130, %v1222
        %v1274 = vcombine.high %v1130, %v1222
        %v1276 = vunpack.c.l.s4 1983009808
        %v1277 = vunpack.c.0.s8 %v1276
        %v1278 = vlaneseq
        %v1279 = vshrl.u32 %v1278, 7
        %v1280 = vsub.s32 %v1277, %v1279
        %v1281 = vrot.slane %v1273, %v1280
        %v1283 = vunpack.c.l.s4 1983009808
        %v1284 = vunpack.c.0.s8 %v1283
        %v1285 = vlaneseq
        %v1286 = vshrl.u32 %v1285, 7
        %v1287 = vsub.s32 %v1284, %v1286
        %v1288 = vrot.slane %v1274, %v1287
        %v1289 = vcombine.low %v1176, %v1268
        %v1290 = vcombine.high %v1176, %v1268
        %v1292 = vunpack.c.l.s4 1983009808
        %v1293 = vunpack.c.0.s8 %v1292
        %v1294 = vlaneseq
        %v1295 = vshrl.u32 %v1294, 7
        %v1296 = vsub.s32 %v1293, %v1295
        %v1297 = vrot.slane %v1289, %v1296
        %v1299 = vunpack.c.l.s4 1983009808
        %v1300 = vunpack.c.0.s8 %v1299
        %v1301 = vlaneseq
        %v1302 = vshrl.u32 %v1301, 7
        %v1303 = vsub.s32 %v1300, %v1302
        %v1304 = vrot.slane %v1290, %v1303
        %v1305 = vcombine.low %v1281, %v1297
        %v1306 = vcombine.high %v1281, %v1297
        %v1308 = vunpack.c.l.s4 1934713408
        %v1309 = vunpack.c.0.s8 %v1308
        %v1310 = vlaneseq
        %v1311 = vshrl.u32 %v1310, 7
        %v1312 = vsub.s32 %v1309, %v1311
        %v1313 = vrot.slane %v1305, %v1312
        %v1315 = vunpack.c.l.s4 1934713408
        %v1316 = vunpack.c.0.s8 %v1315
        %v1317 = vlaneseq
        %v1318 = vshrl.u32 %v1317, 7
        %v1319 = vsub.s32 %v1316, %v1318
        %v1320 = vrot.slane %v1306, %v1319
        %v1321 = vcombine.low %v1288, %v1304
        %v1322 = vcombine.high %v1288, %v1304
        %v1324 = vunpack.c.l.s4 1934713408
        %v1325 = vunpack.c.0.s8 %v1324
        %v1326 = vlaneseq
        %v1327 = vshrl.u32 %v1326, 7
        %v1328 = vsub.s32 %v1325, %v1327
        %v1329 = vrot.slane %v1321, %v1328
        %v1331 = vunpack.c.l.s4 1934713408
        %v1332 = vunpack.c.0.s8 %v1331
        %v1333 = vlaneseq
        %v1334 = vshrl.u32 %v1333, 7
        %v1335 = vsub.s32 %v1332, %v1334
        %v1336 = vrot.slane %v1322, %v1335
        %v1337 = vcombine.high %v1313, 0.0
        %v1338 = vcombine.high %v1320, 0.0
        %v1339 = vcombine.high %v1329, 0.0
        %v1340 = vcombine.high %v1336, 0.0
        %v1341 = vcombine.low %v1313, %v1320
        %v1343 = vunpack.c.l.s4 1983009808
        %v1344 = vunpack.c.0.s8 %v1343
        %v1345 = vlaneseq
        %v1346 = vshrl.u32 %v1345, 7
        %v1347 = vsub.s32 %v1344, %v1346
        %v1348 = vrot.slane %v1341, %v1347
        %v1349 = vcombine.low %v1337, %v1338
        %v1351 = vunpack.c.l.s4 1983009808
        %v1352 = vunpack.c.0.s8 %v1351
        %v1353 = vlaneseq
        %v1354 = vshrl.u32 %v1353, 7
        %v1355 = vsub.s32 %v1352, %v1354
        %v1356 = vrot.slane %v1349, %v1355
        %v1357 = vcombine.low %v1329, %v1336
        %v1359 = vunpack.c.l.s4 1983009808
        %v1360 = vunpack.c.0.s8 %v1359
        %v1361 = vlaneseq
        %v1362 = vshrl.u32 %v1361, 7
        %v1363 = vsub.s32 %v1360, %v1362
        %v1364 = vrot.slane %v1357, %v1363
        %v1365 = vcombine.low %v1339, %v1340
        %v1367 = vunpack.c.l.s4 1983009808
        %v1368 = vunpack.c.0.s8 %v1367
        %v1369 = vlaneseq
        %v1370 = vshrl.u32 %v1369, 7
        %v1371 = vsub.s32 %v1368, %v1370
        %v1372 = vrot.slane %v1365, %v1371
        %v1373 = vcombine.low %v1348, %v1356
        %v1374 = vcombine.high %v1348, %v1356
        %v1376 = vunpack.c.l.s4 1934713408
        %v1377 = vunpack.c.0.s8 %v1376
        %v1378 = vlaneseq
        %v1379 = vshrl.u32 %v1378, 7
        %v1380 = vsub.s32 %v1377, %v1379
        %v1381 = vrot.slane %v1373, %v1380
        %v1383 = vunpack.c.l.s4 1934713408
        %v1384 = vunpack.c.0.s8 %v1383
        %v1385 = vlaneseq
        %v1386 = vshrl.u32 %v1385, 7
        %v1387 = vsub.s32 %v1384, %v1386
        %v1388 = vrot.slane %v1374, %v1387
        %v1389 = vcombine.low %v1364, %v1372
        %v1390 = vcombine.high %v1364, %v1372
        %v1392 = vunpack.c.l.s4 1934713408
        %v1393 = vunpack.c.0.s8 %v1392
        %v1394 = vlaneseq
        %v1395 = vshrl.u32 %v1394, 7
        %v1396 = vsub.s32 %v1393, %v1395
        %v1397 = vrot.slane %v1389, %v1396
        %v1399 = vunpack.c.l.s4 1934713408
        %v1400 = vunpack.c.0.s8 %v1399
        %v1401 = vlaneseq
        %v1402 = vshrl.u32 %v1401, 7
        %v1403 = vsub.s32 %v1400, %v1402
        %v1404 = vrot.slane %v1390, %v1403
        %v1405 = vcombine.low %v1381, %v1397
        %v1406 = vcombine.high %v1381, %v1397
        %v1407 = vcombine.low %v1388, %v1404
        %v1408 = vcombine.high %v1388, %v1404
        %1410 = vrot.lane.b32.xlu0 %v1406, 8
        %v1411 = vpop.permute.xlu0 %1410
        %1414 = vrot.lane.b32.xlu0 %v1407, 16
        %v1415 = vpop.permute.xlu0 %1414
        %1418 = vrot.lane.b32.xlu0 %v1408, 24
        %v1419 = vpop.permute.xlu0 %1418
        %v1421 = vsel %vm855, %v1405, %v1411
        %vm1422 = vcmask 130048
        %v1423 = vsel %vm1422, %v1421, %v1415
        %vm1424 = vcmask 195584
        %v1425 = vsel %vm1424, %v1423, %v1419
        %v1426 = vpack.c.bf16 %v1425, %v1425
        %v1427 = vld [vmem:[#allocation8] sm:$0xf]
        %v1428 = vld [vmem:[#allocation8 + $0x4] sm:$0xf]
        %v1429 = vld [vmem:[#allocation8 + $0x8] sm:$0xf]
        %v1430 = vld [vmem:[#allocation8 + $0xc] sm:$0xf]
        %v1431 = vld [vmem:[#allocation10] sm:$0x1]
        %v1433 = vlaneseq
        %v1434 = vshrl.u32 %v1433, 7
        %v1435 = vsub.s32 0, %v1434
        %v1436 = vrot.slane %v1431, %v1435
        %v1442 = vunpack.c.l.b16 %v1427
        %v1443 = vunpack.c.l.b16 %v1428
        %v1444 = vunpack.c.l.b16 %v1429
        %v1445 = vunpack.c.l.b16 %v1430
        %v1446 = vpack.c.b16 %v1443, %v1442
        %v1447 = vpack.c.b16 %v1445, %v1444
        %v1451 = vsel %vm357, %v1426, 0
        %1453 = vmatprep.subr.bf16.mxu0 0
        %1454 = vmatpush1.bf16.msra.mxu0 %v1446
        %1455 = vmatprep.subr.bf16.mxu0 0
        %1456 = vmatpush1.bf16.msra.mxu0 %v1447
        %1457 = vmatprep.subr.bf16.mxu0 0
        %1458 = vmatpush1.bf16.msra.mxu0 0
        %1459 = vmatprep.subr.bf16.mxu0 0
        %1460 = vmatpush1.bf16.msra.mxu0 0
        %1461 = vmatprep.subr.bf16.mxu0 0
        %1462 = vmatpush1.bf16.msra.mxu0 0
        %1463 = vmatprep.subr.bf16.mxu0 0
        %1464 = vmatpush1.bf16.msra.mxu0 0
        %1465 = vmatprep.subr.bf16.mxu0 0
        %1466 = vmatpush1.bf16.msra.mxu0 0
        %1467 = vmatprep.subr.bf16.mxu0 0
        %1468 = vmatpush1.bf16.msra.mxu0 0
        %1469 = vmatprep.subr.bf16.mxu0 0
        %1470 = vmatpush1.bf16.msra.mxu0 0
        %1471 = vmatprep.subr.bf16.mxu0 0
        %1472 = vmatpush1.bf16.msra.mxu0 0
        %1473 = vmatprep.subr.bf16.mxu0 0
        %1474 = vmatpush1.bf16.msra.mxu0 0
        %1475 = vmatprep.subr.bf16.mxu0 0
        %1476 = vmatpush1.bf16.msra.mxu0 0
        %1477 = vmatprep.subr.bf16.mxu0 0
        %1478 = vmatpush1.bf16.msra.mxu0 0
        %1479 = vmatprep.subr.bf16.mxu0 0
        %1480 = vmatpush1.bf16.msra.mxu0 0
        %1481 = vmatprep.subr.bf16.mxu0 0
        %1482 = vmatpush1.bf16.msra.mxu0 0
        %1483 = vmatprep.subr.bf16.mxu0 0
        %1484 = vmatpush1.bf16.msra.mxu0 0
        %1485 = vmatprep.mubr.bf16.mxu0 0
        %1486 = vmatmul.mubr.bf16.gmra.mrb[0].mxu0 %v1451
        %v1487 = vpop.f32.mrb[0].mxu0
        %v1488 = vadd.f32 %v1436, %v1487
        %v1489 = vpop.f32.mrb[0].mxu0
        %v1490 = vpop.f32.mrb[0].mxu0
        %v1491 = vpop.f32.mrb[0].mxu0
        %1492 = vdwg.mxu0
        %1493 = vst.msk [vmem:[%s324] sm:$0xff] %vm357, %v1488
        %v1494 = vsel %vm855, %v1077, 0.0
        %v1495 = vsel %vm855, %v1079, 0.0
        %v1496 = vadd.f32 %v1494, %v1495
        %v1497 = vsel %vm855, %v1081, 0.0
        %v1498 = vadd.f32 %v1496, %v1497
        %v1499 = vsel %vm855, %v1083, 0.0
        %v1500 = vadd.f32 %v1498, %v1499
        %v1501 = vrcp.pop 4.0
        %v1502 = vmul.f32 %v1500, %v1501
        %1503 = vst.msk [vmem:[%s331] sm:$0xff] %vm855, %v1502
        %s1504 = sand.u32 %s147, 1
        %s1505 = scalar_lea.sflag [#allocation4], %s1504
        %s1506 = sand.u32 %s147, 1
        %s1507 = smul.addr %s1506, 8
        %s1508 = scalar_lea.vmem [#allocation11], %s1507
        %s1509 = sand.u32 %s173, 1
        %s1510 = scalar_lea.sflag [#allocation13], %s1509
        %s1511 = sand.u32 %s173, 1
        %s1512 = smul.addr %s1511, 8
        %s1513 = scalar_lea.vmem [#allocation12], %s1512
        // Predicated region
        $region61: #{tpu_custom_call.1} parent=39 // pred_check
          %p1514 = pneg %p157
        $region62: #{tpu_custom_call.1} parent=39 // pred_check_branch
          %1516 = sbr.rel (%p1514) target = $region64
        $region63: #{tpu_custom_call.1} parent=39 // pred_region
          %s1518 = ssub.s32 128, 128
          %1519 = vsyncadd %s1505, %s1518
          %s1520 = smul.addr %s29, 128
          %s1521 = scalar_lea.hbm %s5, %s1520
          %s1523 = sshll.u32 %s1508, 4
          %s1524 = int_to_ptr.vmem [resolvable:$true] %s1523
          %1526 = dma.vmem_to_hbm [thread:$0]  %s1524, 128, %s1521, %s1505
        $region64: #{tpu_custom_call.1} parent=39 // pred_fallthru
          _
        // Predicated region
        $region65: #{tpu_custom_call.1} parent=39 // pred_check
          %p1527 = pneg %p183
        $region66: #{tpu_custom_call.1} parent=39 // pred_check_branch
          %1529 = sbr.rel (%p1527) target = $region68
        $region67: #{tpu_custom_call.1} parent=39 // pred_region
          %s1531 = ssub.s32 128, 128
          %1532 = vsyncadd %s1510, %s1531
          %s1533 = smul.addr %s29, 128
          %s1534 = scalar_lea.hbm %s6, %s1533
          %s1536 = sshll.u32 %s1513, 4
          %s1537 = int_to_ptr.vmem [resolvable:$true] %s1536
          %1539 = dma.vmem_to_hbm [thread:$0]  %s1537, 128, %s1534, %s1510
        $region68: #{tpu_custom_call.1} parent=39 // pred_fallthru
          _
      $region40: #{tpu_custom_call.1} parent=5 // pred_fallthru
        _
      %p1540 = scmp.le.s32.totalorder 2, %s24
      // Predicated region
      $region69: #{tpu_custom_call.1} parent=5 // pred_check
        %p1541 = pneg %p1540
      $region70: #{tpu_custom_call.1} parent=5 // pred_check_branch
        %1543 = sbr.rel (%p1541) target = $region72
      $region71: #{tpu_custom_call.1} parent=5 // pred_region
        %s1544 = ssub.s32 %s24, 2
        // Predicated region
        $region73: #{tpu_custom_call.1} parent=71 // pred_check
          %p1545 = pneg %p163
        $region74: #{tpu_custom_call.1} parent=71 // pred_check_branch
          %1547 = sbr.rel (%p1545) target = $region76
        $region75: #{tpu_custom_call.1} parent=71 // pred_region
          %s1548 = sand.u32 %s148, 1
          %s1549 = scalar_lea.sflag [#allocation4], %s1548
          %s1550 = sand.u32 %s148, 1
          %s1551 = smul.addr %s1550, 8
          %s1552 = scalar_lea.vmem [#allocation11], %s1551
          %1553 = dma.done %s1549, 128
        $region76: #{tpu_custom_call.1} parent=71 // pred_fallthru
          _
        // Predicated region
        $region77: #{tpu_custom_call.1} parent=71 // pred_check
          %p1554 = pneg %p189
        $region78: #{tpu_custom_call.1} parent=71 // pred_check_branch
          %1556 = sbr.rel (%p1554) target = $region80
        $region79: #{tpu_custom_call.1} parent=71 // pred_region
          %s1557 = sand.u32 %s174, 1
          %s1558 = scalar_lea.sflag [#allocation13], %s1557
          %s1559 = sand.u32 %s174, 1
          %s1560 = smul.addr %s1559, 8
          %s1561 = scalar_lea.vmem [#allocation12], %s1560
          %1562 = dma.done %s1558, 128
        $region80: #{tpu_custom_call.1} parent=71 // pred_fallthru
          _
      $region72: #{tpu_custom_call.1} parent=5 // pred_fallthru
        _
    $region6: #{tpu_custom_call.1} parent=1 // loop_footer
      %s28 = sadd.s32 1, %s24
    $region7: #{tpu_custom_call.1} parent=1 // loop_footer_branch
      %23 = sbr.rel target = $region3
    $region8: #{tpu_custom_call.1} parent=1 // loop_exit
      _
    %1563 = vsyncpa [#allocation3], 1
    %s1564 = scalar_lea.sflag [#allocation3], 1
    %1565 = vsyncpa %s1564, 1
    %1566 = vsyncpa [#allocation6], 1
    %1567 = vsyncpa [#allocation9], 1
    %1568 = vsyncpa [#allocation4], 1
    %s1569 = scalar_lea.sflag [#allocation4], 1
    %1570 = vsyncpa %s1569, 1
    %1571 = vsyncpa [#allocation13], 1
    %s1572 = scalar_lea.sflag [#allocation13], 1
    %1573 = vsyncpa %s1572, 1

</llo_original>
